<compile_context>
chip_gen: v7x
topology: tpu7x:2x2x1
jax: 0.10.0
libtpu: 0.0.40
codegen_flags: <defaults>
</compile_context>

<pallas_src>
import functools

import numpy as np
import jax
import jax.numpy as jnp
from jax.experimental import pallas as pl
from jax.experimental.pallas import tpu as pltpu


# ---------------------------------------------------------------------------
# Constant builders (plain numpy, folded in at trace time).
# ---------------------------------------------------------------------------

def _upsample_matrix(h, w):
    """0/1 matrix U (h*w, 4*h*w): (C, h*w) @ U == flat nearest 2x upsample."""
    h2, w2 = 2 * h, 2 * w
    u = np.zeros((h * w, h2 * w2), np.float32)
    for i in range(h):
        for j in range(w):
            src = i * w + j
            for di in range(2):
                for dj in range(2):
                    u[src, (2 * i + di) * w2 + (2 * j + dj)] = 1.0
    return u


def _kw_masks(h, w):
    """(5, h*w) masks; row kw zeroes output columns whose horizontal tap
    offset (kw-2) would read outside the image width (W-boundary of 'same')."""
    cols = np.arange(h * w) % w
    m = np.zeros((5, h * w), np.float32)
    for kw in range(5):
        m[kw] = ((cols + kw - 2 >= 0) & (cols + kw - 2 <= w - 1)).astype(np.float32)
    return m


# ---------------------------------------------------------------------------
# Fused decoder kernel.
# ---------------------------------------------------------------------------

def _conv5x5_flat(xf, wm, b, masks, w_img):
    """5x5 'same' conv in the flat lane-dense (C, H*W) layout.

    xf:    (Cin, H*W)   flat activations (row-major H, W).
    wm:    (Cout, 25*Cin) weights, taps folded into the contraction dim.
    b:     (Cout, 1)    bias.
    masks: (5, H*W)     per-kw W-boundary masks.
    Returns (Cout, H*W) pre-activation.
    """
    cin, npix = xf.shape
    pad = 2 * w_img + 2
    zeros = jnp.zeros((cin, pad), xf.dtype)
    # Zero-extended flat row: out-of-image rows of a tap read these zeros,
    # which implements the H-direction 'same' padding for free.
    xw = jnp.concatenate([zeros, xf, zeros], axis=1)       # (Cin, npix + 2*pad)

    blocks = []
    for kh in range(5):
        for kw in range(5):
            s = (kh - 2) * w_img + (kw - 2)                # flat shift of this tap
            blk = xw[:, pad + s: pad + s + npix]           # xf shifted by s, 0-filled
            if kw != 2:                                    # mask W-boundary wrap
                blk = blk * masks[kw:kw + 1, :]
            blocks.append(blk)
    patches = jnp.concatenate(blocks, axis=0)              # (25*Cin, H*W) im2col
    return jnp.dot(wm, patches, preferred_element_type=jnp.float32) + b


def _decoder_kernel(x_ref, wm1_ref, b1_ref, wm2_ref, b2_ref, wm3_ref, b3_ref,
                    u1_ref, u2_ref, m1_ref, m2_ref, m3_ref, o_ref, *, w0):
    # conv1 + ReLU on the (8, H0*W0) flat input.
    x = x_ref[0]                                           # (8, H0*W0)
    y1 = jnp.maximum(
        _conv5x5_flat(x, wm1_ref[...], b1_ref[...], m1_ref[...], w0), 0.0)

    # nearest 2x upsample == matmul with a constant 0/1 matrix (stays in VMEM).
    x2 = jnp.dot(y1, u1_ref[...], preferred_element_type=jnp.float32)
    y2 = jnp.maximum(
        _conv5x5_flat(x2, wm2_ref[...], b2_ref[...], m2_ref[...], 2 * w0), 0.0)

    x3 = jnp.dot(y2, u2_ref[...], preferred_element_type=jnp.float32)
    a3 = _conv5x5_flat(x3, wm3_ref[...], b3_ref[...], m3_ref[...], 4 * w0)

    # conv3's Cout=1 was zero-padded to 8 rows for MXU-friendly shapes; row 0
    # is the real channel.  Single lane-dense (1, 16*H0*W0) store.
    o_ref[0] = jax.nn.sigmoid(a3[0:1, :])


# ---------------------------------------------------------------------------
# Public wrapper (NCHW in / NCHW out, like the PyTorch module).
# ---------------------------------------------------------------------------

@jax.jit
def decoder_forward(params, x_nchw):
    """Matches Decoder.forward. x_nchw: [N, 8, H, W] -> [N, 1, 4H, 4W]."""
    n, c, h0, w0 = x_nchw.shape
    assert c == 8, c
    l1, l2, l3 = h0 * w0, 4 * h0 * w0, 16 * h0 * w0

    # Row-major flatten of the spatial dims is a free bitcast in HBM.
    x_flat = x_nchw.reshape(n, 8, l1).astype(jnp.float32)

    (w1, b1), (w2, b2), (w3, b3) = (params["conv1"], params["conv2"],
                                    params["conv3"])
    # (5,5,Cin,Cout) -> (Cout, 25*Cin): taps folded into the contraction dim.
    wm1 = w1.reshape(25 * 8, 8).T                          # (8, 200)
    wm2 = w2.reshape(25 * 8, 16).T                         # (16, 200)
    wm3 = jnp.concatenate([w3.reshape(25 * 16, 1).T,
                           jnp.zeros((7, 25 * 16), jnp.float32)], axis=0)  # (8,400)
    b1c = b1.reshape(8, 1)
    b2c = b2.reshape(16, 1)
    b3c = jnp.concatenate([b3.reshape(1, 1),
                           jnp.zeros((7, 1), jnp.float32)], axis=0)

    u1 = jnp.asarray(_upsample_matrix(h0, w0))             # (l1, l2)
    u2 = jnp.asarray(_upsample_matrix(2 * h0, 2 * w0))     # (l2, l3)
    m1 = jnp.asarray(_kw_masks(h0, w0))                    # (5, l1)
    m2 = jnp.asarray(_kw_masks(2 * h0, 2 * w0))            # (5, l2)
    m3 = jnp.asarray(_kw_masks(4 * h0, 4 * w0))            # (5, l3)

    consts = (wm1, b1c, wm2, b2c, wm3, b3c, u1, u2, m1, m2, m3)
    const_specs = [pl.BlockSpec(cst.shape, lambda i: (0, 0)) for cst in consts]

    out_flat = pl.pallas_call(
        functools.partial(_decoder_kernel, w0=w0),
        out_shape=jax.ShapeDtypeStruct((n, 1, l3), jnp.float32),
        grid=(n,),
        in_specs=[pl.BlockSpec((1, 8, l1), lambda i: (i, 0, 0))] + const_specs,
        out_specs=pl.BlockSpec((1, 1, l3), lambda i: (i, 0, 0)),
        compiler_params=pltpu.CompilerParams(
            dimension_semantics=("parallel",),
            vmem_limit_bytes=32 * 1024 * 1024),
    )(x_flat, *consts)

    return out_flat.reshape(n, 1, 4 * h0, 4 * w0)


# ---------------------------------------------------------------------------
# Params / pure-JAX reference / self-check.
# ---------------------------------------------------------------------------

def init_decoder_params(key):
    """Deterministic params.  Conv weights kept in HWIO: (5, 5, Cin, Cout)."""
    def conv_init(k, cin, cout):
        kw_, kb_ = jax.random.split(k)
        fan_in = cin * 5 * 5
        bound = 1.0 / jnp.sqrt(fan_in)
        w = jax.random.uniform(kw_, (5, 5, cin, cout), jnp.float32, -bound, bound)
        b = jax.random.uniform(kb_, (cout,), jnp.float32, -bound, bound)
        return w, b

    k1, k2, k3 = jax.random.split(key, 3)
    return {
        "conv1": conv_init(k1, 8, 8),
        "conv2": conv_init(k2, 8, 16),
        "conv3": conv_init(k3, 16, 1),
    }


def decoder_forward_ref(params, x_nchw):
    """Pure-JAX reference (lax conv) for a correctness check."""
    x = x_nchw.astype(jnp.float32)

    def conv(x, w, b):
        y = jax.lax.conv_general_dilated(
            x, w, window_strides=(1, 1), padding="SAME",
            dimension_numbers=("NCHW", "HWIO", "NCHW"))
        return y + b.reshape(1, -1, 1, 1)

    w1, b1 = params["conv1"]
    x = jax.nn.relu(conv(x, w1, b1))
    x = jnp.repeat(jnp.repeat(x, 2, axis=2), 2, axis=3)
    w2, b2 = params["conv2"]
    x = jax.nn.relu(conv(x, w2, b2))
    x = jnp.repeat(jnp.repeat(x, 2, axis=2), 2, axis=3)
    w3, b3 = params["conv3"]
    x = jax.nn.sigmoid(conv(x, w3, b3))
    return x


if __name__ == "__main__":
    key = jax.random.PRNGKey(0)
    k_params, k_x = jax.random.split(key)

    params = init_decoder_params(k_params)
    # Small input consistent with the module: N=2, C=8, H=W=8 (NCHW).
    x = jax.random.normal(k_x, (2, 8, 8, 8), dtype=jnp.float32)

    out = jax.block_until_ready(decoder_forward(params, x))
    assert out.shape == (2, 1, 32, 32), out.shape

    ref = jax.block_until_ready(decoder_forward_ref(params, x))
    err = float(jnp.max(jnp.abs(out - ref)))
    assert err < 1e-3, err

    print("KERNEL_OK")
</pallas_src>

<mosaic_0001>
module attributes {stable_mosaic.version = 11 : i64} {
  func.func @_decoder_kernel(%arg0: i32, %arg1: memref<1x8x64xf32, #tpu.memory_space<vmem>>, %arg2: memref<8x200xf32, #tpu.memory_space<vmem>>, %arg3: memref<8x1xf32, #tpu.memory_space<vmem>>, %arg4: memref<16x200xf32, #tpu.memory_space<vmem>>, %arg5: memref<16x1xf32, #tpu.memory_space<vmem>>, %arg6: memref<8x400xf32, #tpu.memory_space<vmem>>, %arg7: memref<8x1xf32, #tpu.memory_space<vmem>>, %arg8: memref<64x256xf32, #tpu.memory_space<vmem>>, %arg9: memref<256x1024xf32, #tpu.memory_space<vmem>>, %arg10: memref<5x64xf32, #tpu.memory_space<vmem>>, %arg11: memref<5x256xf32, #tpu.memory_space<vmem>>, %arg12: memref<5x1024xf32, #tpu.memory_space<vmem>>, %arg13: memref<1x1x1024xf32, #tpu.memory_space<vmem>>) attributes {dimension_semantics = [#tpu.dimension_semantics<parallel>], iteration_bounds = array<i64: 2>, scalar_prefetch = 0 : i64, scratch_operands = 0 : i64, tpu.core_type = #tpu.core_type<tc>, window_params = [{transform_indices = @transform_0, window_bounds = array<i64: 1, 8, 64>}, {pipeline_mode = #tpu.pipeline_mode<synchronous>, transform_indices = @transform_1, window_bounds = array<i64: 8, 200>}, {pipeline_mode = #tpu.pipeline_mode<synchronous>, transform_indices = @transform_2, window_bounds = array<i64: 8, 1>}, {pipeline_mode = #tpu.pipeline_mode<synchronous>, transform_indices = @transform_3, window_bounds = array<i64: 16, 200>}, {pipeline_mode = #tpu.pipeline_mode<synchronous>, transform_indices = @transform_4, window_bounds = array<i64: 16, 1>}, {pipeline_mode = #tpu.pipeline_mode<synchronous>, transform_indices = @transform_5, window_bounds = array<i64: 8, 400>}, {pipeline_mode = #tpu.pipeline_mode<synchronous>, transform_indices = @transform_6, window_bounds = array<i64: 8, 1>}, {pipeline_mode = #tpu.pipeline_mode<synchronous>, transform_indices = @transform_7, window_bounds = array<i64: 64, 256>}, {pipeline_mode = #tpu.pipeline_mode<synchronous>, transform_indices = @transform_8, window_bounds = array<i64: 256, 1024>}, {pipeline_mode = #tpu.pipeline_mode<synchronous>, transform_indices = @transform_9, window_bounds = array<i64: 5, 64>}, {pipeline_mode = #tpu.pipeline_mode<synchronous>, transform_indices = @transform_10, window_bounds = array<i64: 5, 256>}, {pipeline_mode = #tpu.pipeline_mode<synchronous>, transform_indices = @transform_11, window_bounds = array<i64: 5, 1024>}, {transform_indices = @transform_12, window_bounds = array<i64: 1, 1, 1024>}]} {
    %c0 = arith.constant 0 : index
    %c0_0 = arith.constant 0 : index
    %c0_1 = arith.constant 0 : index
    %0 = vector.load %arg1[%c0, %c0_0, %c0_1] : memref<1x8x64xf32, #tpu.memory_space<vmem>>, vector<1x8x64xf32>
    %1 = vector.shape_cast %0 : vector<1x8x64xf32> to vector<8x64xf32>
    %c0_2 = arith.constant 0 : index
    %c0_3 = arith.constant 0 : index
    %2 = vector.load %arg2[%c0_2, %c0_3] : memref<8x200xf32, #tpu.memory_space<vmem>>, vector<8x200xf32>
    %c0_4 = arith.constant 0 : index
    %c0_5 = arith.constant 0 : index
    %3 = vector.load %arg3[%c0_4, %c0_5] : memref<8x1xf32, #tpu.memory_space<vmem>>, vector<8x1xf32>
    %c0_6 = arith.constant 0 : index
    %c0_7 = arith.constant 0 : index
    %4 = vector.load %arg10[%c0_6, %c0_7] : memref<5x64xf32, #tpu.memory_space<vmem>>, vector<5x64xf32>
    %cst = arith.constant 0.000000e+00 : f32
    %5 = vector.broadcast %cst : f32 to vector<8x18xf32>
    %6 = tpu.concatenate %5, %1, %5 in 1 : vector<8x18xf32>, vector<8x64xf32>, vector<8x18xf32> -> vector<8x100xf32>
    %7 = vector.extract_strided_slice %6 {offsets = [0, 0], sizes = [8, 64], strides = [1, 1]} : vector<8x100xf32> to vector<8x64xf32>
    %8 = vector.extract_strided_slice %4 {offsets = [0, 0], sizes = [1, 64], strides = [1, 1]} : vector<5x64xf32> to vector<1x64xf32>
    %9 = vector.broadcast %8 : vector<1x64xf32> to vector<8x64xf32>
    %10 = arith.mulf %7, %9 : vector<8x64xf32>
    %11 = vector.extract_strided_slice %6 {offsets = [0, 1], sizes = [8, 64], strides = [1, 1]} : vector<8x100xf32> to vector<8x64xf32>
    %12 = vector.extract_strided_slice %4 {offsets = [1, 0], sizes = [1, 64], strides = [1, 1]} : vector<5x64xf32> to vector<1x64xf32>
    %13 = vector.broadcast %12 : vector<1x64xf32> to vector<8x64xf32>
    %14 = arith.mulf %11, %13 : vector<8x64xf32>
    %15 = vector.extract_strided_slice %6 {offsets = [0, 2], sizes = [8, 64], strides = [1, 1]} : vector<8x100xf32> to vector<8x64xf32>
    %16 = vector.extract_strided_slice %6 {offsets = [0, 3], sizes = [8, 64], strides = [1, 1]} : vector<8x100xf32> to vector<8x64xf32>
    %17 = vector.extract_strided_slice %4 {offsets = [3, 0], sizes = [1, 64], strides = [1, 1]} : vector<5x64xf32> to vector<1x64xf32>
    %18 = vector.broadcast %17 : vector<1x64xf32> to vector<8x64xf32>
    %19 = arith.mulf %16, %18 : vector<8x64xf32>
    %20 = vector.extract_strided_slice %6 {offsets = [0, 4], sizes = [8, 64], strides = [1, 1]} : vector<8x100xf32> to vector<8x64xf32>
    %21 = vector.extract_strided_slice %4 {offsets = [4, 0], sizes = [1, 64], strides = [1, 1]} : vector<5x64xf32> to vector<1x64xf32>
    %22 = vector.broadcast %21 : vector<1x64xf32> to vector<8x64xf32>
    %23 = arith.mulf %20, %22 : vector<8x64xf32>
    %24 = vector.extract_strided_slice %6 {offsets = [0, 8], sizes = [8, 64], strides = [1, 1]} : vector<8x100xf32> to vector<8x64xf32>
    %25 = vector.extract_strided_slice %4 {offsets = [0, 0], sizes = [1, 64], strides = [1, 1]} : vector<5x64xf32> to vector<1x64xf32>
    %26 = vector.broadcast %25 : vector<1x64xf32> to vector<8x64xf32>
    %27 = arith.mulf %24, %26 : vector<8x64xf32>
    %28 = vector.extract_strided_slice %6 {offsets = [0, 9], sizes = [8, 64], strides = [1, 1]} : vector<8x100xf32> to vector<8x64xf32>
    %29 = vector.extract_strided_slice %4 {offsets = [1, 0], sizes = [1, 64], strides = [1, 1]} : vector<5x64xf32> to vector<1x64xf32>
    %30 = vector.broadcast %29 : vector<1x64xf32> to vector<8x64xf32>
    %31 = arith.mulf %28, %30 : vector<8x64xf32>
    %32 = vector.extract_strided_slice %6 {offsets = [0, 10], sizes = [8, 64], strides = [1, 1]} : vector<8x100xf32> to vector<8x64xf32>
    %33 = vector.extract_strided_slice %6 {offsets = [0, 11], sizes = [8, 64], strides = [1, 1]} : vector<8x100xf32> to vector<8x64xf32>
    %34 = vector.extract_strided_slice %4 {offsets = [3, 0], sizes = [1, 64], strides = [1, 1]} : vector<5x64xf32> to vector<1x64xf32>
    %35 = vector.broadcast %34 : vector<1x64xf32> to vector<8x64xf32>
    %36 = arith.mulf %33, %35 : vector<8x64xf32>
    %37 = vector.extract_strided_slice %6 {offsets = [0, 12], sizes = [8, 64], strides = [1, 1]} : vector<8x100xf32> to vector<8x64xf32>
    %38 = vector.extract_strided_slice %4 {offsets = [4, 0], sizes = [1, 64], strides = [1, 1]} : vector<5x64xf32> to vector<1x64xf32>
    %39 = vector.broadcast %38 : vector<1x64xf32> to vector<8x64xf32>
    %40 = arith.mulf %37, %39 : vector<8x64xf32>
    %41 = vector.extract_strided_slice %6 {offsets = [0, 16], sizes = [8, 64], strides = [1, 1]} : vector<8x100xf32> to vector<8x64xf32>
    %42 = vector.extract_strided_slice %4 {offsets = [0, 0], sizes = [1, 64], strides = [1, 1]} : vector<5x64xf32> to vector<1x64xf32>
    %43 = vector.broadcast %42 : vector<1x64xf32> to vector<8x64xf32>
    %44 = arith.mulf %41, %43 : vector<8x64xf32>
    %45 = vector.extract_strided_slice %6 {offsets = [0, 17], sizes = [8, 64], strides = [1, 1]} : vector<8x100xf32> to vector<8x64xf32>
    %46 = vector.extract_strided_slice %4 {offsets = [1, 0], sizes = [1, 64], strides = [1, 1]} : vector<5x64xf32> to vector<1x64xf32>
    %47 = vector.broadcast %46 : vector<1x64xf32> to vector<8x64xf32>
    %48 = arith.mulf %45, %47 : vector<8x64xf32>
    %49 = vector.extract_strided_slice %6 {offsets = [0, 18], sizes = [8, 64], strides = [1, 1]} : vector<8x100xf32> to vector<8x64xf32>
    %50 = vector.extract_strided_slice %6 {offsets = [0, 19], sizes = [8, 64], strides = [1, 1]} : vector<8x100xf32> to vector<8x64xf32>
    %51 = vector.extract_strided_slice %4 {offsets = [3, 0], sizes = [1, 64], strides = [1, 1]} : vector<5x64xf32> to vector<1x64xf32>
    %52 = vector.broadcast %51 : vector<1x64xf32> to vector<8x64xf32>
    %53 = arith.mulf %50, %52 : vector<8x64xf32>
    %54 = vector.extract_strided_slice %6 {offsets = [0, 20], sizes = [8, 64], strides = [1, 1]} : vector<8x100xf32> to vector<8x64xf32>
    %55 = vector.extract_strided_slice %4 {offsets = [4, 0], sizes = [1, 64], strides = [1, 1]} : vector<5x64xf32> to vector<1x64xf32>
    %56 = vector.broadcast %55 : vector<1x64xf32> to vector<8x64xf32>
    %57 = arith.mulf %54, %56 : vector<8x64xf32>
    %58 = vector.extract_strided_slice %6 {offsets = [0, 24], sizes = [8, 64], strides = [1, 1]} : vector<8x100xf32> to vector<8x64xf32>
    %59 = vector.extract_strided_slice %4 {offsets = [0, 0], sizes = [1, 64], strides = [1, 1]} : vector<5x64xf32> to vector<1x64xf32>
    %60 = vector.broadcast %59 : vector<1x64xf32> to vector<8x64xf32>
    %61 = arith.mulf %58, %60 : vector<8x64xf32>
    %62 = vector.extract_strided_slice %6 {offsets = [0, 25], sizes = [8, 64], strides = [1, 1]} : vector<8x100xf32> to vector<8x64xf32>
    %63 = vector.extract_strided_slice %4 {offsets = [1, 0], sizes = [1, 64], strides = [1, 1]} : vector<5x64xf32> to vector<1x64xf32>
    %64 = vector.broadcast %63 : vector<1x64xf32> to vector<8x64xf32>
    %65 = arith.mulf %62, %64 : vector<8x64xf32>
    %66 = vector.extract_strided_slice %6 {offsets = [0, 26], sizes = [8, 64], strides = [1, 1]} : vector<8x100xf32> to vector<8x64xf32>
    %67 = vector.extract_strided_slice %6 {offsets = [0, 27], sizes = [8, 64], strides = [1, 1]} : vector<8x100xf32> to vector<8x64xf32>
    %68 = vector.extract_strided_slice %4 {offsets = [3, 0], sizes = [1, 64], strides = [1, 1]} : vector<5x64xf32> to vector<1x64xf32>
    %69 = vector.broadcast %68 : vector<1x64xf32> to vector<8x64xf32>
    %70 = arith.mulf %67, %69 : vector<8x64xf32>
    %71 = vector.extract_strided_slice %6 {offsets = [0, 28], sizes = [8, 64], strides = [1, 1]} : vector<8x100xf32> to vector<8x64xf32>
    %72 = vector.extract_strided_slice %4 {offsets = [4, 0], sizes = [1, 64], strides = [1, 1]} : vector<5x64xf32> to vector<1x64xf32>
    %73 = vector.broadcast %72 : vector<1x64xf32> to vector<8x64xf32>
    %74 = arith.mulf %71, %73 : vector<8x64xf32>
    %75 = vector.extract_strided_slice %6 {offsets = [0, 32], sizes = [8, 64], strides = [1, 1]} : vector<8x100xf32> to vector<8x64xf32>
    %76 = vector.extract_strided_slice %4 {offsets = [0, 0], sizes = [1, 64], strides = [1, 1]} : vector<5x64xf32> to vector<1x64xf32>
    %77 = vector.broadcast %76 : vector<1x64xf32> to vector<8x64xf32>
    %78 = arith.mulf %75, %77 : vector<8x64xf32>
    %79 = vector.extract_strided_slice %6 {offsets = [0, 33], sizes = [8, 64], strides = [1, 1]} : vector<8x100xf32> to vector<8x64xf32>
    %80 = vector.extract_strided_slice %4 {offsets = [1, 0], sizes = [1, 64], strides = [1, 1]} : vector<5x64xf32> to vector<1x64xf32>
    %81 = vector.broadcast %80 : vector<1x64xf32> to vector<8x64xf32>
    %82 = arith.mulf %79, %81 : vector<8x64xf32>
    %83 = vector.extract_strided_slice %6 {offsets = [0, 34], sizes = [8, 64], strides = [1, 1]} : vector<8x100xf32> to vector<8x64xf32>
    %84 = vector.extract_strided_slice %6 {offsets = [0, 35], sizes = [8, 64], strides = [1, 1]} : vector<8x100xf32> to vector<8x64xf32>
    %85 = vector.extract_strided_slice %4 {offsets = [3, 0], sizes = [1, 64], strides = [1, 1]} : vector<5x64xf32> to vector<1x64xf32>
    %86 = vector.broadcast %85 : vector<1x64xf32> to vector<8x64xf32>
    %87 = arith.mulf %84, %86 : vector<8x64xf32>
    %88 = vector.extract_strided_slice %6 {offsets = [0, 36], sizes = [8, 64], strides = [1, 1]} : vector<8x100xf32> to vector<8x64xf32>
    %89 = vector.extract_strided_slice %4 {offsets = [4, 0], sizes = [1, 64], strides = [1, 1]} : vector<5x64xf32> to vector<1x64xf32>
    %90 = vector.broadcast %89 : vector<1x64xf32> to vector<8x64xf32>
    %91 = arith.mulf %88, %90 : vector<8x64xf32>
    %92 = tpu.concatenate %10, %14, %15, %19, %23, %27, %31, %32, %36, %40, %44, %48, %49, %53, %57, %61 in 0 : vector<8x64xf32>, vector<8x64xf32>, vector<8x64xf32>, vector<8x64xf32>, vector<8x64xf32>, vector<8x64xf32>, vector<8x64xf32>, vector<8x64xf32>, vector<8x64xf32>, vector<8x64xf32>, vector<8x64xf32>, vector<8x64xf32>, vector<8x64xf32>, vector<8x64xf32>, vector<8x64xf32>, vector<8x64xf32> -> vector<128x64xf32>
    %93 = tpu.concatenate %65, %66, %70, %74, %78, %82, %83, %87, %91 in 0 : vector<8x64xf32>, vector<8x64xf32>, vector<8x64xf32>, vector<8x64xf32>, vector<8x64xf32>, vector<8x64xf32>, vector<8x64xf32>, vector<8x64xf32>, vector<8x64xf32> -> vector<72x64xf32>
    %94 = tpu.concatenate %92, %93 in 0 : vector<128x64xf32>, vector<72x64xf32> -> vector<200x64xf32>
    %cst_8 = arith.constant dense<0.000000e+00> : vector<8x64xf32>
    %95 = tpu.matmul %2, %94, %cst_8 {dimension_numbers = #tpu.dot_dimension_numbers<[1], [0], [0], [1], [0, 0, 1, 1], [], []>} : vector<8x200xf32>, vector<200x64xf32>, vector<8x64xf32> -> vector<8x64xf32>
    %96 = vector.broadcast %3 : vector<8x1xf32> to vector<8x64xf32>
    %97 = arith.addf %95, %96 : vector<8x64xf32>
    %cst_9 = arith.constant 0.000000e+00 : f32
    %98 = vector.broadcast %cst_9 : f32 to vector<8x64xf32>
    %99 = arith.maximumf %97, %98 : vector<8x64xf32>
    %c0_10 = arith.constant 0 : index
    %c0_11 = arith.constant 0 : index
    %100 = vector.load %arg8[%c0_10, %c0_11] : memref<64x256xf32, #tpu.memory_space<vmem>>, vector<64x256xf32>
    %cst_12 = arith.constant dense<0.000000e+00> : vector<8x256xf32>
    %101 = tpu.matmul %99, %100, %cst_12 {dimension_numbers = #tpu.dot_dimension_numbers<[1], [0], [0], [1], [0, 0, 1, 1], [], []>} : vector<8x64xf32>, vector<64x256xf32>, vector<8x256xf32> -> vector<8x256xf32>
    %c0_13 = arith.constant 0 : index
    %c0_14 = arith.constant 0 : index
    %102 = vector.load %arg4[%c0_13, %c0_14] : memref<16x200xf32, #tpu.memory_space<vmem>>, vector<16x200xf32>
    %c0_15 = arith.constant 0 : index
    %c0_16 = arith.constant 0 : index
    %103 = vector.load %arg5[%c0_15, %c0_16] : memref<16x1xf32, #tpu.memory_space<vmem>>, vector<16x1xf32>
    %c0_17 = arith.constant 0 : index
    %c0_18 = arith.constant 0 : index
    %104 = vector.load %arg11[%c0_17, %c0_18] : memref<5x256xf32, #tpu.memory_space<vmem>>, vector<5x256xf32>
    %cst_19 = arith.constant 0.000000e+00 : f32
    %105 = vector.broadcast %cst_19 : f32 to vector<8x34xf32>
    %106 = tpu.concatenate %105, %101, %105 in 1 : vector<8x34xf32>, vector<8x256xf32>, vector<8x34xf32> -> vector<8x324xf32>
    %107 = vector.extract_strided_slice %106 {offsets = [0, 0], sizes = [8, 256], strides = [1, 1]} : vector<8x324xf32> to vector<8x256xf32>
    %108 = vector.extract_strided_slice %104 {offsets = [0, 0], sizes = [1, 256], strides = [1, 1]} : vector<5x256xf32> to vector<1x256xf32>
    %109 = vector.broadcast %108 : vector<1x256xf32> to vector<8x256xf32>
    %110 = arith.mulf %107, %109 : vector<8x256xf32>
    %111 = vector.extract_strided_slice %106 {offsets = [0, 1], sizes = [8, 256], strides = [1, 1]} : vector<8x324xf32> to vector<8x256xf32>
    %112 = vector.extract_strided_slice %104 {offsets = [1, 0], sizes = [1, 256], strides = [1, 1]} : vector<5x256xf32> to vector<1x256xf32>
    %113 = vector.broadcast %112 : vector<1x256xf32> to vector<8x256xf32>
    %114 = arith.mulf %111, %113 : vector<8x256xf32>
    %115 = vector.extract_strided_slice %106 {offsets = [0, 2], sizes = [8, 256], strides = [1, 1]} : vector<8x324xf32> to vector<8x256xf32>
    %116 = vector.extract_strided_slice %106 {offsets = [0, 3], sizes = [8, 256], strides = [1, 1]} : vector<8x324xf32> to vector<8x256xf32>
    %117 = vector.extract_strided_slice %104 {offsets = [3, 0], sizes = [1, 256], strides = [1, 1]} : vector<5x256xf32> to vector<1x256xf32>
    %118 = vector.broadcast %117 : vector<1x256xf32> to vector<8x256xf32>
    %119 = arith.mulf %116, %118 : vector<8x256xf32>
    %120 = vector.extract_strided_slice %106 {offsets = [0, 4], sizes = [8, 256], strides = [1, 1]} : vector<8x324xf32> to vector<8x256xf32>
    %121 = vector.extract_strided_slice %104 {offsets = [4, 0], sizes = [1, 256], strides = [1, 1]} : vector<5x256xf32> to vector<1x256xf32>
    %122 = vector.broadcast %121 : vector<1x256xf32> to vector<8x256xf32>
    %123 = arith.mulf %120, %122 : vector<8x256xf32>
    %124 = vector.extract_strided_slice %106 {offsets = [0, 16], sizes = [8, 256], strides = [1, 1]} : vector<8x324xf32> to vector<8x256xf32>
    %125 = vector.extract_strided_slice %104 {offsets = [0, 0], sizes = [1, 256], strides = [1, 1]} : vector<5x256xf32> to vector<1x256xf32>
    %126 = vector.broadcast %125 : vector<1x256xf32> to vector<8x256xf32>
    %127 = arith.mulf %124, %126 : vector<8x256xf32>
    %128 = vector.extract_strided_slice %106 {offsets = [0, 17], sizes = [8, 256], strides = [1, 1]} : vector<8x324xf32> to vector<8x256xf32>
    %129 = vector.extract_strided_slice %104 {offsets = [1, 0], sizes = [1, 256], strides = [1, 1]} : vector<5x256xf32> to vector<1x256xf32>
    %130 = vector.broadcast %129 : vector<1x256xf32> to vector<8x256xf32>
    %131 = arith.mulf %128, %130 : vector<8x256xf32>
    %132 = vector.extract_strided_slice %106 {offsets = [0, 18], sizes = [8, 256], strides = [1, 1]} : vector<8x324xf32> to vector<8x256xf32>
    %133 = vector.extract_strided_slice %106 {offsets = [0, 19], sizes = [8, 256], strides = [1, 1]} : vector<8x324xf32> to vector<8x256xf32>
    %134 = vector.extract_strided_slice %104 {offsets = [3, 0], sizes = [1, 256], strides = [1, 1]} : vector<5x256xf32> to vector<1x256xf32>
    %135 = vector.broadcast %134 : vector<1x256xf32> to vector<8x256xf32>
    %136 = arith.mulf %133, %135 : vector<8x256xf32>
    %137 = vector.extract_strided_slice %106 {offsets = [0, 20], sizes = [8, 256], strides = [1, 1]} : vector<8x324xf32> to vector<8x256xf32>
    %138 = vector.extract_strided_slice %104 {offsets = [4, 0], sizes = [1, 256], strides = [1, 1]} : vector<5x256xf32> to vector<1x256xf32>
    %139 = vector.broadcast %138 : vector<1x256xf32> to vector<8x256xf32>
    %140 = arith.mulf %137, %139 : vector<8x256xf32>
    %141 = vector.extract_strided_slice %106 {offsets = [0, 32], sizes = [8, 256], strides = [1, 1]} : vector<8x324xf32> to vector<8x256xf32>
    %142 = vector.extract_strided_slice %104 {offsets = [0, 0], sizes = [1, 256], strides = [1, 1]} : vector<5x256xf32> to vector<1x256xf32>
    %143 = vector.broadcast %142 : vector<1x256xf32> to vector<8x256xf32>
    %144 = arith.mulf %141, %143 : vector<8x256xf32>
    %145 = vector.extract_strided_slice %106 {offsets = [0, 33], sizes = [8, 256], strides = [1, 1]} : vector<8x324xf32> to vector<8x256xf32>
    %146 = vector.extract_strided_slice %104 {offsets = [1, 0], sizes = [1, 256], strides = [1, 1]} : vector<5x256xf32> to vector<1x256xf32>
    %147 = vector.broadcast %146 : vector<1x256xf32> to vector<8x256xf32>
    %148 = arith.mulf %145, %147 : vector<8x256xf32>
    %149 = vector.extract_strided_slice %106 {offsets = [0, 34], sizes = [8, 256], strides = [1, 1]} : vector<8x324xf32> to vector<8x256xf32>
    %150 = vector.extract_strided_slice %106 {offsets = [0, 35], sizes = [8, 256], strides = [1, 1]} : vector<8x324xf32> to vector<8x256xf32>
    %151 = vector.extract_strided_slice %104 {offsets = [3, 0], sizes = [1, 256], strides = [1, 1]} : vector<5x256xf32> to vector<1x256xf32>
    %152 = vector.broadcast %151 : vector<1x256xf32> to vector<8x256xf32>
    %153 = arith.mulf %150, %152 : vector<8x256xf32>
    %154 = vector.extract_strided_slice %106 {offsets = [0, 36], sizes = [8, 256], strides = [1, 1]} : vector<8x324xf32> to vector<8x256xf32>
    %155 = vector.extract_strided_slice %104 {offsets = [4, 0], sizes = [1, 256], strides = [1, 1]} : vector<5x256xf32> to vector<1x256xf32>
    %156 = vector.broadcast %155 : vector<1x256xf32> to vector<8x256xf32>
    %157 = arith.mulf %154, %156 : vector<8x256xf32>
    %158 = vector.extract_strided_slice %106 {offsets = [0, 48], sizes = [8, 256], strides = [1, 1]} : vector<8x324xf32> to vector<8x256xf32>
    %159 = vector.extract_strided_slice %104 {offsets = [0, 0], sizes = [1, 256], strides = [1, 1]} : vector<5x256xf32> to vector<1x256xf32>
    %160 = vector.broadcast %159 : vector<1x256xf32> to vector<8x256xf32>
    %161 = arith.mulf %158, %160 : vector<8x256xf32>
    %162 = vector.extract_strided_slice %106 {offsets = [0, 49], sizes = [8, 256], strides = [1, 1]} : vector<8x324xf32> to vector<8x256xf32>
    %163 = vector.extract_strided_slice %104 {offsets = [1, 0], sizes = [1, 256], strides = [1, 1]} : vector<5x256xf32> to vector<1x256xf32>
    %164 = vector.broadcast %163 : vector<1x256xf32> to vector<8x256xf32>
    %165 = arith.mulf %162, %164 : vector<8x256xf32>
    %166 = vector.extract_strided_slice %106 {offsets = [0, 50], sizes = [8, 256], strides = [1, 1]} : vector<8x324xf32> to vector<8x256xf32>
    %167 = vector.extract_strided_slice %106 {offsets = [0, 51], sizes = [8, 256], strides = [1, 1]} : vector<8x324xf32> to vector<8x256xf32>
    %168 = vector.extract_strided_slice %104 {offsets = [3, 0], sizes = [1, 256], strides = [1, 1]} : vector<5x256xf32> to vector<1x256xf32>
    %169 = vector.broadcast %168 : vector<1x256xf32> to vector<8x256xf32>
    %170 = arith.mulf %167, %169 : vector<8x256xf32>
    %171 = vector.extract_strided_slice %106 {offsets = [0, 52], sizes = [8, 256], strides = [1, 1]} : vector<8x324xf32> to vector<8x256xf32>
    %172 = vector.extract_strided_slice %104 {offsets = [4, 0], sizes = [1, 256], strides = [1, 1]} : vector<5x256xf32> to vector<1x256xf32>
    %173 = vector.broadcast %172 : vector<1x256xf32> to vector<8x256xf32>
    %174 = arith.mulf %171, %173 : vector<8x256xf32>
    %175 = vector.extract_strided_slice %106 {offsets = [0, 64], sizes = [8, 256], strides = [1, 1]} : vector<8x324xf32> to vector<8x256xf32>
    %176 = vector.extract_strided_slice %104 {offsets = [0, 0], sizes = [1, 256], strides = [1, 1]} : vector<5x256xf32> to vector<1x256xf32>
    %177 = vector.broadcast %176 : vector<1x256xf32> to vector<8x256xf32>
    %178 = arith.mulf %175, %177 : vector<8x256xf32>
    %179 = vector.extract_strided_slice %106 {offsets = [0, 65], sizes = [8, 256], strides = [1, 1]} : vector<8x324xf32> to vector<8x256xf32>
    %180 = vector.extract_strided_slice %104 {offsets = [1, 0], sizes = [1, 256], strides = [1, 1]} : vector<5x256xf32> to vector<1x256xf32>
    %181 = vector.broadcast %180 : vector<1x256xf32> to vector<8x256xf32>
    %182 = arith.mulf %179, %181 : vector<8x256xf32>
    %183 = vector.extract_strided_slice %106 {offsets = [0, 66], sizes = [8, 256], strides = [1, 1]} : vector<8x324xf32> to vector<8x256xf32>
    %184 = vector.extract_strided_slice %106 {offsets = [0, 67], sizes = [8, 256], strides = [1, 1]} : vector<8x324xf32> to vector<8x256xf32>
    %185 = vector.extract_strided_slice %104 {offsets = [3, 0], sizes = [1, 256], strides = [1, 1]} : vector<5x256xf32> to vector<1x256xf32>
    %186 = vector.broadcast %185 : vector<1x256xf32> to vector<8x256xf32>
    %187 = arith.mulf %184, %186 : vector<8x256xf32>
    %188 = vector.extract_strided_slice %106 {offsets = [0, 68], sizes = [8, 256], strides = [1, 1]} : vector<8x324xf32> to vector<8x256xf32>
    %189 = vector.extract_strided_slice %104 {offsets = [4, 0], sizes = [1, 256], strides = [1, 1]} : vector<5x256xf32> to vector<1x256xf32>
    %190 = vector.broadcast %189 : vector<1x256xf32> to vector<8x256xf32>
    %191 = arith.mulf %188, %190 : vector<8x256xf32>
    %192 = tpu.concatenate %110, %114, %115, %119, %123, %127, %131, %132, %136, %140, %144, %148, %149, %153, %157, %161 in 0 : vector<8x256xf32>, vector<8x256xf32>, vector<8x256xf32>, vector<8x256xf32>, vector<8x256xf32>, vector<8x256xf32>, vector<8x256xf32>, vector<8x256xf32>, vector<8x256xf32>, vector<8x256xf32>, vector<8x256xf32>, vector<8x256xf32>, vector<8x256xf32>, vector<8x256xf32>, vector<8x256xf32>, vector<8x256xf32> -> vector<128x256xf32>
    %193 = tpu.concatenate %165, %166, %170, %174, %178, %182, %183, %187, %191 in 0 : vector<8x256xf32>, vector<8x256xf32>, vector<8x256xf32>, vector<8x256xf32>, vector<8x256xf32>, vector<8x256xf32>, vector<8x256xf32>, vector<8x256xf32>, vector<8x256xf32> -> vector<72x256xf32>
    %194 = tpu.concatenate %192, %193 in 0 : vector<128x256xf32>, vector<72x256xf32> -> vector<200x256xf32>
    %cst_20 = arith.constant dense<0.000000e+00> : vector<16x256xf32>
    %195 = tpu.matmul %102, %194, %cst_20 {dimension_numbers = #tpu.dot_dimension_numbers<[1], [0], [0], [1], [0, 0, 1, 1], [], []>} : vector<16x200xf32>, vector<200x256xf32>, vector<16x256xf32> -> vector<16x256xf32>
    %196 = vector.broadcast %103 : vector<16x1xf32> to vector<16x256xf32>
    %197 = arith.addf %195, %196 : vector<16x256xf32>
    %cst_21 = arith.constant 0.000000e+00 : f32
    %198 = vector.broadcast %cst_21 : f32 to vector<16x256xf32>
    %199 = arith.maximumf %197, %198 : vector<16x256xf32>
    %c0_22 = arith.constant 0 : index
    %c0_23 = arith.constant 0 : index
    %200 = vector.load %arg9[%c0_22, %c0_23] : memref<256x1024xf32, #tpu.memory_space<vmem>>, vector<256x1024xf32>
    %cst_24 = arith.constant dense<0.000000e+00> : vector<16x1024xf32>
    %201 = tpu.matmul %199, %200, %cst_24 {dimension_numbers = #tpu.dot_dimension_numbers<[1], [0], [0], [1], [0, 0, 1, 1], [], []>} : vector<16x256xf32>, vector<256x1024xf32>, vector<16x1024xf32> -> vector<16x1024xf32>
    %c0_25 = arith.constant 0 : index
    %c0_26 = arith.constant 0 : index
    %202 = vector.load %arg6[%c0_25, %c0_26] : memref<8x400xf32, #tpu.memory_space<vmem>>, vector<8x400xf32>
    %c0_27 = arith.constant 0 : index
    %c0_28 = arith.constant 0 : index
    %203 = vector.load %arg7[%c0_27, %c0_28] : memref<8x1xf32, #tpu.memory_space<vmem>>, vector<8x1xf32>
    %c0_29 = arith.constant 0 : index
    %c0_30 = arith.constant 0 : index
    %204 = vector.load %arg12[%c0_29, %c0_30] : memref<5x1024xf32, #tpu.memory_space<vmem>>, vector<5x1024xf32>
    %cst_31 = arith.constant 0.000000e+00 : f32
    %205 = vector.broadcast %cst_31 : f32 to vector<16x66xf32>
    %206 = tpu.concatenate %205, %201, %205 in 1 : vector<16x66xf32>, vector<16x1024xf32>, vector<16x66xf32> -> vector<16x1156xf32>
    %207 = vector.extract_strided_slice %206 {offsets = [0, 0], sizes = [16, 1024], strides = [1, 1]} : vector<16x1156xf32> to vector<16x1024xf32>
    %208 = vector.extract_strided_slice %204 {offsets = [0, 0], sizes = [1, 1024], strides = [1, 1]} : vector<5x1024xf32> to vector<1x1024xf32>
    %209 = vector.broadcast %208 : vector<1x1024xf32> to vector<16x1024xf32>
    %210 = arith.mulf %207, %209 : vector<16x1024xf32>
    %211 = vector.extract_strided_slice %206 {offsets = [0, 1], sizes = [16, 1024], strides = [1, 1]} : vector<16x1156xf32> to vector<16x1024xf32>
    %212 = vector.extract_strided_slice %204 {offsets = [1, 0], sizes = [1, 1024], strides = [1, 1]} : vector<5x1024xf32> to vector<1x1024xf32>
    %213 = vector.broadcast %212 : vector<1x1024xf32> to vector<16x1024xf32>
    %214 = arith.mulf %211, %213 : vector<16x1024xf32>
    %215 = vector.extract_strided_slice %206 {offsets = [0, 2], sizes = [16, 1024], strides = [1, 1]} : vector<16x1156xf32> to vector<16x1024xf32>
    %216 = vector.extract_strided_slice %206 {offsets = [0, 3], sizes = [16, 1024], strides = [1, 1]} : vector<16x1156xf32> to vector<16x1024xf32>
    %217 = vector.extract_strided_slice %204 {offsets = [3, 0], sizes = [1, 1024], strides = [1, 1]} : vector<5x1024xf32> to vector<1x1024xf32>
    %218 = vector.broadcast %217 : vector<1x1024xf32> to vector<16x1024xf32>
    %219 = arith.mulf %216, %218 : vector<16x1024xf32>
    %220 = vector.extract_strided_slice %206 {offsets = [0, 4], sizes = [16, 1024], strides = [1, 1]} : vector<16x1156xf32> to vector<16x1024xf32>
    %221 = vector.extract_strided_slice %204 {offsets = [4, 0], sizes = [1, 1024], strides = [1, 1]} : vector<5x1024xf32> to vector<1x1024xf32>
    %222 = vector.broadcast %221 : vector<1x1024xf32> to vector<16x1024xf32>
    %223 = arith.mulf %220, %222 : vector<16x1024xf32>
    %224 = vector.extract_strided_slice %206 {offsets = [0, 32], sizes = [16, 1024], strides = [1, 1]} : vector<16x1156xf32> to vector<16x1024xf32>
    %225 = vector.extract_strided_slice %204 {offsets = [0, 0], sizes = [1, 1024], strides = [1, 1]} : vector<5x1024xf32> to vector<1x1024xf32>
    %226 = vector.broadcast %225 : vector<1x1024xf32> to vector<16x1024xf32>
    %227 = arith.mulf %224, %226 : vector<16x1024xf32>
    %228 = vector.extract_strided_slice %206 {offsets = [0, 33], sizes = [16, 1024], strides = [1, 1]} : vector<16x1156xf32> to vector<16x1024xf32>
    %229 = vector.extract_strided_slice %204 {offsets = [1, 0], sizes = [1, 1024], strides = [1, 1]} : vector<5x1024xf32> to vector<1x1024xf32>
    %230 = vector.broadcast %229 : vector<1x1024xf32> to vector<16x1024xf32>
    %231 = arith.mulf %228, %230 : vector<16x1024xf32>
    %232 = vector.extract_strided_slice %206 {offsets = [0, 34], sizes = [16, 1024], strides = [1, 1]} : vector<16x1156xf32> to vector<16x1024xf32>
    %233 = vector.extract_strided_slice %206 {offsets = [0, 35], sizes = [16, 1024], strides = [1, 1]} : vector<16x1156xf32> to vector<16x1024xf32>
    %234 = vector.extract_strided_slice %204 {offsets = [3, 0], sizes = [1, 1024], strides = [1, 1]} : vector<5x1024xf32> to vector<1x1024xf32>
    %235 = vector.broadcast %234 : vector<1x1024xf32> to vector<16x1024xf32>
    %236 = arith.mulf %233, %235 : vector<16x1024xf32>
    %237 = vector.extract_strided_slice %206 {offsets = [0, 36], sizes = [16, 1024], strides = [1, 1]} : vector<16x1156xf32> to vector<16x1024xf32>
    %238 = vector.extract_strided_slice %204 {offsets = [4, 0], sizes = [1, 1024], strides = [1, 1]} : vector<5x1024xf32> to vector<1x1024xf32>
    %239 = vector.broadcast %238 : vector<1x1024xf32> to vector<16x1024xf32>
    %240 = arith.mulf %237, %239 : vector<16x1024xf32>
    %241 = vector.extract_strided_slice %206 {offsets = [0, 64], sizes = [16, 1024], strides = [1, 1]} : vector<16x1156xf32> to vector<16x1024xf32>
    %242 = vector.extract_strided_slice %204 {offsets = [0, 0], sizes = [1, 1024], strides = [1, 1]} : vector<5x1024xf32> to vector<1x1024xf32>
    %243 = vector.broadcast %242 : vector<1x1024xf32> to vector<16x1024xf32>
    %244 = arith.mulf %241, %243 : vector<16x1024xf32>
    %245 = vector.extract_strided_slice %206 {offsets = [0, 65], sizes = [16, 1024], strides = [1, 1]} : vector<16x1156xf32> to vector<16x1024xf32>
    %246 = vector.extract_strided_slice %204 {offsets = [1, 0], sizes = [1, 1024], strides = [1, 1]} : vector<5x1024xf32> to vector<1x1024xf32>
    %247 = vector.broadcast %246 : vector<1x1024xf32> to vector<16x1024xf32>
    %248 = arith.mulf %245, %247 : vector<16x1024xf32>
    %249 = vector.extract_strided_slice %206 {offsets = [0, 66], sizes = [16, 1024], strides = [1, 1]} : vector<16x1156xf32> to vector<16x1024xf32>
    %250 = vector.extract_strided_slice %206 {offsets = [0, 67], sizes = [16, 1024], strides = [1, 1]} : vector<16x1156xf32> to vector<16x1024xf32>
    %251 = vector.extract_strided_slice %204 {offsets = [3, 0], sizes = [1, 1024], strides = [1, 1]} : vector<5x1024xf32> to vector<1x1024xf32>
    %252 = vector.broadcast %251 : vector<1x1024xf32> to vector<16x1024xf32>
    %253 = arith.mulf %250, %252 : vector<16x1024xf32>
    %254 = vector.extract_strided_slice %206 {offsets = [0, 68], sizes = [16, 1024], strides = [1, 1]} : vector<16x1156xf32> to vector<16x1024xf32>
    %255 = vector.extract_strided_slice %204 {offsets = [4, 0], sizes = [1, 1024], strides = [1, 1]} : vector<5x1024xf32> to vector<1x1024xf32>
    %256 = vector.broadcast %255 : vector<1x1024xf32> to vector<16x1024xf32>
    %257 = arith.mulf %254, %256 : vector<16x1024xf32>
    %258 = vector.extract_strided_slice %206 {offsets = [0, 96], sizes = [16, 1024], strides = [1, 1]} : vector<16x1156xf32> to vector<16x1024xf32>
    %259 = vector.extract_strided_slice %204 {offsets = [0, 0], sizes = [1, 1024], strides = [1, 1]} : vector<5x1024xf32> to vector<1x1024xf32>
    %260 = vector.broadcast %259 : vector<1x1024xf32> to vector<16x1024xf32>
    %261 = arith.mulf %258, %260 : vector<16x1024xf32>
    %262 = vector.extract_strided_slice %206 {offsets = [0, 97], sizes = [16, 1024], strides = [1, 1]} : vector<16x1156xf32> to vector<16x1024xf32>
    %263 = vector.extract_strided_slice %204 {offsets = [1, 0], sizes = [1, 1024], strides = [1, 1]} : vector<5x1024xf32> to vector<1x1024xf32>
    %264 = vector.broadcast %263 : vector<1x1024xf32> to vector<16x1024xf32>
    %265 = arith.mulf %262, %264 : vector<16x1024xf32>
    %266 = vector.extract_strided_slice %206 {offsets = [0, 98], sizes = [16, 1024], strides = [1, 1]} : vector<16x1156xf32> to vector<16x1024xf32>
    %267 = vector.extract_strided_slice %206 {offsets = [0, 99], sizes = [16, 1024], strides = [1, 1]} : vector<16x1156xf32> to vector<16x1024xf32>
    %268 = vector.extract_strided_slice %204 {offsets = [3, 0], sizes = [1, 1024], strides = [1, 1]} : vector<5x1024xf32> to vector<1x1024xf32>
    %269 = vector.broadcast %268 : vector<1x1024xf32> to vector<16x1024xf32>
    %270 = arith.mulf %267, %269 : vector<16x1024xf32>
    %271 = vector.extract_strided_slice %206 {offsets = [0, 100], sizes = [16, 1024], strides = [1, 1]} : vector<16x1156xf32> to vector<16x1024xf32>
    %272 = vector.extract_strided_slice %204 {offsets = [4, 0], sizes = [1, 1024], strides = [1, 1]} : vector<5x1024xf32> to vector<1x1024xf32>
    %273 = vector.broadcast %272 : vector<1x1024xf32> to vector<16x1024xf32>
    %274 = arith.mulf %271, %273 : vector<16x1024xf32>
    %275 = vector.extract_strided_slice %206 {offsets = [0, 128], sizes = [16, 1024], strides = [1, 1]} : vector<16x1156xf32> to vector<16x1024xf32>
    %276 = vector.extract_strided_slice %204 {offsets = [0, 0], sizes = [1, 1024], strides = [1, 1]} : vector<5x1024xf32> to vector<1x1024xf32>
    %277 = vector.broadcast %276 : vector<1x1024xf32> to vector<16x1024xf32>
    %278 = arith.mulf %275, %277 : vector<16x1024xf32>
    %279 = vector.extract_strided_slice %206 {offsets = [0, 129], sizes = [16, 1024], strides = [1, 1]} : vector<16x1156xf32> to vector<16x1024xf32>
    %280 = vector.extract_strided_slice %204 {offsets = [1, 0], sizes = [1, 1024], strides = [1, 1]} : vector<5x1024xf32> to vector<1x1024xf32>
    %281 = vector.broadcast %280 : vector<1x1024xf32> to vector<16x1024xf32>
    %282 = arith.mulf %279, %281 : vector<16x1024xf32>
    %283 = vector.extract_strided_slice %206 {offsets = [0, 130], sizes = [16, 1024], strides = [1, 1]} : vector<16x1156xf32> to vector<16x1024xf32>
    %284 = vector.extract_strided_slice %206 {offsets = [0, 131], sizes = [16, 1024], strides = [1, 1]} : vector<16x1156xf32> to vector<16x1024xf32>
    %285 = vector.extract_strided_slice %204 {offsets = [3, 0], sizes = [1, 1024], strides = [1, 1]} : vector<5x1024xf32> to vector<1x1024xf32>
    %286 = vector.broadcast %285 : vector<1x1024xf32> to vector<16x1024xf32>
    %287 = arith.mulf %284, %286 : vector<16x1024xf32>
    %288 = vector.extract_strided_slice %206 {offsets = [0, 132], sizes = [16, 1024], strides = [1, 1]} : vector<16x1156xf32> to vector<16x1024xf32>
    %289 = vector.extract_strided_slice %204 {offsets = [4, 0], sizes = [1, 1024], strides = [1, 1]} : vector<5x1024xf32> to vector<1x1024xf32>
    %290 = vector.broadcast %289 : vector<1x1024xf32> to vector<16x1024xf32>
    %291 = arith.mulf %288, %290 : vector<16x1024xf32>
    %292 = tpu.concatenate %210, %214, %215, %219, %223, %227, %231, %232, %236, %240, %244, %248, %249, %253, %257, %261 in 0 : vector<16x1024xf32>, vector<16x1024xf32>, vector<16x1024xf32>, vector<16x1024xf32>, vector<16x1024xf32>, vector<16x1024xf32>, vector<16x1024xf32>, vector<16x1024xf32>, vector<16x1024xf32>, vector<16x1024xf32>, vector<16x1024xf32>, vector<16x1024xf32>, vector<16x1024xf32>, vector<16x1024xf32>, vector<16x1024xf32>, vector<16x1024xf32> -> vector<256x1024xf32>
    %293 = tpu.concatenate %265, %266, %270, %274, %278, %282, %283, %287, %291 in 0 : vector<16x1024xf32>, vector<16x1024xf32>, vector<16x1024xf32>, vector<16x1024xf32>, vector<16x1024xf32>, vector<16x1024xf32>, vector<16x1024xf32>, vector<16x1024xf32>, vector<16x1024xf32> -> vector<144x1024xf32>
    %294 = tpu.concatenate %292, %293 in 0 : vector<256x1024xf32>, vector<144x1024xf32> -> vector<400x1024xf32>
    %cst_32 = arith.constant dense<0.000000e+00> : vector<8x1024xf32>
    %295 = tpu.matmul %202, %294, %cst_32 {dimension_numbers = #tpu.dot_dimension_numbers<[1], [0], [0], [1], [0, 0, 1, 1], [], []>} : vector<8x400xf32>, vector<400x1024xf32>, vector<8x1024xf32> -> vector<8x1024xf32>
    %296 = vector.broadcast %203 : vector<8x1xf32> to vector<8x1024xf32>
    %297 = arith.addf %295, %296 : vector<8x1024xf32>
    %298 = vector.extract_strided_slice %297 {offsets = [0, 0], sizes = [1, 1024], strides = [1, 1]} : vector<8x1024xf32> to vector<1x1024xf32>
    %299 = arith.negf %298 : vector<1x1024xf32>
    %300 = math.exp %299 : vector<1x1024xf32>
    %cst_33 = arith.constant 1.000000e+00 : f32
    %301 = vector.broadcast %cst_33 : f32 to vector<1x1024xf32>
    %302 = arith.addf %301, %300 : vector<1x1024xf32>
    %303 = arith.divf %301, %302 : vector<1x1024xf32>
    %c0_34 = arith.constant 0 : index
    %c0_35 = arith.constant 0 : index
    %c0_36 = arith.constant 0 : index
    %304 = vector.load %arg13[%c0_34, %c0_35, %c0_36] : memref<1x1x1024xf32, #tpu.memory_space<vmem>>, vector<1x1x1024xf32>
    %305 = vector.shape_cast %304 : vector<1x1x1024xf32> to vector<1x1024xf32>
    %306 = vector.shape_cast %303 : vector<1x1024xf32> to vector<1x1x1024xf32>
    tpu.vector_store %arg13[%c0_34, %c0_35, %c0_36], %306 {strides = array<i32>} : memref<1x1x1024xf32, #tpu.memory_space<vmem>>, vector<1x1x1024xf32>,
    return
  }
  func.func @transform_0(%arg0: i32) -> (i32, i32, i32) {
    %c0_i32 = arith.constant 0 : i32
    %c0_i32_0 = arith.constant 0 : i32
    %c0_i32_1 = arith.constant 0 : i32
    return %arg0, %c0_i32, %c0_i32_0 : i32, i32, i32
  }
  func.func @transform_1(%arg0: i32) -> (i32, i32) {
    %c0_i32 = arith.constant 0 : i32
    %c0_i32_0 = arith.constant 0 : i32
    %c0_i32_1 = arith.constant 0 : i32
    return %c0_i32, %c0_i32_0 : i32, i32
  }
  func.func @transform_2(%arg0: i32) -> (i32, i32) {
    %c0_i32 = arith.constant 0 : i32
    %c0_i32_0 = arith.constant 0 : i32
    %c0_i32_1 = arith.constant 0 : i32
    return %c0_i32, %c0_i32_0 : i32, i32
  }
  func.func @transform_3(%arg0: i32) -> (i32, i32) {
    %c0_i32 = arith.constant 0 : i32
    %c0_i32_0 = arith.constant 0 : i32
    %c0_i32_1 = arith.constant 0 : i32
    return %c0_i32, %c0_i32_0 : i32, i32
  }
  func.func @transform_4(%arg0: i32) -> (i32, i32) {
    %c0_i32 = arith.constant 0 : i32
    %c0_i32_0 = arith.constant 0 : i32
    %c0_i32_1 = arith.constant 0 : i32
    return %c0_i32, %c0_i32_0 : i32, i32
  }
  func.func @transform_5(%arg0: i32) -> (i32, i32) {
    %c0_i32 = arith.constant 0 : i32
    %c0_i32_0 = arith.constant 0 : i32
    %c0_i32_1 = arith.constant 0 : i32
    return %c0_i32, %c0_i32_0 : i32, i32
  }
  func.func @transform_6(%arg0: i32) -> (i32, i32) {
    %c0_i32 = arith.constant 0 : i32
    %c0_i32_0 = arith.constant 0 : i32
    %c0_i32_1 = arith.constant 0 : i32
    return %c0_i32, %c0_i32_0 : i32, i32
  }
  func.func @transform_7(%arg0: i32) -> (i32, i32) {
    %c0_i32 = arith.constant 0 : i32
    %c0_i32_0 = arith.constant 0 : i32
    %c0_i32_1 = arith.constant 0 : i32
    return %c0_i32, %c0_i32_0 : i32, i32
  }
  func.func @transform_8(%arg0: i32) -> (i32, i32) {
    %c0_i32 = arith.constant 0 : i32
    %c0_i32_0 = arith.constant 0 : i32
    %c0_i32_1 = arith.constant 0 : i32
    return %c0_i32, %c0_i32_0 : i32, i32
  }
  func.func @transform_9(%arg0: i32) -> (i32, i32) {
    %c0_i32 = arith.constant 0 : i32
    %c0_i32_0 = arith.constant 0 : i32
    %c0_i32_1 = arith.constant 0 : i32
    return %c0_i32, %c0_i32_0 : i32, i32
  }
  func.func @transform_10(%arg0: i32) -> (i32, i32) {
    %c0_i32 = arith.constant 0 : i32
    %c0_i32_0 = arith.constant 0 : i32
    %c0_i32_1 = arith.constant 0 : i32
    return %c0_i32, %c0_i32_0 : i32, i32
  }
  func.func @transform_11(%arg0: i32) -> (i32, i32) {
    %c0_i32 = arith.constant 0 : i32
    %c0_i32_0 = arith.constant 0 : i32
    %c0_i32_1 = arith.constant 0 : i32
    return %c0_i32, %c0_i32_0 : i32, i32
  }
  func.func @transform_12(%arg0: i32) -> (i32, i32, i32) {
    %c0_i32 = arith.constant 0 : i32
    %c0_i32_0 = arith.constant 0 : i32
    %c0_i32_1 = arith.constant 0 : i32
    return %arg0, %c0_i32, %c0_i32_0 : i32, i32, i32
  }
}

</mosaic_0001>

<llo_original>
// kernel: decoder_forward.1
$region0: #{decoder_forward.1}
  #allocation0 [shape = 'u32[]', space=smem, size = 0x4, offset = 0x4, fixed_abs, tag = 'smem constant byte address 0x4 - core index']
  #allocation1 [shape = 'u32[144,128]{1,0:T(1,128)}', space=vmem, size = 0x12000, scoped, tag = 'internal scratch']
  %s0 = inlined_call_operand.vmem [shape: f32[2,8,64], index: 0, kind: input, shape index: {}]
  %s1 = inlined_call_operand.vmem [shape: f32[8,200], index: 1, kind: input, shape index: {}]
  %s2 = inlined_call_operand.vmem [shape: f32[8,1], index: 2, kind: input, shape index: {}]
  %s3 = inlined_call_operand.vmem [shape: f32[16,200], index: 3, kind: input, shape index: {}]
  %s4 = inlined_call_operand.vmem [shape: f32[16,1], index: 4, kind: input, shape index: {}]
  %s5 = inlined_call_operand.vmem [shape: f32[8,400], index: 5, kind: input, shape index: {}]
  %s6 = inlined_call_operand.vmem [shape: f32[8,1], index: 6, kind: input, shape index: {}]
  %s7 = inlined_call_operand.vmem [shape: f32[64,256], index: 7, kind: input, shape index: {}]
  %s8 = inlined_call_operand.hbm [shape: f32[256,1024], index: 8, kind: input, shape index: {}]
  %s9 = inlined_call_operand.vmem [shape: f32[5,64], index: 9, kind: input, shape index: {}]
  %s10 = inlined_call_operand.vmem [shape: f32[5,256], index: 10, kind: input, shape index: {}]
  %s11 = inlined_call_operand.vmem [shape: f32[5,1024], index: 11, kind: input, shape index: {}]
  %s12 = inlined_call_operand.vmem [shape: f32[2,1,1024], index: 12, kind: output, shape index: {}]
  %s13 = sld [smem:[#allocation0]]
  $region85: #{decoder_forward.1} parent=0
    _
  %s15 = ssub.s32 1, %s13
  %s16 = scalar_select 0, %s15, %s13
  $region1: #{decoder_forward.1} parent=0
    #allocation2 [shape = 'u8[1048576]{0}', space=vmem, size = 0x100000, scoped, tag = 'input window, operand 8, single buffered']
    #allocation3 [shape = 's32[2]{0}', space=sflag, size = 0x8, scoped, tag = 'scoped memory for decoder_forward.1']
    %17 = vsyncpa [#allocation3], 0
    loop: start=0, step=1, limit=4
    $region2: #{decoder_forward.1} parent=1 // loop_pre_header
      _
    $region3: #{decoder_forward.1} parent=1 // loop_header
      %s19 = sphi 0, %s23
      %p20 = scmp.ge.s32.totalorder %s19, 4
      %s29 = sphi 0, %s31
      %s32 = sphi 0, %s29
      %s33 = sphi 0, %s32
      %s49 = sphi 0, %s33
      %s53 = sphi 0, %s53
      %s55 = sphi 0, %s53
      %s56 = sphi 0, %s55
      %s70 = sphi 0, %s56
      %s74 = sphi 0, %s74
      %s76 = sphi 0, %s74
      %s77 = sphi 0, %s76
      %s91 = sphi 0, %s77
      %s95 = sphi 0, %s95
      %s97 = sphi 0, %s95
      %s98 = sphi 0, %s97
      %s112 = sphi 0, %s98
      %s116 = sphi 0, %s116
      %s118 = sphi 0, %s116
      %s119 = sphi 0, %s118
      %s133 = sphi 0, %s119
      %s137 = sphi 0, %s137
      %s139 = sphi 0, %s137
      %s140 = sphi 0, %s139
      %s154 = sphi 0, %s140
      %s158 = sphi 0, %s158
      %s160 = sphi 0, %s158
      %s161 = sphi 0, %s160
      %s175 = sphi 0, %s161
      %s179 = sphi 0, %s179
      %s181 = sphi 0, %s179
      %s182 = sphi 0, %s181
      %s196 = sphi 0, %s182
      %s200 = sphi 0, %s200
      %s202 = sphi 0, %s200
      %s203 = sphi 0, %s202
      %s217 = sphi 0, %s203
      %s221 = sphi 0, %s221
      %s223 = sphi 0, %s221
      %s224 = sphi 0, %s223
      %s238 = sphi 0, %s224
      %s242 = sphi 0, %s242
      %s244 = sphi 0, %s242
      %s245 = sphi 0, %s244
      %s259 = sphi 0, %s245
      %s263 = sphi 0, %s263
      %s265 = sphi 0, %s263
      %s266 = sphi 0, %s265
      %s280 = sphi 0, %s266
      %s286 = sphi 0, %s288
      %s289 = sphi 0, %s286
      %s290 = sphi 0, %s289
      %s306 = sphi 0, %s290
    $region4: #{decoder_forward.1} parent=1 // loop_header_branch
      %22 = sbr.rel (%p20) target = $region8
    $region5: #{decoder_forward.1} parent=1 // loop_body
      %s24 = ssub.s32 %s19, 1
      %s25 = ssub.s32 %s19, 2
      %s26 = sadd.s32 %s19, 1
      %s27 = ssub.s32 %s19, %s26
      %p28 = scmp.eq.s32.totalorder %s27, 0
      %s30 = sadd.s32 %s29, 1
      %s31 = scalar_select %p28, %s29, %s30
      %p34 = pneg %p28
      %p35 = scmp.eq.s32.totalorder %s19, 1
      %p36 = por %p34, %p35
      %p37 = scmp.ne.s32.totalorder %s29, %s32
      %p38 = scmp.eq.s32.totalorder %s19, 0
      %p39 = por %p37, %p38
      %p40 = scmp.ne.s32.totalorder %s29, %s32
      %p41 = scmp.eq.s32.totalorder %s24, 1
      %p42 = por %p40, %p41
      %p43 = scmp.ne.s32.totalorder %s32, %s33
      %p44 = scmp.eq.s32.totalorder %s24, 0
      %p45 = por %p43, %p44
      %p46 = scmp.ne.s32.totalorder %s32, %s33
      %p47 = scmp.eq.s32.totalorder %s25, 1
      %p48 = por %p46, %p47
      %p50 = scmp.ne.s32.totalorder %s33, %s49
      %p51 = scmp.eq.s32.totalorder %s25, 0
      %p52 = por %p50, %p51
      %s54 = sadd.s32 %s53, 1
      %p57 = scmp.eq.s32.totalorder %s19, 1
      %p58 = scmp.ne.s32.totalorder %s53, %s55
      %p59 = scmp.eq.s32.totalorder %s19, 0
      %p60 = por %p58, %p59
      %p61 = scmp.ne.s32.totalorder %s53, %s55
      %p62 = scmp.eq.s32.totalorder %s24, 1
      %p63 = por %p61, %p62
      %p64 = scmp.ne.s32.totalorder %s55, %s56
      %p65 = scmp.eq.s32.totalorder %s24, 0
      %p66 = por %p64, %p65
      %p67 = scmp.ne.s32.totalorder %s55, %s56
      %p68 = scmp.eq.s32.totalorder %s25, 1
      %p69 = por %p67, %p68
      %p71 = scmp.ne.s32.totalorder %s56, %s70
      %p72 = scmp.eq.s32.totalorder %s25, 0
      %p73 = por %p71, %p72
      %s75 = sadd.s32 %s74, 1
      %p78 = scmp.eq.s32.totalorder %s19, 1
      %p79 = scmp.ne.s32.totalorder %s74, %s76
      %p80 = scmp.eq.s32.totalorder %s19, 0
      %p81 = por %p79, %p80
      %p82 = scmp.ne.s32.totalorder %s74, %s76
      %p83 = scmp.eq.s32.totalorder %s24, 1
      %p84 = por %p82, %p83
      %p85 = scmp.ne.s32.totalorder %s76, %s77
      %p86 = scmp.eq.s32.totalorder %s24, 0
      %p87 = por %p85, %p86
      %p88 = scmp.ne.s32.totalorder %s76, %s77
      %p89 = scmp.eq.s32.totalorder %s25, 1
      %p90 = por %p88, %p89
      %p92 = scmp.ne.s32.totalorder %s77, %s91
      %p93 = scmp.eq.s32.totalorder %s25, 0
      %p94 = por %p92, %p93
      %s96 = sadd.s32 %s95, 1
      %p99 = scmp.eq.s32.totalorder %s19, 1
      %p100 = scmp.ne.s32.totalorder %s95, %s97
      %p101 = scmp.eq.s32.totalorder %s19, 0
      %p102 = por %p100, %p101
      %p103 = scmp.ne.s32.totalorder %s95, %s97
      %p104 = scmp.eq.s32.totalorder %s24, 1
      %p105 = por %p103, %p104
      %p106 = scmp.ne.s32.totalorder %s97, %s98
      %p107 = scmp.eq.s32.totalorder %s24, 0
      %p108 = por %p106, %p107
      %p109 = scmp.ne.s32.totalorder %s97, %s98
      %p110 = scmp.eq.s32.totalorder %s25, 1
      %p111 = por %p109, %p110
      %p113 = scmp.ne.s32.totalorder %s98, %s112
      %p114 = scmp.eq.s32.totalorder %s25, 0
      %p115 = por %p113, %p114
      %s117 = sadd.s32 %s116, 1
      %p120 = scmp.eq.s32.totalorder %s19, 1
      %p121 = scmp.ne.s32.totalorder %s116, %s118
      %p122 = scmp.eq.s32.totalorder %s19, 0
      %p123 = por %p121, %p122
      %p124 = scmp.ne.s32.totalorder %s116, %s118
      %p125 = scmp.eq.s32.totalorder %s24, 1
      %p126 = por %p124, %p125
      %p127 = scmp.ne.s32.totalorder %s118, %s119
      %p128 = scmp.eq.s32.totalorder %s24, 0
      %p129 = por %p127, %p128
      %p130 = scmp.ne.s32.totalorder %s118, %s119
      %p131 = scmp.eq.s32.totalorder %s25, 1
      %p132 = por %p130, %p131
      %p134 = scmp.ne.s32.totalorder %s119, %s133
      %p135 = scmp.eq.s32.totalorder %s25, 0
      %p136 = por %p134, %p135
      %s138 = sadd.s32 %s137, 1
      %p141 = scmp.eq.s32.totalorder %s19, 1
      %p142 = scmp.ne.s32.totalorder %s137, %s139
      %p143 = scmp.eq.s32.totalorder %s19, 0
      %p144 = por %p142, %p143
      %p145 = scmp.ne.s32.totalorder %s137, %s139
      %p146 = scmp.eq.s32.totalorder %s24, 1
      %p147 = por %p145, %p146
      %p148 = scmp.ne.s32.totalorder %s139, %s140
      %p149 = scmp.eq.s32.totalorder %s24, 0
      %p150 = por %p148, %p149
      %p151 = scmp.ne.s32.totalorder %s139, %s140
      %p152 = scmp.eq.s32.totalorder %s25, 1
      %p153 = por %p151, %p152
      %p155 = scmp.ne.s32.totalorder %s140, %s154
      %p156 = scmp.eq.s32.totalorder %s25, 0
      %p157 = por %p155, %p156
      %s159 = sadd.s32 %s158, 1
      %p162 = scmp.eq.s32.totalorder %s19, 1
      %p163 = scmp.ne.s32.totalorder %s158, %s160
      %p164 = scmp.eq.s32.totalorder %s19, 0
      %p165 = por %p163, %p164
      %p166 = scmp.ne.s32.totalorder %s158, %s160
      %p167 = scmp.eq.s32.totalorder %s24, 1
      %p168 = por %p166, %p167
      %p169 = scmp.ne.s32.totalorder %s160, %s161
      %p170 = scmp.eq.s32.totalorder %s24, 0
      %p171 = por %p169, %p170
      %p172 = scmp.ne.s32.totalorder %s160, %s161
      %p173 = scmp.eq.s32.totalorder %s25, 1
      %p174 = por %p172, %p173
      %p176 = scmp.ne.s32.totalorder %s161, %s175
      %p177 = scmp.eq.s32.totalorder %s25, 0
      %p178 = por %p176, %p177
      %s180 = sadd.s32 %s179, 1
      %p183 = scmp.eq.s32.totalorder %s19, 1
      %p184 = scmp.ne.s32.totalorder %s179, %s181
      %p185 = scmp.eq.s32.totalorder %s19, 0
      %p186 = por %p184, %p185
      %p187 = scmp.ne.s32.totalorder %s179, %s181
      %p188 = scmp.eq.s32.totalorder %s24, 1
      %p189 = por %p187, %p188
      %p190 = scmp.ne.s32.totalorder %s181, %s182
      %p191 = scmp.eq.s32.totalorder %s24, 0
      %p192 = por %p190, %p191
      %p193 = scmp.ne.s32.totalorder %s181, %s182
      %p194 = scmp.eq.s32.totalorder %s25, 1
      %p195 = por %p193, %p194
      %p197 = scmp.ne.s32.totalorder %s182, %s196
      %p198 = scmp.eq.s32.totalorder %s25, 0
      %p199 = por %p197, %p198
      %s201 = sadd.s32 %s200, 1
      %p204 = scmp.eq.s32.totalorder %s19, 1
      %p205 = scmp.ne.s32.totalorder %s200, %s202
      %p206 = scmp.eq.s32.totalorder %s19, 0
      %p207 = por %p205, %p206
      %p208 = scmp.ne.s32.totalorder %s200, %s202
      %p209 = scmp.eq.s32.totalorder %s24, 1
      %p210 = por %p208, %p209
      %p211 = scmp.ne.s32.totalorder %s202, %s203
      %p212 = scmp.eq.s32.totalorder %s24, 0
      %p213 = por %p211, %p212
      %p214 = scmp.ne.s32.totalorder %s202, %s203
      %p215 = scmp.eq.s32.totalorder %s25, 1
      %p216 = por %p214, %p215
      %p218 = scmp.ne.s32.totalorder %s203, %s217
      %p219 = scmp.eq.s32.totalorder %s25, 0
      %p220 = por %p218, %p219
      %s222 = sadd.s32 %s221, 1
      %p225 = scmp.eq.s32.totalorder %s19, 1
      %p226 = scmp.ne.s32.totalorder %s221, %s223
      %p227 = scmp.eq.s32.totalorder %s19, 0
      %p228 = por %p226, %p227
      %p229 = scmp.ne.s32.totalorder %s221, %s223
      %p230 = scmp.eq.s32.totalorder %s24, 1
      %p231 = por %p229, %p230
      %p232 = scmp.ne.s32.totalorder %s223, %s224
      %p233 = scmp.eq.s32.totalorder %s24, 0
      %p234 = por %p232, %p233
      %p235 = scmp.ne.s32.totalorder %s223, %s224
      %p236 = scmp.eq.s32.totalorder %s25, 1
      %p237 = por %p235, %p236
      %p239 = scmp.ne.s32.totalorder %s224, %s238
      %p240 = scmp.eq.s32.totalorder %s25, 0
      %p241 = por %p239, %p240
      %s243 = sadd.s32 %s242, 1
      %p246 = scmp.eq.s32.totalorder %s19, 1
      %p247 = scmp.ne.s32.totalorder %s242, %s244
      %p248 = scmp.eq.s32.totalorder %s19, 0
      %p249 = por %p247, %p248
      %p250 = scmp.ne.s32.totalorder %s242, %s244
      %p251 = scmp.eq.s32.totalorder %s24, 1
      %p252 = por %p250, %p251
      %p253 = scmp.ne.s32.totalorder %s244, %s245
      %p254 = scmp.eq.s32.totalorder %s24, 0
      %p255 = por %p253, %p254
      %p256 = scmp.ne.s32.totalorder %s244, %s245
      %p257 = scmp.eq.s32.totalorder %s25, 1
      %p258 = por %p256, %p257
      %p260 = scmp.ne.s32.totalorder %s245, %s259
      %p261 = scmp.eq.s32.totalorder %s25, 0
      %p262 = por %p260, %p261
      %s264 = sadd.s32 %s263, 1
      %p267 = scmp.eq.s32.totalorder %s19, 1
      %p268 = scmp.ne.s32.totalorder %s263, %s265
      %p269 = scmp.eq.s32.totalorder %s19, 0
      %p270 = por %p268, %p269
      %p271 = scmp.ne.s32.totalorder %s263, %s265
      %p272 = scmp.eq.s32.totalorder %s24, 1
      %p273 = por %p271, %p272
      %p274 = scmp.ne.s32.totalorder %s265, %s266
      %p275 = scmp.eq.s32.totalorder %s24, 0
      %p276 = por %p274, %p275
      %p277 = scmp.ne.s32.totalorder %s265, %s266
      %p278 = scmp.eq.s32.totalorder %s25, 1
      %p279 = por %p277, %p278
      %p281 = scmp.ne.s32.totalorder %s266, %s280
      %p282 = scmp.eq.s32.totalorder %s25, 0
      %p283 = por %p281, %p282
      %s284 = ssub.s32 %s19, %s26
      %p285 = scmp.eq.s32.totalorder %s284, 0
      %s287 = sadd.s32 %s286, 1
      %s288 = scalar_select %p285, %s286, %s287
      %p291 = pneg %p285
      %p292 = scmp.eq.s32.totalorder %s19, 1
      %p293 = por %p291, %p292
      %p294 = scmp.ne.s32.totalorder %s286, %s289
      %p295 = scmp.eq.s32.totalorder %s19, 0
      %p296 = por %p294, %p295
      %p297 = scmp.ne.s32.totalorder %s286, %s289
      %p298 = scmp.eq.s32.totalorder %s24, 1
      %p299 = por %p297, %p298
      %p300 = scmp.ne.s32.totalorder %s289, %s290
      %p301 = scmp.eq.s32.totalorder %s24, 0
      %p302 = por %p300, %p301
      %p303 = scmp.ne.s32.totalorder %s289, %s290
      %p304 = scmp.eq.s32.totalorder %s25, 1
      %p305 = por %p303, %p304
      %p307 = scmp.ne.s32.totalorder %s290, %s306
      %p308 = scmp.eq.s32.totalorder %s25, 0
      %p309 = por %p307, %p308
      %p310 = scmp.le.s32.totalorder 1, %s19
      %p311 = scmp.lt.s32.totalorder %s19, 3
      %p312 = pnand %p310, %p311
      %p313 = pneg %p312
      // Predicated region
      $region9: #{decoder_forward.1} parent=5 // pred_check
        _
      $region10: #{decoder_forward.1} parent=5 // pred_check_branch
        %315 = sbr.rel (%p312) target = $region12
      $region11: #{decoder_forward.1} parent=5 // pred_region
        %s316 = ssub.s32 %s19, 1
        // Predicated region
        $region13: #{decoder_forward.1} parent=11 // pred_check
          %p317 = pneg %p66
        $region14: #{decoder_forward.1} parent=11 // pred_check_branch
          %319 = sbr.rel (%p317) target = $region16
        $region15: #{decoder_forward.1} parent=11 // pred_region
          _
        $region16: #{decoder_forward.1} parent=11 // pred_fallthru
          _
        // Predicated region
        $region17: #{decoder_forward.1} parent=11 // pred_check
          %p320 = pneg %p87
        $region18: #{decoder_forward.1} parent=11 // pred_check_branch
          %322 = sbr.rel (%p320) target = $region20
        $region19: #{decoder_forward.1} parent=11 // pred_region
          _
        $region20: #{decoder_forward.1} parent=11 // pred_fallthru
          _
        // Predicated region
        $region21: #{decoder_forward.1} parent=11 // pred_check
          %p323 = pneg %p108
        $region22: #{decoder_forward.1} parent=11 // pred_check_branch
          %325 = sbr.rel (%p323) target = $region24
        $region23: #{decoder_forward.1} parent=11 // pred_region
          _
        $region24: #{decoder_forward.1} parent=11 // pred_fallthru
          _
        // Predicated region
        $region25: #{decoder_forward.1} parent=11 // pred_check
          %p326 = pneg %p129
        $region26: #{decoder_forward.1} parent=11 // pred_check_branch
          %328 = sbr.rel (%p326) target = $region28
        $region27: #{decoder_forward.1} parent=11 // pred_region
          _
        $region28: #{decoder_forward.1} parent=11 // pred_fallthru
          _
        // Predicated region
        $region29: #{decoder_forward.1} parent=11 // pred_check
          %p329 = pneg %p150
        $region30: #{decoder_forward.1} parent=11 // pred_check_branch
          %331 = sbr.rel (%p329) target = $region32
        $region31: #{decoder_forward.1} parent=11 // pred_region
          _
        $region32: #{decoder_forward.1} parent=11 // pred_fallthru
          _
        // Predicated region
        $region33: #{decoder_forward.1} parent=11 // pred_check
          %p332 = pneg %p171
        $region34: #{decoder_forward.1} parent=11 // pred_check_branch
          %334 = sbr.rel (%p332) target = $region36
        $region35: #{decoder_forward.1} parent=11 // pred_region
          _
        $region36: #{decoder_forward.1} parent=11 // pred_fallthru
          _
        // Predicated region
        $region37: #{decoder_forward.1} parent=11 // pred_check
          %p335 = pneg %p192
        $region38: #{decoder_forward.1} parent=11 // pred_check_branch
          %337 = sbr.rel (%p335) target = $region40
        $region39: #{decoder_forward.1} parent=11 // pred_region
          _
        $region40: #{decoder_forward.1} parent=11 // pred_fallthru
          _
        // Predicated region
        $region41: #{decoder_forward.1} parent=11 // pred_check
          %p338 = pneg %p213
        $region42: #{decoder_forward.1} parent=11 // pred_check_branch
          %340 = sbr.rel (%p338) target = $region44
        $region43: #{decoder_forward.1} parent=11 // pred_region
          %s342 = ssub.s32 32768, 32768
          %343 = vsyncadd [#allocation3], %s342
          %s344 = sshll.u32 [#allocation2], 4
          %s345 = int_to_ptr.vmem [resolvable:$true] %s344
          %350 = dma.hbm_to_vmem [thread:$0]  %s8, 32768, %s345, [#allocation3], 1024, 1024, 64
        $region44: #{decoder_forward.1} parent=11 // pred_fallthru
          _
        // Predicated region
        $region45: #{decoder_forward.1} parent=11 // pred_check
          %p351 = pneg %p234
        $region46: #{decoder_forward.1} parent=11 // pred_check_branch
          %353 = sbr.rel (%p351) target = $region48
        $region47: #{decoder_forward.1} parent=11 // pred_region
          _
        $region48: #{decoder_forward.1} parent=11 // pred_fallthru
          _
        // Predicated region
        $region49: #{decoder_forward.1} parent=11 // pred_check
          %p354 = pneg %p255
        $region50: #{decoder_forward.1} parent=11 // pred_check_branch
          %356 = sbr.rel (%p354) target = $region52
        $region51: #{decoder_forward.1} parent=11 // pred_region
          _
        $region52: #{decoder_forward.1} parent=11 // pred_fallthru
          _
        // Predicated region
        $region53: #{decoder_forward.1} parent=11 // pred_check
          %p357 = pneg %p276
        $region54: #{decoder_forward.1} parent=11 // pred_check_branch
          %359 = sbr.rel (%p357) target = $region56
        $region55: #{decoder_forward.1} parent=11 // pred_region
          _
        $region56: #{decoder_forward.1} parent=11 // pred_fallthru
          _
      $region12: #{decoder_forward.1} parent=5 // pred_fallthru
        _
      %p360 = scmp.lt.s32.totalorder %s19, 2
      // Predicated region
      $region57: #{decoder_forward.1} parent=5 // pred_check
        %p361 = pneg %p360
      $region58: #{decoder_forward.1} parent=5 // pred_check_branch
        %363 = sbr.rel (%p361) target = $region60
      $region59: #{decoder_forward.1} parent=5 // pred_region
        // Predicated region
        $region61: #{decoder_forward.1} parent=59 // pred_check
          %p364 = pneg %p39
        $region62: #{decoder_forward.1} parent=59 // pred_check_branch
          %366 = sbr.rel (%p364) target = $region64
        $region63: #{decoder_forward.1} parent=59 // pred_region
          %p367 = scmp.lt.s32.totalorder %s19, 1
          %s368 = scalar_select %p367, %s19, 1
          %s369 = smul.addr %s368, 8
          %s370 = scalar_lea.vmem %s0, %s369
        $region64: #{decoder_forward.1} parent=59 // pred_fallthru
          _
      $region60: #{decoder_forward.1} parent=5 // pred_fallthru
        _
      %p371 = scmp.le.s32.totalorder 1, %s19
      %p372 = scmp.lt.s32.totalorder %s19, 3
      %p373 = pnand %p371, %p372
      %p374 = pneg %p373
      // Predicated region
      $region65: #{decoder_forward.1} parent=5 // pred_check
        _
      $region66: #{decoder_forward.1} parent=5 // pred_check_branch
        %376 = sbr.rel (%p373) target = $region68
      $region67: #{decoder_forward.1} parent=5 // pred_region
        %s377 = ssub.s32 %s19, 1
        // Predicated region
        $region69: #{decoder_forward.1} parent=67 // pred_check
          %p378 = pneg %p213
        $region70: #{decoder_forward.1} parent=67 // pred_check_branch
          %380 = sbr.rel (%p378) target = $region72
        $region71: #{decoder_forward.1} parent=67 // pred_region
          %381 = dma.done [#allocation3], 32768
        $region72: #{decoder_forward.1} parent=67 // pred_fallthru
          _
        %p382 = scmp.lt.s32.totalorder %s24, 1
        %s383 = scalar_select %p382, %s24, 1
        %s384 = smul.addr %s383, 8
        %s385 = scalar_lea.vmem %s0, %s384
        %p386 = pneg %p45
        %p387 = pneg %p42
        %p388 = pneg %p66
        %p389 = pneg %p63
        %p390 = pneg %p87
        %p391 = pneg %p84
        %p392 = pneg %p108
        %p393 = pneg %p105
        %p394 = pneg %p129
        %p395 = pneg %p126
        %p396 = pneg %p150
        %p397 = pneg %p147
        %p398 = pneg %p171
        %p399 = pneg %p168
        %p400 = pneg %p192
        %p401 = pneg %p189
        %p402 = pneg %p213
        %p403 = pneg %p210
        %p404 = pneg %p234
        %p405 = pneg %p231
        %p406 = pneg %p255
        %p407 = pneg %p252
        %p408 = pneg %p276
        %p409 = pneg %p273
        %p410 = pneg %p302
        %p411 = pneg %p299
        %p412 = scmp.lt.s32.totalorder %s24, 1
        %s413 = scalar_select %p412, %s24, 1
        %s414 = smul.addr %s413, 8
        %s415 = scalar_lea.vmem %s12, %s414
        %p416 = scmp.lt.s32.totalorder %s24, 1
        %s417 = scalar_select %p416, %s24, 1
        %s418 = smul.addr %s417, 8
        %s419 = scalar_lea.vmem %s0, %s418
        %p420 = scmp.lt.s32.totalorder %s24, 1
        %s421 = scalar_select %p420, %s24, 1
        %s422 = smul.addr %s421, 8
        %s423 = scalar_lea.vmem %s12, %s422
        %v424 = vld [vmem:[%s419] sm:$0xff]
        %v425 = vld [vmem:[%s1] sm:$0xff]
        %v426 = vld [vmem:[%s1 + $0x8] sm:$0xff]
        %v427 = vld [vmem:[%s2] sm:$0xff]
        %v428 = vld [vmem:[%s9] sm:$0x1f]
        %430 = vrot.lane.b32.xlu0 %v424, 18
        %v431 = vpop.permute.xlu0 %430
        %vm433 = vcmask 146432
        %v434 = vsel %vm433, 0.0, %v431
        %vm435 = vcmask 670720
        %v436 = vsel %vm435, %v434, 0.0
        %v437 = vlaneseq
        %v438 = vshrl.u32 %v437, 7
        %v439 = vsub.s32 0, %v438
        %v440 = vrot.slane %v428, %v439
        %v441 = vmul.f32 %v436, %v440
        %v442 = vlaneseq
        %v443 = vshrl.u32 %v442, 7
        %v444 = vsub.s32 1, %v443
        %v445 = vrot.slane %v428, %v444
        %447 = vrot.lane.b32.xlu0 %v445, 1
        %v448 = vpop.permute.xlu0 %447
        %v450 = vmul.f32 %v436, %v448
        %v451 = vlaneseq
        %v452 = vshrl.u32 %v451, 7
        %v453 = vsub.s32 3, %v452
        %v454 = vrot.slane %v428, %v453
        %456 = vrot.lane.b32.xlu0 %v454, 3
        %v457 = vpop.permute.xlu0 %456
        %v459 = vmul.f32 %v436, %v457
        %v460 = vlaneseq
        %v461 = vshrl.u32 %v460, 7
        %v462 = vsub.s32 4, %v461
        %v463 = vrot.slane %v428, %v462
        %465 = vrot.lane.b32.xlu0 %v463, 4
        %v466 = vpop.permute.xlu0 %465
        %v468 = vmul.f32 %v436, %v466
        %470 = vrot.lane.b32.xlu0 %v440, 8
        %v471 = vpop.permute.xlu0 %470
        %v473 = vmul.f32 %v436, %v471
        %474 = vrot.lane.b32.xlu0 %v445, 9
        %v475 = vpop.permute.xlu0 %474
        %v477 = vmul.f32 %v436, %v475
        %478 = vrot.lane.b32.xlu0 %v454, 11
        %v479 = vpop.permute.xlu0 %478
        %v481 = vmul.f32 %v436, %v479
        %482 = vrot.lane.b32.xlu0 %v463, 12
        %v483 = vpop.permute.xlu0 %482
        %v485 = vmul.f32 %v436, %v483
        %486 = vrot.lane.b32.xlu0 %v440, 16
        %v487 = vpop.permute.xlu0 %486
        %v489 = vmul.f32 %v436, %v487
        %490 = vrot.lane.b32.xlu0 %v445, 17
        %v491 = vpop.permute.xlu0 %490
        %v493 = vmul.f32 %v436, %v491
        %494 = vrot.lane.b32.xlu0 %v454, 19
        %v495 = vpop.permute.xlu0 %494
        %v497 = vmul.f32 %v436, %v495
        %498 = vrot.lane.b32.xlu0 %v463, 20
        %v499 = vpop.permute.xlu0 %498
        %v501 = vmul.f32 %v436, %v499
        %502 = vrot.lane.b32.xlu0 %v440, 24
        %v503 = vpop.permute.xlu0 %502
        %v505 = vmul.f32 %v436, %v503
        %506 = vrot.lane.b32.xlu0 %v445, 25
        %v507 = vpop.permute.xlu0 %506
        %v509 = vmul.f32 %v436, %v507
        %510 = vrot.lane.b32.xlu0 %v454, 27
        %v511 = vpop.permute.xlu0 %510
        %v513 = vmul.f32 %v436, %v511
        %514 = vrot.lane.b32.xlu0 %v463, 28
        %v515 = vpop.permute.xlu0 %514
        %v517 = vmul.f32 %v436, %v515
        %518 = vrot.lane.b32.xlu0 %v440, 32
        %v519 = vpop.permute.xlu0 %518
        %v521 = vmul.f32 %v436, %v519
        %522 = vrot.lane.b32.xlu0 %v445, 33
        %v523 = vpop.permute.xlu0 %522
        %v525 = vmul.f32 %v436, %v523
        %526 = vrot.lane.b32.xlu0 %v454, 35
        %v527 = vpop.permute.xlu0 %526
        %v529 = vmul.f32 %v436, %v527
        %530 = vrot.lane.b32.xlu0 %v463, 36
        %v531 = vpop.permute.xlu0 %530
        %v533 = vmul.f32 %v436, %v531
        %535 = vrot.lane.b32.xlu0 %v450, 127
        %v536 = vpop.permute.xlu0 %535
        %539 = vrot.lane.b32.xlu0 %v436, 126
        %v540 = vpop.permute.xlu0 %539
        %543 = vrot.lane.b32.xlu0 %v459, 125
        %v544 = vpop.permute.xlu0 %543
        %547 = vrot.lane.b32.xlu0 %v468, 124
        %v548 = vpop.permute.xlu0 %547
        %551 = vrot.lane.b32.xlu0 %v473, 120
        %v552 = vpop.permute.xlu0 %551
        %555 = vrot.lane.b32.xlu0 %v477, 119
        %v556 = vpop.permute.xlu0 %555
        %558 = vrot.lane.b32.xlu0 %v436, 118
        %v559 = vpop.permute.xlu0 %558
        %562 = vrot.lane.b32.xlu0 %v481, 117
        %v563 = vpop.permute.xlu0 %562
        %566 = vrot.lane.b32.xlu0 %v485, 116
        %v567 = vpop.permute.xlu0 %566
        %570 = vrot.lane.b32.xlu0 %v489, 112
        %v571 = vpop.permute.xlu0 %570
        %574 = vrot.lane.b32.xlu0 %v493, 111
        %v575 = vpop.permute.xlu0 %574
        %577 = vrot.lane.b32.xlu0 %v436, 110
        %v578 = vpop.permute.xlu0 %577
        %581 = vrot.lane.b32.xlu0 %v497, 109
        %v582 = vpop.permute.xlu0 %581
        %585 = vrot.lane.b32.xlu0 %v501, 108
        %v586 = vpop.permute.xlu0 %585
        %589 = vrot.lane.b32.xlu0 %v505, 104
        %v590 = vpop.permute.xlu0 %589
        %592 = vrot.lane.b32.xlu0 %v436, 127
        %v593 = vpop.permute.xlu0 %592
        %595 = vrot.lane.b32.xlu0 %v513, 126
        %v596 = vpop.permute.xlu0 %595
        %598 = vrot.lane.b32.xlu0 %v517, 125
        %v599 = vpop.permute.xlu0 %598
        %601 = vrot.lane.b32.xlu0 %v521, 121
        %v602 = vpop.permute.xlu0 %601
        %604 = vrot.lane.b32.xlu0 %v525, 120
        %v605 = vpop.permute.xlu0 %604
        %606 = vrot.lane.b32.xlu0 %v436, 119
        %v607 = vpop.permute.xlu0 %606
        %609 = vrot.lane.b32.xlu0 %v529, 118
        %v610 = vpop.permute.xlu0 %609
        %612 = vrot.lane.b32.xlu0 %v533, 117
        %v613 = vpop.permute.xlu0 %612
        %615 = vrot.lane.b32.xlu0 %v509, 103
        %v616 = vpop.permute.xlu0 %615
        %617 = vrot.lane.b32.xlu0 %v593, 103
        %v618 = vpop.permute.xlu0 %617
        %619 = vrot.lane.b32.xlu0 %v596, 103
        %v620 = vpop.permute.xlu0 %619
        %621 = vrot.lane.b32.xlu0 %v599, 103
        %v622 = vpop.permute.xlu0 %621
        %623 = vrot.lane.b32.xlu0 %v602, 103
        %v624 = vpop.permute.xlu0 %623
        %625 = vrot.lane.b32.xlu0 %v605, 103
        %v626 = vpop.permute.xlu0 %625
        %627 = vrot.lane.b32.xlu0 %v607, 103
        %v628 = vpop.permute.xlu0 %627
        %629 = vrot.lane.b32.xlu0 %v610, 103
        %v630 = vpop.permute.xlu0 %629
        %631 = vrot.lane.b32.xlu0 %v613, 103
        %v632 = vpop.permute.xlu0 %631
        %643 = vset.pattern.permute.xlu0 0
        %644 = vperm.xlu0 %643, %v427
        %v645 = vpop.permute.xlu0 %644
        %vm647 = vcmask 588800
        %v649 = vsel %vm647, %v426, 0
        %651 = vmatprep.subr.mxu0 0.0
        %652 = vmatpush1.msra.mxu0 %v441
        %653 = vmatprep.subr.mxu0 0.0
        %654 = vmatpush1.msra.mxu0 %v536
        %655 = vmatprep.subr.mxu0 0.0
        %656 = vmatpush1.msra.mxu0 %v540
        %657 = vmatprep.subr.mxu0 0.0
        %658 = vmatpush1.msra.mxu0 %v544
        %659 = vmatprep.subr.mxu0 0.0
        %660 = vmatpush1.msra.mxu0 %v548
        %661 = vmatprep.subr.mxu0 0.0
        %662 = vmatpush1.msra.mxu0 %v552
        %663 = vmatprep.subr.mxu0 0.0
        %664 = vmatpush1.msra.mxu0 %v556
        %665 = vmatprep.subr.mxu0 0.0
        %666 = vmatpush1.msra.mxu0 %v559
        %667 = vmatprep.subr.mxu0 0.0
        %668 = vmatpush1.msra.mxu0 %v563
        %669 = vmatprep.subr.mxu0 0.0
        %670 = vmatpush1.msra.mxu0 %v567
        %671 = vmatprep.subr.mxu0 0.0
        %672 = vmatpush1.msra.mxu0 %v571
        %673 = vmatprep.subr.mxu0 0.0
        %674 = vmatpush1.msra.mxu0 %v575
        %675 = vmatprep.subr.mxu0 0.0
        %676 = vmatpush1.msra.mxu0 %v578
        %677 = vmatprep.subr.mxu0 0.0
        %678 = vmatpush1.msra.mxu0 %v582
        %679 = vmatprep.subr.mxu0 0.0
        %680 = vmatpush1.msra.mxu0 %v586
        %681 = vmatprep.subr.mxu0 0.0
        %682 = vmatpush1.msra.mxu0 %v590
        %683 = vmatprep.subr.mxu0 0.0
        %684 = vmatpush1.msra.mxu0 %v616
        %685 = vmatprep.subr.mxu0 0.0
        %686 = vmatpush1.msra.mxu0 %v618
        %687 = vmatprep.subr.mxu0 0.0
        %688 = vmatpush1.msra.mxu0 %v620
        %689 = vmatprep.subr.mxu0 0.0
        %690 = vmatpush1.msra.mxu0 %v622
        %691 = vmatprep.subr.mxu0 0.0
        %692 = vmatpush1.msra.mxu0 %v624
        %693 = vmatprep.subr.mxu0 0.0
        %694 = vmatpush1.msra.mxu0 %v626
        %695 = vmatprep.subr.mxu0 0.0
        %696 = vmatpush1.msra.mxu0 %v628
        %697 = vmatprep.subr.mxu0 0.0
        %698 = vmatpush1.msra.mxu0 %v630
        %699 = vmatprep.subr.mxu0 0.0
        %700 = vmatpush1.msra.mxu0 %v632
        %701 = vmatprep.subr.mxu0 0.0
        %702 = vmatpush1.msra.mxu0 0.0
        %703 = vmatprep.subr.mxu0 0.0
        %704 = vmatpush1.msra.mxu0 0.0
        %705 = vmatprep.subr.mxu0 0.0
        %706 = vmatpush1.msra.mxu0 0.0
        %707 = vmatprep.subr.mxu0 0.0
        %708 = vmatpush1.msra.mxu0 0.0
        %709 = vmatprep.subr.mxu0 0.0
        %710 = vmatpush1.msra.mxu0 0.0
        %711 = vmatprep.subr.mxu0 0.0
        %712 = vmatpush1.msra.mxu0 0.0
        %713 = vmatprep.subr.mxu0 0.0
        %714 = vmatpush1.msra.mxu0 0.0
        %715 = vmatprep.mubr.f32.mxu0 %v649
        %716 = vmatmul.mubr.f32.gmra.mrb[0].mxu0 %v425
        %v717 = vpop.f32.mrb[0].mxu0
        %v718 = vadd.f32 %v645, %v717
        %v719 = vpop.f32.mrb[0].mxu0
        %720 = vdwg.mxu0
        %v721 = vmax.f32 %v718, 0.0
        %v722 = vld [vmem:[%s7] sm:$0xff]
        %v723 = vld [vmem:[%s7 + $0x8] sm:$0xff]
        %v724 = vld [vmem:[%s7 + $0x10] sm:$0xff]
        %v725 = vld [vmem:[%s7 + $0x18] sm:$0xff]
        %v726 = vld [vmem:[%s7 + $0x20] sm:$0xff]
        %v727 = vld [vmem:[%s7 + $0x28] sm:$0xff]
        %v728 = vld [vmem:[%s7 + $0x30] sm:$0xff]
        %v729 = vld [vmem:[%s7 + $0x38] sm:$0xff]
        %v730 = vld [vmem:[%s7 + $0x40] sm:$0xff]
        %v731 = vld [vmem:[%s7 + $0x48] sm:$0xff]
        %v732 = vld [vmem:[%s7 + $0x50] sm:$0xff]
        %v733 = vld [vmem:[%s7 + $0x58] sm:$0xff]
        %v734 = vld [vmem:[%s7 + $0x60] sm:$0xff]
        %v735 = vld [vmem:[%s7 + $0x68] sm:$0xff]
        %v736 = vld [vmem:[%s7 + $0x70] sm:$0xff]
        %v737 = vld [vmem:[%s7 + $0x78] sm:$0xff]
        %vm738 = vcmask 523264
        %v740 = vsel %vm738, %v721, 0
        %742 = vmatprep.subr.mxu0 %v723
        %743 = vmatpush1.msra.mxu0 %v722
        %744 = vmatprep.subr.mxu0 %v725
        %745 = vmatpush1.msra.mxu0 %v724
        %746 = vmatprep.subr.mxu0 %v727
        %747 = vmatpush1.msra.mxu0 %v726
        %748 = vmatprep.subr.mxu0 %v729
        %749 = vmatpush1.msra.mxu0 %v728
        %750 = vmatprep.subr.mxu0 %v731
        %751 = vmatpush1.msra.mxu0 %v730
        %752 = vmatprep.subr.mxu0 %v733
        %753 = vmatpush1.msra.mxu0 %v732
        %754 = vmatprep.subr.mxu0 %v735
        %755 = vmatpush1.msra.mxu0 %v734
        %756 = vmatprep.subr.mxu0 %v737
        %757 = vmatpush1.msra.mxu0 %v736
        %758 = vmatprep.subr.mxu0 0.0
        %759 = vmatpush1.msra.mxu0 0.0
        %760 = vmatprep.subr.mxu0 0.0
        %761 = vmatpush1.msra.mxu0 0.0
        %762 = vmatprep.subr.mxu0 0.0
        %763 = vmatpush1.msra.mxu0 0.0
        %764 = vmatprep.subr.mxu0 0.0
        %765 = vmatpush1.msra.mxu0 0.0
        %766 = vmatprep.subr.mxu0 0.0
        %767 = vmatpush1.msra.mxu0 0.0
        %768 = vmatprep.subr.mxu0 0.0
        %769 = vmatpush1.msra.mxu0 0.0
        %770 = vmatprep.subr.mxu0 0.0
        %771 = vmatpush1.msra.mxu0 0.0
        %772 = vmatprep.subr.mxu0 0.0
        %773 = vmatpush1.msra.mxu0 0.0
        %774 = vmatprep.subr.mxu0 0.0
        %775 = vmatpush1.msra.mxu0 0.0
        %776 = vmatprep.subr.mxu0 0.0
        %777 = vmatpush1.msra.mxu0 0.0
        %778 = vmatprep.subr.mxu0 0.0
        %779 = vmatpush1.msra.mxu0 0.0
        %780 = vmatprep.subr.mxu0 0.0
        %781 = vmatpush1.msra.mxu0 0.0
        %782 = vmatprep.subr.mxu0 0.0
        %783 = vmatpush1.msra.mxu0 0.0
        %784 = vmatprep.subr.mxu0 0.0
        %785 = vmatpush1.msra.mxu0 0.0
        %786 = vmatprep.subr.mxu0 0.0
        %787 = vmatpush1.msra.mxu0 0.0
        %788 = vmatprep.subr.mxu0 0.0
        %789 = vmatpush1.msra.mxu0 0.0
        %790 = vmatprep.subr.mxu0 0.0
        %791 = vmatpush1.msra.mxu0 0.0
        %792 = vmatprep.subr.mxu0 0.0
        %793 = vmatpush1.msra.mxu0 0.0
        %794 = vmatprep.subr.mxu0 0.0
        %795 = vmatpush1.msra.mxu0 0.0
        %796 = vmatprep.subr.mxu0 0.0
        %797 = vmatpush1.msra.mxu0 0.0
        %798 = vmatprep.subr.mxu0 0.0
        %799 = vmatpush1.msra.mxu0 0.0
        %800 = vmatprep.subr.mxu0 0.0
        %801 = vmatpush1.msra.mxu0 0.0
        %802 = vmatprep.subr.mxu0 0.0
        %803 = vmatpush1.msra.mxu0 0.0
        %804 = vmatprep.subr.mxu0 0.0
        %805 = vmatpush1.msra.mxu0 0.0
        %806 = vmatprep.mubr.f32.mxu0 0.0
        %807 = vmatmul.mubr.f32.gmra.mrb[0].mxu0 %v740
        %v808 = vpop.f32.mrb[0].mxu0
        %v809 = vadd.f32 0.0, %v808
        %v810 = vpop.f32.mrb[0].mxu0
        %v811 = vadd.f32 0.0, %v810
        %812 = vdwg.mxu0
        %v813 = vld [vmem:[%s3] sm:$0xff]
        %v814 = vld [vmem:[%s3 + $0x8] sm:$0xff]
        %v815 = vld [vmem:[%s3 + $0x10] sm:$0xff]
        %v816 = vld [vmem:[%s3 + $0x18] sm:$0xff]
        %v817 = vld [vmem:[%s4] sm:$0xff]
        %v818 = vld [vmem:[%s4 + $0x8] sm:$0xff]
        %v819 = vld [vmem:[%s10] sm:$0x1f]
        %v820 = vld [vmem:[%s10 + $0x8] sm:$0x1f]
        %823 = vrot.lane.b32.xlu0 %v809, 34
        %v824 = vpop.permute.xlu0 %823
        %825 = vrot.lane.b32.xlu0 %v811, 34
        %v826 = vpop.permute.xlu0 %825
        %vm827 = vcmask 277504
        %v828 = vsel %vm827, %v824, %v826
        %v832 = vsel %vm827, 0.0, %v824
        %v833 = vsel %vm827, %v826, 0.0
        %v834 = vlaneseq
        %v835 = vshrl.u32 %v834, 7
        %v836 = vsub.s32 0, %v835
        %v837 = vrot.slane %v819, %v836
        %v838 = vlaneseq
        %v839 = vshrl.u32 %v838, 7
        %v840 = vsub.s32 0, %v839
        %v841 = vrot.slane %v820, %v840
        %v842 = vmul.f32 %v832, %v837
        %v843 = vmul.f32 %v828, %v841
        %v844 = vlaneseq
        %v845 = vshrl.u32 %v844, 7
        %v846 = vsub.s32 1, %v845
        %v847 = vrot.slane %v819, %v846
        %v848 = vlaneseq
        %v849 = vshrl.u32 %v848, 7
        %v850 = vsub.s32 1, %v849
        %v851 = vrot.slane %v820, %v850
        %854 = vrot.lane.b32.xlu0 %v847, 1
        %v855 = vpop.permute.xlu0 %854
        %856 = vrot.lane.b32.xlu0 %v851, 1
        %v857 = vpop.permute.xlu0 %856
        %vm858 = vcmask 7168
        %v859 = vsel %vm858, %v855, %v857
        %v863 = vmul.f32 %v832, %v855
        %v864 = vmul.f32 %v828, %v859
        %v865 = vmul.f32 %v833, %v857
        %v866 = vlaneseq
        %v867 = vshrl.u32 %v866, 7
        %v868 = vsub.s32 3, %v867
        %v869 = vrot.slane %v819, %v868
        %v870 = vlaneseq
        %v871 = vshrl.u32 %v870, 7
        %v872 = vsub.s32 3, %v871
        %v873 = vrot.slane %v820, %v872
        %876 = vrot.lane.b32.xlu0 %v869, 3
        %v877 = vpop.permute.xlu0 %876
        %878 = vrot.lane.b32.xlu0 %v873, 3
        %v879 = vpop.permute.xlu0 %878
        %vm880 = vcmask 23552
        %v881 = vsel %vm880, %v877, %v879
        %v885 = vmul.f32 %v832, %v877
        %v886 = vmul.f32 %v828, %v881
        %v887 = vmul.f32 %v833, %v879
        %v888 = vlaneseq
        %v889 = vshrl.u32 %v888, 7
        %v890 = vsub.s32 4, %v889
        %v891 = vrot.slane %v819, %v890
        %v892 = vlaneseq
        %v893 = vshrl.u32 %v892, 7
        %v894 = vsub.s32 4, %v893
        %v895 = vrot.slane %v820, %v894
        %898 = vrot.lane.b32.xlu0 %v891, 4
        %v899 = vpop.permute.xlu0 %898
        %900 = vrot.lane.b32.xlu0 %v895, 4
        %v901 = vpop.permute.xlu0 %900
        %vm902 = vcmask 31744
        %v903 = vsel %vm902, %v899, %v901
        %v907 = vmul.f32 %v832, %v899
        %v908 = vmul.f32 %v828, %v903
        %v909 = vmul.f32 %v833, %v901
        %912 = vrot.lane.b32.xlu0 %v837, 16
        %v913 = vpop.permute.xlu0 %912
        %914 = vrot.lane.b32.xlu0 %v841, 16
        %v915 = vpop.permute.xlu0 %914
        %vm916 = vcmask 130048
        %v917 = vsel %vm916, %v913, %v915
        %v921 = vmul.f32 %v832, %v913
        %v922 = vmul.f32 %v828, %v917
        %v923 = vmul.f32 %v833, %v915
        %924 = vrot.lane.b32.xlu0 %v847, 17
        %v925 = vpop.permute.xlu0 %924
        %926 = vrot.lane.b32.xlu0 %v851, 17
        %v927 = vpop.permute.xlu0 %926
        %vm928 = vcmask 138240
        %v929 = vsel %vm928, %v925, %v927
        %v933 = vmul.f32 %v832, %v925
        %v934 = vmul.f32 %v828, %v929
        %v935 = vmul.f32 %v833, %v927
        %936 = vrot.lane.b32.xlu0 %v869, 19
        %v937 = vpop.permute.xlu0 %936
        %938 = vrot.lane.b32.xlu0 %v873, 19
        %v939 = vpop.permute.xlu0 %938
        %vm940 = vcmask 154624
        %v941 = vsel %vm940, %v937, %v939
        %v945 = vmul.f32 %v832, %v937
        %v946 = vmul.f32 %v828, %v941
        %v947 = vmul.f32 %v833, %v939
        %948 = vrot.lane.b32.xlu0 %v891, 20
        %v949 = vpop.permute.xlu0 %948
        %950 = vrot.lane.b32.xlu0 %v895, 20
        %v951 = vpop.permute.xlu0 %950
        %vm952 = vcmask 162816
        %v953 = vsel %vm952, %v949, %v951
        %v957 = vmul.f32 %v832, %v949
        %v958 = vmul.f32 %v828, %v953
        %v959 = vmul.f32 %v833, %v951
        %960 = vrot.lane.b32.xlu0 %v837, 32
        %v961 = vpop.permute.xlu0 %960
        %962 = vrot.lane.b32.xlu0 %v841, 32
        %v963 = vpop.permute.xlu0 %962
        %vm964 = vcmask 261120
        %v965 = vsel %vm964, %v961, %v963
        %v969 = vmul.f32 %v832, %v961
        %v970 = vmul.f32 %v828, %v965
        %v971 = vmul.f32 %v833, %v963
        %972 = vrot.lane.b32.xlu0 %v847, 33
        %v973 = vpop.permute.xlu0 %972
        %974 = vrot.lane.b32.xlu0 %v851, 33
        %v975 = vpop.permute.xlu0 %974
        %vm976 = vcmask 269312
        %v977 = vsel %vm976, %v973, %v975
        %v981 = vmul.f32 %v832, %v973
        %v982 = vmul.f32 %v828, %v977
        %v983 = vmul.f32 %v833, %v975
        %984 = vrot.lane.b32.xlu0 %v869, 35
        %v985 = vpop.permute.xlu0 %984
        %986 = vrot.lane.b32.xlu0 %v873, 35
        %v987 = vpop.permute.xlu0 %986
        %vm988 = vcmask 285696
        %v989 = vsel %vm988, %v985, %v987
        %v993 = vmul.f32 %v832, %v985
        %v994 = vmul.f32 %v828, %v989
        %v995 = vmul.f32 %v833, %v987
        %996 = vrot.lane.b32.xlu0 %v891, 36
        %v997 = vpop.permute.xlu0 %996
        %998 = vrot.lane.b32.xlu0 %v895, 36
        %v999 = vpop.permute.xlu0 %998
        %vm1000 = vcmask 293888
        %v1001 = vsel %vm1000, %v997, %v999
        %v1005 = vmul.f32 %v832, %v997
        %v1006 = vmul.f32 %v828, %v1001
        %v1007 = vmul.f32 %v833, %v999
        %1008 = vrot.lane.b32.xlu0 %v837, 48
        %v1009 = vpop.permute.xlu0 %1008
        %1010 = vrot.lane.b32.xlu0 %v841, 48
        %v1011 = vpop.permute.xlu0 %1010
        %vm1012 = vcmask 392192
        %v1013 = vsel %vm1012, %v1009, %v1011
        %v1017 = vmul.f32 %v832, %v1009
        %v1018 = vmul.f32 %v828, %v1013
        %v1019 = vmul.f32 %v833, %v1011
        %1020 = vrot.lane.b32.xlu0 %v847, 49
        %v1021 = vpop.permute.xlu0 %1020
        %1022 = vrot.lane.b32.xlu0 %v851, 49
        %v1023 = vpop.permute.xlu0 %1022
        %vm1024 = vcmask 400384
        %v1025 = vsel %vm1024, %v1021, %v1023
        %v1029 = vmul.f32 %v832, %v1021
        %v1030 = vmul.f32 %v828, %v1025
        %v1031 = vmul.f32 %v833, %v1023
        %1032 = vrot.lane.b32.xlu0 %v869, 51
        %v1033 = vpop.permute.xlu0 %1032
        %1034 = vrot.lane.b32.xlu0 %v873, 51
        %v1035 = vpop.permute.xlu0 %1034
        %vm1036 = vcmask 416768
        %v1037 = vsel %vm1036, %v1033, %v1035
        %v1041 = vmul.f32 %v832, %v1033
        %v1042 = vmul.f32 %v828, %v1037
        %v1043 = vmul.f32 %v833, %v1035
        %1044 = vrot.lane.b32.xlu0 %v891, 52
        %v1045 = vpop.permute.xlu0 %1044
        %1046 = vrot.lane.b32.xlu0 %v895, 52
        %v1047 = vpop.permute.xlu0 %1046
        %vm1048 = vcmask 424960
        %v1049 = vsel %vm1048, %v1045, %v1047
        %v1053 = vmul.f32 %v832, %v1045
        %v1054 = vmul.f32 %v828, %v1049
        %v1055 = vmul.f32 %v833, %v1047
        %1056 = vrot.lane.b32.xlu0 %v837, 64
        %v1057 = vpop.permute.xlu0 %1056
        %1058 = vrot.lane.b32.xlu0 %v841, 64
        %v1059 = vpop.permute.xlu0 %1058
        %v1060 = vsel %vm738, %v1057, %v1059
        %v1064 = vmul.f32 %v832, %v1057
        %v1065 = vmul.f32 %v828, %v1060
        %v1066 = vmul.f32 %v833, %v1059
        %1067 = vrot.lane.b32.xlu0 %v847, 65
        %v1068 = vpop.permute.xlu0 %1067
        %1069 = vrot.lane.b32.xlu0 %v851, 65
        %v1070 = vpop.permute.xlu0 %1069
        %vm1071 = vcmask 531456
        %v1072 = vsel %vm1071, %v1068, %v1070
        %v1076 = vmul.f32 %v832, %v1068
        %v1077 = vmul.f32 %v828, %v1072
        %v1078 = vmul.f32 %v833, %v1070
        %1079 = vrot.lane.b32.xlu0 %v869, 67
        %v1080 = vpop.permute.xlu0 %1079
        %1081 = vrot.lane.b32.xlu0 %v873, 67
        %v1082 = vpop.permute.xlu0 %1081
        %vm1083 = vcmask 547840
        %v1084 = vsel %vm1083, %v1080, %v1082
        %v1088 = vmul.f32 %v832, %v1080
        %v1089 = vmul.f32 %v828, %v1084
        %v1090 = vmul.f32 %v833, %v1082
        %1091 = vrot.lane.b32.xlu0 %v891, 68
        %v1092 = vpop.permute.xlu0 %1091
        %1093 = vrot.lane.b32.xlu0 %v895, 68
        %v1094 = vpop.permute.xlu0 %1093
        %vm1095 = vcmask 556032
        %v1096 = vsel %vm1095, %v1092, %v1094
        %v1100 = vmul.f32 %v832, %v1092
        %v1101 = vmul.f32 %v828, %v1096
        %v1102 = vmul.f32 %v833, %v1094
        %1106 = vrot.lane.b32.xlu0 %v863, 127
        %v1107 = vpop.permute.xlu0 %1106
        %1108 = vrot.lane.b32.xlu0 %v864, 127
        %v1109 = vpop.permute.xlu0 %1108
        %1110 = vrot.lane.b32.xlu0 %v865, 127
        %v1111 = vpop.permute.xlu0 %1110
        %vm1112 = vcmask 1039360
        %v1113 = vsel %vm1112, %v1107, %v1109
        %v1114 = vsel %vm1112, %v1109, %v1111
        %1119 = vrot.lane.b32.xlu0 %v832, 126
        %v1120 = vpop.permute.xlu0 %1119
        %1121 = vrot.lane.b32.xlu0 %v828, 126
        %v1122 = vpop.permute.xlu0 %1121
        %1123 = vrot.lane.b32.xlu0 %v833, 126
        %v1124 = vpop.permute.xlu0 %1123
        %vm1125 = vcmask 1031168
        %v1126 = vsel %vm1125, %v1120, %v1122
        %v1127 = vsel %vm1125, %v1122, %v1124
        %1133 = vrot.lane.b32.xlu0 %v885, 125
        %v1134 = vpop.permute.xlu0 %1133
        %1135 = vrot.lane.b32.xlu0 %v886, 125
        %v1136 = vpop.permute.xlu0 %1135
        %1137 = vrot.lane.b32.xlu0 %v887, 125
        %v1138 = vpop.permute.xlu0 %1137
        %vm1139 = vcmask 1022976
        %v1140 = vsel %vm1139, %v1134, %v1136
        %v1141 = vsel %vm1139, %v1136, %v1138
        %1147 = vrot.lane.b32.xlu0 %v907, 124
        %v1148 = vpop.permute.xlu0 %1147
        %1149 = vrot.lane.b32.xlu0 %v908, 124
        %v1150 = vpop.permute.xlu0 %1149
        %1151 = vrot.lane.b32.xlu0 %v909, 124
        %v1152 = vpop.permute.xlu0 %1151
        %vm1153 = vcmask 1014784
        %v1154 = vsel %vm1153, %v1148, %v1150
        %v1155 = vsel %vm1153, %v1150, %v1152
        %1161 = vrot.lane.b32.xlu0 %v921, 112
        %v1162 = vpop.permute.xlu0 %1161
        %1163 = vrot.lane.b32.xlu0 %v922, 112
        %v1164 = vpop.permute.xlu0 %1163
        %1165 = vrot.lane.b32.xlu0 %v923, 112
        %v1166 = vpop.permute.xlu0 %1165
        %vm1167 = vcmask 916480
        %v1168 = vsel %vm1167, %v1162, %v1164
        %v1169 = vsel %vm1167, %v1164, %v1166
        %1175 = vrot.lane.b32.xlu0 %v933, 111
        %v1176 = vpop.permute.xlu0 %1175
        %1177 = vrot.lane.b32.xlu0 %v934, 111
        %v1178 = vpop.permute.xlu0 %1177
        %1179 = vrot.lane.b32.xlu0 %v935, 111
        %v1180 = vpop.permute.xlu0 %1179
        %vm1181 = vcmask 908288
        %v1182 = vsel %vm1181, %v1176, %v1178
        %v1183 = vsel %vm1181, %v1178, %v1180
        %1186 = vrot.lane.b32.xlu0 %v832, 110
        %v1187 = vpop.permute.xlu0 %1186
        %1188 = vrot.lane.b32.xlu0 %v828, 110
        %v1189 = vpop.permute.xlu0 %1188
        %1190 = vrot.lane.b32.xlu0 %v833, 110
        %v1191 = vpop.permute.xlu0 %1190
        %vm1192 = vcmask 900096
        %v1193 = vsel %vm1192, %v1187, %v1189
        %v1194 = vsel %vm1192, %v1189, %v1191
        %1200 = vrot.lane.b32.xlu0 %v945, 109
        %v1201 = vpop.permute.xlu0 %1200
        %1202 = vrot.lane.b32.xlu0 %v946, 109
        %v1203 = vpop.permute.xlu0 %1202
        %1204 = vrot.lane.b32.xlu0 %v947, 109
        %v1205 = vpop.permute.xlu0 %1204
        %vm1206 = vcmask 891904
        %v1207 = vsel %vm1206, %v1201, %v1203
        %v1208 = vsel %vm1206, %v1203, %v1205
        %1214 = vrot.lane.b32.xlu0 %v957, 108
        %v1215 = vpop.permute.xlu0 %1214
        %1216 = vrot.lane.b32.xlu0 %v958, 108
        %v1217 = vpop.permute.xlu0 %1216
        %1218 = vrot.lane.b32.xlu0 %v959, 108
        %v1219 = vpop.permute.xlu0 %1218
        %vm1220 = vcmask 883712
        %v1221 = vsel %vm1220, %v1215, %v1217
        %v1222 = vsel %vm1220, %v1217, %v1219
        %1228 = vrot.lane.b32.xlu0 %v969, 96
        %v1229 = vpop.permute.xlu0 %1228
        %1230 = vrot.lane.b32.xlu0 %v970, 96
        %v1231 = vpop.permute.xlu0 %1230
        %1232 = vrot.lane.b32.xlu0 %v971, 96
        %v1233 = vpop.permute.xlu0 %1232
        %vm1234 = vcmask 785408
        %v1235 = vsel %vm1234, %v1229, %v1231
        %v1236 = vsel %vm1234, %v1231, %v1233
        %1242 = vrot.lane.b32.xlu0 %v981, 95
        %v1243 = vpop.permute.xlu0 %1242
        %1244 = vrot.lane.b32.xlu0 %v982, 95
        %v1245 = vpop.permute.xlu0 %1244
        %1246 = vrot.lane.b32.xlu0 %v983, 95
        %v1247 = vpop.permute.xlu0 %1246
        %vm1248 = vcmask 777216
        %v1249 = vsel %vm1248, %v1243, %v1245
        %v1250 = vsel %vm1248, %v1245, %v1247
        %1253 = vrot.lane.b32.xlu0 %v832, 94
        %v1254 = vpop.permute.xlu0 %1253
        %1255 = vrot.lane.b32.xlu0 %v828, 94
        %v1256 = vpop.permute.xlu0 %1255
        %1257 = vrot.lane.b32.xlu0 %v833, 94
        %v1258 = vpop.permute.xlu0 %1257
        %vm1259 = vcmask 769024
        %v1260 = vsel %vm1259, %v1254, %v1256
        %v1261 = vsel %vm1259, %v1256, %v1258
        %1267 = vrot.lane.b32.xlu0 %v993, 93
        %v1268 = vpop.permute.xlu0 %1267
        %1269 = vrot.lane.b32.xlu0 %v994, 93
        %v1270 = vpop.permute.xlu0 %1269
        %1271 = vrot.lane.b32.xlu0 %v995, 93
        %v1272 = vpop.permute.xlu0 %1271
        %vm1273 = vcmask 760832
        %v1274 = vsel %vm1273, %v1268, %v1270
        %v1275 = vsel %vm1273, %v1270, %v1272
        %1281 = vrot.lane.b32.xlu0 %v1005, 92
        %v1282 = vpop.permute.xlu0 %1281
        %1283 = vrot.lane.b32.xlu0 %v1006, 92
        %v1284 = vpop.permute.xlu0 %1283
        %1285 = vrot.lane.b32.xlu0 %v1007, 92
        %v1286 = vpop.permute.xlu0 %1285
        %vm1287 = vcmask 752640
        %v1288 = vsel %vm1287, %v1282, %v1284
        %v1289 = vsel %vm1287, %v1284, %v1286
        %1295 = vrot.lane.b32.xlu0 %v1017, 80
        %v1296 = vpop.permute.xlu0 %1295
        %1297 = vrot.lane.b32.xlu0 %v1018, 80
        %v1298 = vpop.permute.xlu0 %1297
        %1299 = vrot.lane.b32.xlu0 %v1019, 80
        %v1300 = vpop.permute.xlu0 %1299
        %vm1301 = vcmask 654336
        %v1302 = vsel %vm1301, %v1296, %v1298
        %v1303 = vsel %vm1301, %v1298, %v1300
        %1306 = vrot.lane.b32.xlu0 %v832, 127
        %v1307 = vpop.permute.xlu0 %1306
        %1308 = vrot.lane.b32.xlu0 %v828, 127
        %v1309 = vpop.permute.xlu0 %1308
        %1310 = vrot.lane.b32.xlu0 %v833, 127
        %v1311 = vpop.permute.xlu0 %1310
        %v1312 = vsel %vm1112, %v1307, %v1309
        %v1313 = vsel %vm1112, %v1309, %v1311
        %1317 = vrot.lane.b32.xlu0 %v1041, 126
        %v1318 = vpop.permute.xlu0 %1317
        %1319 = vrot.lane.b32.xlu0 %v1042, 126
        %v1320 = vpop.permute.xlu0 %1319
        %1321 = vrot.lane.b32.xlu0 %v1043, 126
        %v1322 = vpop.permute.xlu0 %1321
        %v1323 = vsel %vm1125, %v1318, %v1320
        %v1324 = vsel %vm1125, %v1320, %v1322
        %1328 = vrot.lane.b32.xlu0 %v1053, 125
        %v1329 = vpop.permute.xlu0 %1328
        %1330 = vrot.lane.b32.xlu0 %v1054, 125
        %v1331 = vpop.permute.xlu0 %1330
        %1332 = vrot.lane.b32.xlu0 %v1055, 125
        %v1333 = vpop.permute.xlu0 %1332
        %v1334 = vsel %vm1139, %v1329, %v1331
        %v1335 = vsel %vm1139, %v1331, %v1333
        %1339 = vrot.lane.b32.xlu0 %v1064, 113
        %v1340 = vpop.permute.xlu0 %1339
        %1341 = vrot.lane.b32.xlu0 %v1065, 113
        %v1342 = vpop.permute.xlu0 %1341
        %1343 = vrot.lane.b32.xlu0 %v1066, 113
        %v1344 = vpop.permute.xlu0 %1343
        %vm1345 = vcmask 924672
        %v1346 = vsel %vm1345, %v1340, %v1342
        %v1347 = vsel %vm1345, %v1342, %v1344
        %1351 = vrot.lane.b32.xlu0 %v1076, 112
        %v1352 = vpop.permute.xlu0 %1351
        %1353 = vrot.lane.b32.xlu0 %v1077, 112
        %v1354 = vpop.permute.xlu0 %1353
        %1355 = vrot.lane.b32.xlu0 %v1078, 112
        %v1356 = vpop.permute.xlu0 %1355
        %v1357 = vsel %vm1167, %v1352, %v1354
        %v1358 = vsel %vm1167, %v1354, %v1356
        %1359 = vrot.lane.b32.xlu0 %v832, 111
        %v1360 = vpop.permute.xlu0 %1359
        %1361 = vrot.lane.b32.xlu0 %v828, 111
        %v1362 = vpop.permute.xlu0 %1361
        %1363 = vrot.lane.b32.xlu0 %v833, 111
        %v1364 = vpop.permute.xlu0 %1363
        %v1365 = vsel %vm1181, %v1360, %v1362
        %v1366 = vsel %vm1181, %v1362, %v1364
        %1370 = vrot.lane.b32.xlu0 %v1088, 110
        %v1371 = vpop.permute.xlu0 %1370
        %1372 = vrot.lane.b32.xlu0 %v1089, 110
        %v1373 = vpop.permute.xlu0 %1372
        %1374 = vrot.lane.b32.xlu0 %v1090, 110
        %v1375 = vpop.permute.xlu0 %1374
        %v1376 = vsel %vm1192, %v1371, %v1373
        %v1377 = vsel %vm1192, %v1373, %v1375
        %1381 = vrot.lane.b32.xlu0 %v1100, 109
        %v1382 = vpop.permute.xlu0 %1381
        %1383 = vrot.lane.b32.xlu0 %v1101, 109
        %v1384 = vpop.permute.xlu0 %1383
        %1385 = vrot.lane.b32.xlu0 %v1102, 109
        %v1386 = vpop.permute.xlu0 %1385
        %v1387 = vsel %vm1206, %v1382, %v1384
        %v1388 = vsel %vm1206, %v1384, %v1386
        %1392 = vrot.lane.b32.xlu0 %v1029, 79
        %v1393 = vpop.permute.xlu0 %1392
        %1394 = vrot.lane.b32.xlu0 %v1030, 79
        %v1395 = vpop.permute.xlu0 %1394
        %1396 = vrot.lane.b32.xlu0 %v1031, 79
        %v1397 = vpop.permute.xlu0 %1396
        %1398 = vrot.lane.b32.xlu0 %v1312, 79
        %v1399 = vpop.permute.xlu0 %1398
        %1400 = vrot.lane.b32.xlu0 %v1313, 79
        %v1401 = vpop.permute.xlu0 %1400
        %1402 = vrot.lane.b32.xlu0 %v1311, 79
        %v1403 = vpop.permute.xlu0 %1402
        %1404 = vrot.lane.b32.xlu0 %v1323, 79
        %v1405 = vpop.permute.xlu0 %1404
        %1406 = vrot.lane.b32.xlu0 %v1324, 79
        %v1407 = vpop.permute.xlu0 %1406
        %1408 = vrot.lane.b32.xlu0 %v1322, 79
        %v1409 = vpop.permute.xlu0 %1408
        %1410 = vrot.lane.b32.xlu0 %v1334, 79
        %v1411 = vpop.permute.xlu0 %1410
        %1412 = vrot.lane.b32.xlu0 %v1335, 79
        %v1413 = vpop.permute.xlu0 %1412
        %1414 = vrot.lane.b32.xlu0 %v1333, 79
        %v1415 = vpop.permute.xlu0 %1414
        %1416 = vrot.lane.b32.xlu0 %v1346, 79
        %v1417 = vpop.permute.xlu0 %1416
        %1418 = vrot.lane.b32.xlu0 %v1347, 79
        %v1419 = vpop.permute.xlu0 %1418
        %1420 = vrot.lane.b32.xlu0 %v1344, 79
        %v1421 = vpop.permute.xlu0 %1420
        %1422 = vrot.lane.b32.xlu0 %v1357, 79
        %v1423 = vpop.permute.xlu0 %1422
        %1424 = vrot.lane.b32.xlu0 %v1358, 79
        %v1425 = vpop.permute.xlu0 %1424
        %1426 = vrot.lane.b32.xlu0 %v1356, 79
        %v1427 = vpop.permute.xlu0 %1426
        %1428 = vrot.lane.b32.xlu0 %v1365, 79
        %v1429 = vpop.permute.xlu0 %1428
        %1430 = vrot.lane.b32.xlu0 %v1366, 79
        %v1431 = vpop.permute.xlu0 %1430
        %1432 = vrot.lane.b32.xlu0 %v1364, 79
        %v1433 = vpop.permute.xlu0 %1432
        %1434 = vrot.lane.b32.xlu0 %v1376, 79
        %v1435 = vpop.permute.xlu0 %1434
        %1436 = vrot.lane.b32.xlu0 %v1377, 79
        %v1437 = vpop.permute.xlu0 %1436
        %1438 = vrot.lane.b32.xlu0 %v1375, 79
        %v1439 = vpop.permute.xlu0 %1438
        %1440 = vrot.lane.b32.xlu0 %v1387, 79
        %v1441 = vpop.permute.xlu0 %1440
        %1442 = vrot.lane.b32.xlu0 %v1388, 79
        %v1443 = vpop.permute.xlu0 %1442
        %1444 = vrot.lane.b32.xlu0 %v1386, 79
        %v1445 = vpop.permute.xlu0 %1444
        %vm1446 = vcmask 646144
        %v1447 = vsel %vm1446, %v1393, %v1395
        %v1448 = vsel %vm1446, %v1395, %v1397
        %v1449 = vsel %vm1446, %v1399, %v1401
        %v1450 = vsel %vm1446, %v1401, %v1403
        %v1451 = vsel %vm1446, %v1405, %v1407
        %v1452 = vsel %vm1446, %v1407, %v1409
        %v1453 = vsel %vm1446, %v1411, %v1413
        %v1454 = vsel %vm1446, %v1413, %v1415
        %v1455 = vsel %vm1446, %v1417, %v1419
        %v1456 = vsel %vm1446, %v1419, %v1421
        %v1457 = vsel %vm1446, %v1423, %v1425
        %v1458 = vsel %vm1446, %v1425, %v1427
        %v1459 = vsel %vm1446, %v1429, %v1431
        %v1460 = vsel %vm1446, %v1431, %v1433
        %v1461 = vsel %vm1446, %v1435, %v1437
        %v1462 = vsel %vm1446, %v1437, %v1439
        %v1463 = vsel %vm1446, %v1441, %v1443
        %v1464 = vsel %vm1446, %v1443, %v1445
        %1484 = vset.pattern.permute.xlu0 0
        %1485 = vperm.xlu0 %1484, %v817
        %v1486 = vpop.permute.xlu0 %1485
        %1489 = vset.pattern.permute.xlu0 0
        %1490 = vperm.xlu0 %1489, %v818
        %v1491 = vpop.permute.xlu0 %1490
        %v1494 = vsel %vm647, %v814, 0
        %v1497 = vsel %vm647, %v816, 0
        %1499 = vmatprep.subr.mxu0 %v843
        %1500 = vmatpush1.msra.mxu0 %v842
        %1501 = vmatprep.subr.mxu0 %v1114
        %1502 = vmatpush1.msra.mxu0 %v1113
        %1503 = vmatprep.subr.mxu0 %v1127
        %1504 = vmatpush1.msra.mxu0 %v1126
        %1505 = vmatprep.subr.mxu0 %v1141
        %1506 = vmatpush1.msra.mxu0 %v1140
        %1507 = vmatprep.subr.mxu0 %v1155
        %1508 = vmatpush1.msra.mxu0 %v1154
        %1509 = vmatprep.subr.mxu0 %v1169
        %1510 = vmatpush1.msra.mxu0 %v1168
        %1511 = vmatprep.subr.mxu0 %v1183
        %1512 = vmatpush1.msra.mxu0 %v1182
        %1513 = vmatprep.subr.mxu0 %v1194
        %1514 = vmatpush1.msra.mxu0 %v1193
        %1515 = vmatprep.subr.mxu0 %v1208
        %1516 = vmatpush1.msra.mxu0 %v1207
        %1517 = vmatprep.subr.mxu0 %v1222
        %1518 = vmatpush1.msra.mxu0 %v1221
        %1519 = vmatprep.subr.mxu0 %v1236
        %1520 = vmatpush1.msra.mxu0 %v1235
        %1521 = vmatprep.subr.mxu0 %v1250
        %1522 = vmatpush1.msra.mxu0 %v1249
        %1523 = vmatprep.subr.mxu0 %v1261
        %1524 = vmatpush1.msra.mxu0 %v1260
        %1525 = vmatprep.subr.mxu0 %v1275
        %1526 = vmatpush1.msra.mxu0 %v1274
        %1527 = vmatprep.subr.mxu0 %v1289
        %1528 = vmatpush1.msra.mxu0 %v1288
        %1529 = vmatprep.subr.mxu0 %v1303
        %1530 = vmatpush1.msra.mxu0 %v1302
        %1531 = vmatprep.subr.mxu0 %v1448
        %1532 = vmatpush1.msra.mxu0 %v1447
        %1533 = vmatprep.subr.mxu0 %v1450
        %1534 = vmatpush1.msra.mxu0 %v1449
        %1535 = vmatprep.subr.mxu0 %v1452
        %1536 = vmatpush1.msra.mxu0 %v1451
        %1537 = vmatprep.subr.mxu0 %v1454
        %1538 = vmatpush1.msra.mxu0 %v1453
        %1539 = vmatprep.subr.mxu0 %v1456
        %1540 = vmatpush1.msra.mxu0 %v1455
        %1541 = vmatprep.subr.mxu0 %v1458
        %1542 = vmatpush1.msra.mxu0 %v1457
        %1543 = vmatprep.subr.mxu0 %v1460
        %1544 = vmatpush1.msra.mxu0 %v1459
        %1545 = vmatprep.subr.mxu0 %v1462
        %1546 = vmatpush1.msra.mxu0 %v1461
        %1547 = vmatprep.subr.mxu0 %v1464
        %1548 = vmatpush1.msra.mxu0 %v1463
        %1549 = vmatprep.subr.mxu0 0.0
        %1550 = vmatpush1.msra.mxu0 0.0
        %1551 = vmatprep.subr.mxu0 0.0
        %1552 = vmatpush1.msra.mxu0 0.0
        %1553 = vmatprep.subr.mxu0 0.0
        %1554 = vmatpush1.msra.mxu0 0.0
        %1555 = vmatprep.subr.mxu0 0.0
        %1556 = vmatpush1.msra.mxu0 0.0
        %1557 = vmatprep.subr.mxu0 0.0
        %1558 = vmatpush1.msra.mxu0 0.0
        %1559 = vmatprep.subr.mxu0 0.0
        %1560 = vmatpush1.msra.mxu0 0.0
        %1561 = vmatprep.subr.mxu0 0.0
        %1562 = vmatpush1.msra.mxu0 0.0
        %1563 = vmatprep.mubr.f32.mxu0 %v1494
        %1564 = vmatmul.mubr.f32.gmra.mrb[0].mxu0 %v813
        %v1565 = vpop.f32.mrb[0].mxu0
        %v1566 = vadd.f32 %v1486, %v1565
        %v1567 = vpop.f32.mrb[0].mxu0
        %v1568 = vadd.f32 %v1486, %v1567
        %1569 = vmatprep.mubr.f32.mxu0 %v1497
        %1570 = vmatmul.mubr.f32.gmra.mrb[0].mxu0 %v815
        %v1571 = vpop.f32.mrb[0].mxu0
        %v1572 = vadd.f32 %v1491, %v1571
        %v1573 = vpop.f32.mrb[0].mxu0
        %v1574 = vadd.f32 %v1491, %v1573
        %1575 = vdwg.mxu0
        %v1576 = vmax.f32 %v1566, 0.0
        %v1577 = vmax.f32 %v1568, 0.0
        %v1578 = vmax.f32 %v1572, 0.0
        %v1579 = vmax.f32 %v1574, 0.0
        %v1580 = vld [vmem:[#allocation2] sm:$0xff]
        %v1581 = vld [vmem:[#allocation2 + $0x8] sm:$0xff]
        %v1582 = vld [vmem:[#allocation2 + $0x10] sm:$0xff]
        %v1583 = vld [vmem:[#allocation2 + $0x18] sm:$0xff]
        %v1584 = vld [vmem:[#allocation2 + $0x20] sm:$0xff]
        %v1585 = vld [vmem:[#allocation2 + $0x28] sm:$0xff]
        %v1586 = vld [vmem:[#allocation2 + $0x30] sm:$0xff]
        %v1587 = vld [vmem:[#allocation2 + $0x38] sm:$0xff]
        %v1588 = vld [vmem:[#allocation2 + $0x40] sm:$0xff]
        %v1589 = vld [vmem:[#allocation2 + $0x48] sm:$0xff]
        %v1590 = vld [vmem:[#allocation2 + $0x50] sm:$0xff]
        %v1591 = vld [vmem:[#allocation2 + $0x58] sm:$0xff]
        %v1592 = vld [vmem:[#allocation2 + $0x60] sm:$0xff]
        %v1593 = vld [vmem:[#allocation2 + $0x68] sm:$0xff]
        %v1594 = vld [vmem:[#allocation2 + $0x70] sm:$0xff]
        %v1595 = vld [vmem:[#allocation2 + $0x78] sm:$0xff]
        %v1596 = vld [vmem:[#allocation2 + $0x80] sm:$0xff]
        %v1597 = vld [vmem:[#allocation2 + $0x88] sm:$0xff]
        %v1598 = vld [vmem:[#allocation2 + $0x90] sm:$0xff]
        %v1599 = vld [vmem:[#allocation2 + $0x98] sm:$0xff]
        %v1600 = vld [vmem:[#allocation2 + $0xa0] sm:$0xff]
        %v1601 = vld [vmem:[#allocation2 + $0xa8] sm:$0xff]
        %v1602 = vld [vmem:[#allocation2 + $0xb0] sm:$0xff]
        %v1603 = vld [vmem:[#allocation2 + $0xb8] sm:$0xff]
        %v1604 = vld [vmem:[#allocation2 + $0xc0] sm:$0xff]
        %v1605 = vld [vmem:[#allocation2 + $0xc8] sm:$0xff]
        %v1606 = vld [vmem:[#allocation2 + $0xd0] sm:$0xff]
        %v1607 = vld [vmem:[#allocation2 + $0xd8] sm:$0xff]
        %v1608 = vld [vmem:[#allocation2 + $0xe0] sm:$0xff]
        %v1609 = vld [vmem:[#allocation2 + $0xe8] sm:$0xff]
        %v1610 = vld [vmem:[#allocation2 + $0xf0] sm:$0xff]
        %v1611 = vld [vmem:[#allocation2 + $0xf8] sm:$0xff]
        %v1612 = vld [vmem:[#allocation2 + $0x100] sm:$0xff]
        %v1613 = vld [vmem:[#allocation2 + $0x108] sm:$0xff]
        %v1614 = vld [vmem:[#allocation2 + $0x110] sm:$0xff]
        %v1615 = vld [vmem:[#allocation2 + $0x118] sm:$0xff]
        %v1616 = vld [vmem:[#allocation2 + $0x120] sm:$0xff]
        %v1617 = vld [vmem:[#allocation2 + $0x128] sm:$0xff]
        %v1618 = vld [vmem:[#allocation2 + $0x130] sm:$0xff]
        %v1619 = vld [vmem:[#allocation2 + $0x138] sm:$0xff]
        %v1620 = vld [vmem:[#allocation2 + $0x140] sm:$0xff]
        %v1621 = vld [vmem:[#allocation2 + $0x148] sm:$0xff]
        %v1622 = vld [vmem:[#allocation2 + $0x150] sm:$0xff]
        %v1623 = vld [vmem:[#allocation2 + $0x158] sm:$0xff]
        %v1624 = vld [vmem:[#allocation2 + $0x160] sm:$0xff]
        %v1625 = vld [vmem:[#allocation2 + $0x168] sm:$0xff]
        %v1626 = vld [vmem:[#allocation2 + $0x170] sm:$0xff]
        %v1627 = vld [vmem:[#allocation2 + $0x178] sm:$0xff]
        %v1628 = vld [vmem:[#allocation2 + $0x180] sm:$0xff]
        %v1629 = vld [vmem:[#allocation2 + $0x188] sm:$0xff]
        %v1630 = vld [vmem:[#allocation2 + $0x190] sm:$0xff]
        %v1631 = vld [vmem:[#allocation2 + $0x198] sm:$0xff]
        %v1632 = vld [vmem:[#allocation2 + $0x1a0] sm:$0xff]
        %v1633 = vld [vmem:[#allocation2 + $0x1a8] sm:$0xff]
        %v1634 = vld [vmem:[#allocation2 + $0x1b0] sm:$0xff]
        %v1635 = vld [vmem:[#allocation2 + $0x1b8] sm:$0xff]
        %v1636 = vld [vmem:[#allocation2 + $0x1c0] sm:$0xff]
        %v1637 = vld [vmem:[#allocation2 + $0x1c8] sm:$0xff]
        %v1638 = vld [vmem:[#allocation2 + $0x1d0] sm:$0xff]
        %v1639 = vld [vmem:[#allocation2 + $0x1d8] sm:$0xff]
        %v1640 = vld [vmem:[#allocation2 + $0x1e0] sm:$0xff]
        %v1641 = vld [vmem:[#allocation2 + $0x1e8] sm:$0xff]
        %v1642 = vld [vmem:[#allocation2 + $0x1f0] sm:$0xff]
        %v1643 = vld [vmem:[#allocation2 + $0x1f8] sm:$0xff]
        %v1644 = vld [vmem:[#allocation2 + $0x200] sm:$0xff]
        %v1645 = vld [vmem:[#allocation2 + $0x208] sm:$0xff]
        %v1646 = vld [vmem:[#allocation2 + $0x210] sm:$0xff]
        %v1647 = vld [vmem:[#allocation2 + $0x218] sm:$0xff]
        %v1648 = vld [vmem:[#allocation2 + $0x220] sm:$0xff]
        %v1649 = vld [vmem:[#allocation2 + $0x228] sm:$0xff]
        %v1650 = vld [vmem:[#allocation2 + $0x230] sm:$0xff]
        %v1651 = vld [vmem:[#allocation2 + $0x238] sm:$0xff]
        %v1652 = vld [vmem:[#allocation2 + $0x240] sm:$0xff]
        %v1653 = vld [vmem:[#allocation2 + $0x248] sm:$0xff]
        %v1654 = vld [vmem:[#allocation2 + $0x250] sm:$0xff]
        %v1655 = vld [vmem:[#allocation2 + $0x258] sm:$0xff]
        %v1656 = vld [vmem:[#allocation2 + $0x260] sm:$0xff]
        %v1657 = vld [vmem:[#allocation2 + $0x268] sm:$0xff]
        %v1658 = vld [vmem:[#allocation2 + $0x270] sm:$0xff]
        %v1659 = vld [vmem:[#allocation2 + $0x278] sm:$0xff]
        %v1660 = vld [vmem:[#allocation2 + $0x280] sm:$0xff]
        %v1661 = vld [vmem:[#allocation2 + $0x288] sm:$0xff]
        %v1662 = vld [vmem:[#allocation2 + $0x290] sm:$0xff]
        %v1663 = vld [vmem:[#allocation2 + $0x298] sm:$0xff]
        %v1664 = vld [vmem:[#allocation2 + $0x2a0] sm:$0xff]
        %v1665 = vld [vmem:[#allocation2 + $0x2a8] sm:$0xff]
        %v1666 = vld [vmem:[#allocation2 + $0x2b0] sm:$0xff]
        %v1667 = vld [vmem:[#allocation2 + $0x2b8] sm:$0xff]
        %v1668 = vld [vmem:[#allocation2 + $0x2c0] sm:$0xff]
        %v1669 = vld [vmem:[#allocation2 + $0x2c8] sm:$0xff]
        %v1670 = vld [vmem:[#allocation2 + $0x2d0] sm:$0xff]
        %v1671 = vld [vmem:[#allocation2 + $0x2d8] sm:$0xff]
        %v1672 = vld [vmem:[#allocation2 + $0x2e0] sm:$0xff]
        %v1673 = vld [vmem:[#allocation2 + $0x2e8] sm:$0xff]
        %v1674 = vld [vmem:[#allocation2 + $0x2f0] sm:$0xff]
        %v1675 = vld [vmem:[#allocation2 + $0x2f8] sm:$0xff]
        %v1676 = vld [vmem:[#allocation2 + $0x300] sm:$0xff]
        %v1677 = vld [vmem:[#allocation2 + $0x308] sm:$0xff]
        %v1678 = vld [vmem:[#allocation2 + $0x310] sm:$0xff]
        %v1679 = vld [vmem:[#allocation2 + $0x318] sm:$0xff]
        %v1680 = vld [vmem:[#allocation2 + $0x320] sm:$0xff]
        %v1681 = vld [vmem:[#allocation2 + $0x328] sm:$0xff]
        %v1682 = vld [vmem:[#allocation2 + $0x330] sm:$0xff]
        %v1683 = vld [vmem:[#allocation2 + $0x338] sm:$0xff]
        %v1684 = vld [vmem:[#allocation2 + $0x340] sm:$0xff]
        %v1685 = vld [vmem:[#allocation2 + $0x348] sm:$0xff]
        %v1686 = vld [vmem:[#allocation2 + $0x350] sm:$0xff]
        %v1687 = vld [vmem:[#allocation2 + $0x358] sm:$0xff]
        %v1688 = vld [vmem:[#allocation2 + $0x360] sm:$0xff]
        %v1689 = vld [vmem:[#allocation2 + $0x368] sm:$0xff]
        %v1690 = vld [vmem:[#allocation2 + $0x370] sm:$0xff]
        %v1691 = vld [vmem:[#allocation2 + $0x378] sm:$0xff]
        %v1692 = vld [vmem:[#allocation2 + $0x380] sm:$0xff]
        %v1693 = vld [vmem:[#allocation2 + $0x388] sm:$0xff]
        %v1694 = vld [vmem:[#allocation2 + $0x390] sm:$0xff]
        %v1695 = vld [vmem:[#allocation2 + $0x398] sm:$0xff]
        %v1696 = vld [vmem:[#allocation2 + $0x3a0] sm:$0xff]
        %v1697 = vld [vmem:[#allocation2 + $0x3a8] sm:$0xff]
        %v1698 = vld [vmem:[#allocation2 + $0x3b0] sm:$0xff]
        %v1699 = vld [vmem:[#allocation2 + $0x3b8] sm:$0xff]
        %v1700 = vld [vmem:[#allocation2 + $0x3c0] sm:$0xff]
        %v1701 = vld [vmem:[#allocation2 + $0x3c8] sm:$0xff]
        %v1702 = vld [vmem:[#allocation2 + $0x3d0] sm:$0xff]
        %v1703 = vld [vmem:[#allocation2 + $0x3d8] sm:$0xff]
        %v1704 = vld [vmem:[#allocation2 + $0x3e0] sm:$0xff]
        %v1705 = vld [vmem:[#allocation2 + $0x3e8] sm:$0xff]
        %v1706 = vld [vmem:[#allocation2 + $0x3f0] sm:$0xff]
        %v1707 = vld [vmem:[#allocation2 + $0x3f8] sm:$0xff]
        %v1708 = vld [vmem:[#allocation2 + $0x400] sm:$0xff]
        %v1709 = vld [vmem:[#allocation2 + $0x408] sm:$0xff]
        %v1710 = vld [vmem:[#allocation2 + $0x410] sm:$0xff]
        %v1711 = vld [vmem:[#allocation2 + $0x418] sm:$0xff]
        %v1712 = vld [vmem:[#allocation2 + $0x420] sm:$0xff]
        %v1713 = vld [vmem:[#allocation2 + $0x428] sm:$0xff]
        %v1714 = vld [vmem:[#allocation2 + $0x430] sm:$0xff]
        %v1715 = vld [vmem:[#allocation2 + $0x438] sm:$0xff]
        %v1716 = vld [vmem:[#allocation2 + $0x440] sm:$0xff]
        %v1717 = vld [vmem:[#allocation2 + $0x448] sm:$0xff]
        %v1718 = vld [vmem:[#allocation2 + $0x450] sm:$0xff]
        %v1719 = vld [vmem:[#allocation2 + $0x458] sm:$0xff]
        %v1720 = vld [vmem:[#allocation2 + $0x460] sm:$0xff]
        %v1721 = vld [vmem:[#allocation2 + $0x468] sm:$0xff]
        %v1722 = vld [vmem:[#allocation2 + $0x470] sm:$0xff]
        %v1723 = vld [vmem:[#allocation2 + $0x478] sm:$0xff]
        %v1724 = vld [vmem:[#allocation2 + $0x480] sm:$0xff]
        %v1725 = vld [vmem:[#allocation2 + $0x488] sm:$0xff]
        %v1726 = vld [vmem:[#allocation2 + $0x490] sm:$0xff]
        %v1727 = vld [vmem:[#allocation2 + $0x498] sm:$0xff]
        %v1728 = vld [vmem:[#allocation2 + $0x4a0] sm:$0xff]
        %v1729 = vld [vmem:[#allocation2 + $0x4a8] sm:$0xff]
        %v1730 = vld [vmem:[#allocation2 + $0x4b0] sm:$0xff]
        %v1731 = vld [vmem:[#allocation2 + $0x4b8] sm:$0xff]
        %v1732 = vld [vmem:[#allocation2 + $0x4c0] sm:$0xff]
        %v1733 = vld [vmem:[#allocation2 + $0x4c8] sm:$0xff]
        %v1734 = vld [vmem:[#allocation2 + $0x4d0] sm:$0xff]
        %v1735 = vld [vmem:[#allocation2 + $0x4d8] sm:$0xff]
        %v1736 = vld [vmem:[#allocation2 + $0x4e0] sm:$0xff]
        %v1737 = vld [vmem:[#allocation2 + $0x4e8] sm:$0xff]
        %v1738 = vld [vmem:[#allocation2 + $0x4f0] sm:$0xff]
        %v1739 = vld [vmem:[#allocation2 + $0x4f8] sm:$0xff]
        %v1740 = vld [vmem:[#allocation2 + $0x500] sm:$0xff]
        %v1741 = vld [vmem:[#allocation2 + $0x508] sm:$0xff]
        %v1742 = vld [vmem:[#allocation2 + $0x510] sm:$0xff]
        %v1743 = vld [vmem:[#allocation2 + $0x518] sm:$0xff]
        %v1744 = vld [vmem:[#allocation2 + $0x520] sm:$0xff]
        %v1745 = vld [vmem:[#allocation2 + $0x528] sm:$0xff]
        %v1746 = vld [vmem:[#allocation2 + $0x530] sm:$0xff]
        %v1747 = vld [vmem:[#allocation2 + $0x538] sm:$0xff]
        %v1748 = vld [vmem:[#allocation2 + $0x540] sm:$0xff]
        %v1749 = vld [vmem:[#allocation2 + $0x548] sm:$0xff]
        %v1750 = vld [vmem:[#allocation2 + $0x550] sm:$0xff]
        %v1751 = vld [vmem:[#allocation2 + $0x558] sm:$0xff]
        %v1752 = vld [vmem:[#allocation2 + $0x560] sm:$0xff]
        %v1753 = vld [vmem:[#allocation2 + $0x568] sm:$0xff]
        %v1754 = vld [vmem:[#allocation2 + $0x570] sm:$0xff]
        %v1755 = vld [vmem:[#allocation2 + $0x578] sm:$0xff]
        %v1756 = vld [vmem:[#allocation2 + $0x580] sm:$0xff]
        %v1757 = vld [vmem:[#allocation2 + $0x588] sm:$0xff]
        %v1758 = vld [vmem:[#allocation2 + $0x590] sm:$0xff]
        %v1759 = vld [vmem:[#allocation2 + $0x598] sm:$0xff]
        %v1760 = vld [vmem:[#allocation2 + $0x5a0] sm:$0xff]
        %v1761 = vld [vmem:[#allocation2 + $0x5a8] sm:$0xff]
        %v1762 = vld [vmem:[#allocation2 + $0x5b0] sm:$0xff]
        %v1763 = vld [vmem:[#allocation2 + $0x5b8] sm:$0xff]
        %v1764 = vld [vmem:[#allocation2 + $0x5c0] sm:$0xff]
        %v1765 = vld [vmem:[#allocation2 + $0x5c8] sm:$0xff]
        %v1766 = vld [vmem:[#allocation2 + $0x5d0] sm:$0xff]
        %v1767 = vld [vmem:[#allocation2 + $0x5d8] sm:$0xff]
        %v1768 = vld [vmem:[#allocation2 + $0x5e0] sm:$0xff]
        %v1769 = vld [vmem:[#allocation2 + $0x5e8] sm:$0xff]
        %v1770 = vld [vmem:[#allocation2 + $0x5f0] sm:$0xff]
        %v1771 = vld [vmem:[#allocation2 + $0x5f8] sm:$0xff]
        %v1772 = vld [vmem:[#allocation2 + $0x600] sm:$0xff]
        %v1773 = vld [vmem:[#allocation2 + $0x608] sm:$0xff]
        %v1774 = vld [vmem:[#allocation2 + $0x610] sm:$0xff]
        %v1775 = vld [vmem:[#allocation2 + $0x618] sm:$0xff]
        %v1776 = vld [vmem:[#allocation2 + $0x620] sm:$0xff]
        %v1777 = vld [vmem:[#allocation2 + $0x628] sm:$0xff]
        %v1778 = vld [vmem:[#allocation2 + $0x630] sm:$0xff]
        %v1779 = vld [vmem:[#allocation2 + $0x638] sm:$0xff]
        %v1780 = vld [vmem:[#allocation2 + $0x640] sm:$0xff]
        %v1781 = vld [vmem:[#allocation2 + $0x648] sm:$0xff]
        %v1782 = vld [vmem:[#allocation2 + $0x650] sm:$0xff]
        %v1783 = vld [vmem:[#allocation2 + $0x658] sm:$0xff]
        %v1784 = vld [vmem:[#allocation2 + $0x660] sm:$0xff]
        %v1785 = vld [vmem:[#allocation2 + $0x668] sm:$0xff]
        %v1786 = vld [vmem:[#allocation2 + $0x670] sm:$0xff]
        %v1787 = vld [vmem:[#allocation2 + $0x678] sm:$0xff]
        %v1788 = vld [vmem:[#allocation2 + $0x680] sm:$0xff]
        %v1789 = vld [vmem:[#allocation2 + $0x688] sm:$0xff]
        %v1790 = vld [vmem:[#allocation2 + $0x690] sm:$0xff]
        %v1791 = vld [vmem:[#allocation2 + $0x698] sm:$0xff]
        %v1792 = vld [vmem:[#allocation2 + $0x6a0] sm:$0xff]
        %v1793 = vld [vmem:[#allocation2 + $0x6a8] sm:$0xff]
        %v1794 = vld [vmem:[#allocation2 + $0x6b0] sm:$0xff]
        %v1795 = vld [vmem:[#allocation2 + $0x6b8] sm:$0xff]
        %v1796 = vld [vmem:[#allocation2 + $0x6c0] sm:$0xff]
        %v1797 = vld [vmem:[#allocation2 + $0x6c8] sm:$0xff]
        %v1798 = vld [vmem:[#allocation2 + $0x6d0] sm:$0xff]
        %v1799 = vld [vmem:[#allocation2 + $0x6d8] sm:$0xff]
        %v1800 = vld [vmem:[#allocation2 + $0x6e0] sm:$0xff]
        %v1801 = vld [vmem:[#allocation2 + $0x6e8] sm:$0xff]
        %v1802 = vld [vmem:[#allocation2 + $0x6f0] sm:$0xff]
        %v1803 = vld [vmem:[#allocation2 + $0x6f8] sm:$0xff]
        %v1804 = vld [vmem:[#allocation2 + $0x700] sm:$0xff]
        %v1805 = vld [vmem:[#allocation2 + $0x708] sm:$0xff]
        %v1806 = vld [vmem:[#allocation2 + $0x710] sm:$0xff]
        %v1807 = vld [vmem:[#allocation2 + $0x718] sm:$0xff]
        %v1808 = vld [vmem:[#allocation2 + $0x720] sm:$0xff]
        %v1809 = vld [vmem:[#allocation2 + $0x728] sm:$0xff]
        %v1810 = vld [vmem:[#allocation2 + $0x730] sm:$0xff]
        %v1811 = vld [vmem:[#allocation2 + $0x738] sm:$0xff]
        %v1812 = vld [vmem:[#allocation2 + $0x740] sm:$0xff]
        %v1813 = vld [vmem:[#allocation2 + $0x748] sm:$0xff]
        %v1814 = vld [vmem:[#allocation2 + $0x750] sm:$0xff]
        %v1815 = vld [vmem:[#allocation2 + $0x758] sm:$0xff]
        %v1816 = vld [vmem:[#allocation2 + $0x760] sm:$0xff]
        %v1817 = vld [vmem:[#allocation2 + $0x768] sm:$0xff]
        %v1818 = vld [vmem:[#allocation2 + $0x770] sm:$0xff]
        %v1819 = vld [vmem:[#allocation2 + $0x778] sm:$0xff]
        %v1820 = vld [vmem:[#allocation2 + $0x780] sm:$0xff]
        %v1821 = vld [vmem:[#allocation2 + $0x788] sm:$0xff]
        %v1822 = vld [vmem:[#allocation2 + $0x790] sm:$0xff]
        %v1823 = vld [vmem:[#allocation2 + $0x798] sm:$0xff]
        %v1824 = vld [vmem:[#allocation2 + $0x7a0] sm:$0xff]
        %v1825 = vld [vmem:[#allocation2 + $0x7a8] sm:$0xff]
        %v1826 = vld [vmem:[#allocation2 + $0x7b0] sm:$0xff]
        %v1827 = vld [vmem:[#allocation2 + $0x7b8] sm:$0xff]
        %v1828 = vld [vmem:[#allocation2 + $0x7c0] sm:$0xff]
        %v1829 = vld [vmem:[#allocation2 + $0x7c8] sm:$0xff]
        %v1830 = vld [vmem:[#allocation2 + $0x7d0] sm:$0xff]
        %v1831 = vld [vmem:[#allocation2 + $0x7d8] sm:$0xff]
        %v1832 = vld [vmem:[#allocation2 + $0x7e0] sm:$0xff]
        %v1833 = vld [vmem:[#allocation2 + $0x7e8] sm:$0xff]
        %v1834 = vld [vmem:[#allocation2 + $0x7f0] sm:$0xff]
        %v1835 = vld [vmem:[#allocation2 + $0x7f8] sm:$0xff]
        %1836 = vmatprep.subr.mxu0 %v1581
        %1837 = vmatpush1.msra.mxu0 %v1580
        %1838 = vmatprep.subr.mxu0 %v1589
        %1839 = vmatpush1.msra.mxu0 %v1588
        %1840 = vmatprep.subr.mxu0 %v1597
        %1841 = vmatpush1.msra.mxu0 %v1596
        %1842 = vmatprep.subr.mxu0 %v1605
        %1843 = vmatpush1.msra.mxu0 %v1604
        %1844 = vmatprep.subr.mxu0 %v1613
        %1845 = vmatpush1.msra.mxu0 %v1612
        %1846 = vmatprep.subr.mxu0 %v1621
        %1847 = vmatpush1.msra.mxu0 %v1620
        %1848 = vmatprep.subr.mxu0 %v1629
        %1849 = vmatpush1.msra.mxu0 %v1628
        %1850 = vmatprep.subr.mxu0 %v1637
        %1851 = vmatpush1.msra.mxu0 %v1636
        %1852 = vmatprep.subr.mxu0 %v1645
        %1853 = vmatpush1.msra.mxu0 %v1644
        %1854 = vmatprep.subr.mxu0 %v1653
        %1855 = vmatpush1.msra.mxu0 %v1652
        %1856 = vmatprep.subr.mxu0 %v1661
        %1857 = vmatpush1.msra.mxu0 %v1660
        %1858 = vmatprep.subr.mxu0 %v1669
        %1859 = vmatpush1.msra.mxu0 %v1668
        %1860 = vmatprep.subr.mxu0 %v1677
        %1861 = vmatpush1.msra.mxu0 %v1676
        %1862 = vmatprep.subr.mxu0 %v1685
        %1863 = vmatpush1.msra.mxu0 %v1684
        %1864 = vmatprep.subr.mxu0 %v1693
        %1865 = vmatpush1.msra.mxu0 %v1692
        %1866 = vmatprep.subr.mxu0 %v1701
        %1867 = vmatpush1.msra.mxu0 %v1700
        %1868 = vmatprep.subr.mxu0 %v1709
        %1869 = vmatpush1.msra.mxu0 %v1708
        %1870 = vmatprep.subr.mxu0 %v1717
        %1871 = vmatpush1.msra.mxu0 %v1716
        %1872 = vmatprep.subr.mxu0 %v1725
        %1873 = vmatpush1.msra.mxu0 %v1724
        %1874 = vmatprep.subr.mxu0 %v1733
        %1875 = vmatpush1.msra.mxu0 %v1732
        %1876 = vmatprep.subr.mxu0 %v1741
        %1877 = vmatpush1.msra.mxu0 %v1740
        %1878 = vmatprep.subr.mxu0 %v1749
        %1879 = vmatpush1.msra.mxu0 %v1748
        %1880 = vmatprep.subr.mxu0 %v1757
        %1881 = vmatpush1.msra.mxu0 %v1756
        %1882 = vmatprep.subr.mxu0 %v1765
        %1883 = vmatpush1.msra.mxu0 %v1764
        %1884 = vmatprep.subr.mxu0 %v1773
        %1885 = vmatpush1.msra.mxu0 %v1772
        %1886 = vmatprep.subr.mxu0 %v1781
        %1887 = vmatpush1.msra.mxu0 %v1780
        %1888 = vmatprep.subr.mxu0 %v1789
        %1889 = vmatpush1.msra.mxu0 %v1788
        %1890 = vmatprep.subr.mxu0 %v1797
        %1891 = vmatpush1.msra.mxu0 %v1796
        %1892 = vmatprep.subr.mxu0 %v1805
        %1893 = vmatpush1.msra.mxu0 %v1804
        %1894 = vmatprep.subr.mxu0 %v1813
        %1895 = vmatpush1.msra.mxu0 %v1812
        %1896 = vmatprep.subr.mxu0 %v1821
        %1897 = vmatpush1.msra.mxu0 %v1820
        %1898 = vmatprep.subr.mxu0 %v1829
        %1899 = vmatpush1.msra.mxu0 %v1828
        %1900 = vmatprep.mubr.f32.mxu0 %v1577
        %1901 = vmatmul.mubr.f32.gmra.mrb[0].mxu0 %v1576
        %v1902 = vpop.f32.mrb[0].mxu0
        %v1903 = vadd.f32 0.0, %v1902
        %v1904 = vpop.f32.mrb[0].mxu0
        %v1905 = vadd.f32 0.0, %v1904
        %1906 = vmatprep.mubr.f32.mxu0 %v1579
        %1907 = vmatmul.mubr.f32.gmra.mrb[0].mxu0 %v1578
        %v1908 = vpop.f32.mrb[0].mxu0
        %v1909 = vadd.f32 0.0, %v1908
        %v1910 = vpop.f32.mrb[0].mxu0
        %v1911 = vadd.f32 0.0, %v1910
        %1912 = vdwg.mxu0
        %1913 = vmatprep.subr.mxu0 %v1583
        %1914 = vmatpush1.msra.mxu0 %v1582
        %1915 = vmatprep.subr.mxu0 %v1591
        %1916 = vmatpush1.msra.mxu0 %v1590
        %1917 = vmatprep.subr.mxu0 %v1599
        %1918 = vmatpush1.msra.mxu0 %v1598
        %1919 = vmatprep.subr.mxu0 %v1607
        %1920 = vmatpush1.msra.mxu0 %v1606
        %1921 = vmatprep.subr.mxu0 %v1615
        %1922 = vmatpush1.msra.mxu0 %v1614
        %1923 = vmatprep.subr.mxu0 %v1623
        %1924 = vmatpush1.msra.mxu0 %v1622
        %1925 = vmatprep.subr.mxu0 %v1631
        %1926 = vmatpush1.msra.mxu0 %v1630
        %1927 = vmatprep.subr.mxu0 %v1639
        %1928 = vmatpush1.msra.mxu0 %v1638
        %1929 = vmatprep.subr.mxu0 %v1647
        %1930 = vmatpush1.msra.mxu0 %v1646
        %1931 = vmatprep.subr.mxu0 %v1655
        %1932 = vmatpush1.msra.mxu0 %v1654
        %1933 = vmatprep.subr.mxu0 %v1663
        %1934 = vmatpush1.msra.mxu0 %v1662
        %1935 = vmatprep.subr.mxu0 %v1671
        %1936 = vmatpush1.msra.mxu0 %v1670
        %1937 = vmatprep.subr.mxu0 %v1679
        %1938 = vmatpush1.msra.mxu0 %v1678
        %1939 = vmatprep.subr.mxu0 %v1687
        %1940 = vmatpush1.msra.mxu0 %v1686
        %1941 = vmatprep.subr.mxu0 %v1695
        %1942 = vmatpush1.msra.mxu0 %v1694
        %1943 = vmatprep.subr.mxu0 %v1703
        %1944 = vmatpush1.msra.mxu0 %v1702
        %1945 = vmatprep.subr.mxu0 %v1711
        %1946 = vmatpush1.msra.mxu0 %v1710
        %1947 = vmatprep.subr.mxu0 %v1719
        %1948 = vmatpush1.msra.mxu0 %v1718
        %1949 = vmatprep.subr.mxu0 %v1727
        %1950 = vmatpush1.msra.mxu0 %v1726
        %1951 = vmatprep.subr.mxu0 %v1735
        %1952 = vmatpush1.msra.mxu0 %v1734
        %1953 = vmatprep.subr.mxu0 %v1743
        %1954 = vmatpush1.msra.mxu0 %v1742
        %1955 = vmatprep.subr.mxu0 %v1751
        %1956 = vmatpush1.msra.mxu0 %v1750
        %1957 = vmatprep.subr.mxu0 %v1759
        %1958 = vmatpush1.msra.mxu0 %v1758
        %1959 = vmatprep.subr.mxu0 %v1767
        %1960 = vmatpush1.msra.mxu0 %v1766
        %1961 = vmatprep.subr.mxu0 %v1775
        %1962 = vmatpush1.msra.mxu0 %v1774
        %1963 = vmatprep.subr.mxu0 %v1783
        %1964 = vmatpush1.msra.mxu0 %v1782
        %1965 = vmatprep.subr.mxu0 %v1791
        %1966 = vmatpush1.msra.mxu0 %v1790
        %1967 = vmatprep.subr.mxu0 %v1799
        %1968 = vmatpush1.msra.mxu0 %v1798
        %1969 = vmatprep.subr.mxu0 %v1807
        %1970 = vmatpush1.msra.mxu0 %v1806
        %1971 = vmatprep.subr.mxu0 %v1815
        %1972 = vmatpush1.msra.mxu0 %v1814
        %1973 = vmatprep.subr.mxu0 %v1823
        %1974 = vmatpush1.msra.mxu0 %v1822
        %1975 = vmatprep.subr.mxu0 %v1831
        %1976 = vmatpush1.msra.mxu0 %v1830
        %1977 = vmatprep.mubr.f32.mxu0 %v1577
        %1978 = vmatmul.mubr.f32.gmra.mrb[0].mxu0 %v1576
        %v1979 = vpop.f32.mrb[0].mxu0
        %v1980 = vadd.f32 0.0, %v1979
        %v1981 = vpop.f32.mrb[0].mxu0
        %v1982 = vadd.f32 0.0, %v1981
        %1983 = vmatprep.mubr.f32.mxu0 %v1579
        %1984 = vmatmul.mubr.f32.gmra.mrb[0].mxu0 %v1578
        %v1985 = vpop.f32.mrb[0].mxu0
        %v1986 = vadd.f32 0.0, %v1985
        %v1987 = vpop.f32.mrb[0].mxu0
        %v1988 = vadd.f32 0.0, %v1987
        %1989 = vdwg.mxu0
        %1990 = vmatprep.subr.mxu0 %v1585
        %1991 = vmatpush1.msra.mxu0 %v1584
        %1992 = vmatprep.subr.mxu0 %v1593
        %1993 = vmatpush1.msra.mxu0 %v1592
        %1994 = vmatprep.subr.mxu0 %v1601
        %1995 = vmatpush1.msra.mxu0 %v1600
        %1996 = vmatprep.subr.mxu0 %v1609
        %1997 = vmatpush1.msra.mxu0 %v1608
        %1998 = vmatprep.subr.mxu0 %v1617
        %1999 = vmatpush1.msra.mxu0 %v1616
        %2000 = vmatprep.subr.mxu0 %v1625
        %2001 = vmatpush1.msra.mxu0 %v1624
        %2002 = vmatprep.subr.mxu0 %v1633
        %2003 = vmatpush1.msra.mxu0 %v1632
        %2004 = vmatprep.subr.mxu0 %v1641
        %2005 = vmatpush1.msra.mxu0 %v1640
        %2006 = vmatprep.subr.mxu0 %v1649
        %2007 = vmatpush1.msra.mxu0 %v1648
        %2008 = vmatprep.subr.mxu0 %v1657
        %2009 = vmatpush1.msra.mxu0 %v1656
        %2010 = vmatprep.subr.mxu0 %v1665
        %2011 = vmatpush1.msra.mxu0 %v1664
        %2012 = vmatprep.subr.mxu0 %v1673
        %2013 = vmatpush1.msra.mxu0 %v1672
        %2014 = vmatprep.subr.mxu0 %v1681
        %2015 = vmatpush1.msra.mxu0 %v1680
        %2016 = vmatprep.subr.mxu0 %v1689
        %2017 = vmatpush1.msra.mxu0 %v1688
        %2018 = vmatprep.subr.mxu0 %v1697
        %2019 = vmatpush1.msra.mxu0 %v1696
        %2020 = vmatprep.subr.mxu0 %v1705
        %2021 = vmatpush1.msra.mxu0 %v1704
        %2022 = vmatprep.subr.mxu0 %v1713
        %2023 = vmatpush1.msra.mxu0 %v1712
        %2024 = vmatprep.subr.mxu0 %v1721
        %2025 = vmatpush1.msra.mxu0 %v1720
        %2026 = vmatprep.subr.mxu0 %v1729
        %2027 = vmatpush1.msra.mxu0 %v1728
        %2028 = vmatprep.subr.mxu0 %v1737
        %2029 = vmatpush1.msra.mxu0 %v1736
        %2030 = vmatprep.subr.mxu0 %v1745
        %2031 = vmatpush1.msra.mxu0 %v1744
        %2032 = vmatprep.subr.mxu0 %v1753
        %2033 = vmatpush1.msra.mxu0 %v1752
        %2034 = vmatprep.subr.mxu0 %v1761
        %2035 = vmatpush1.msra.mxu0 %v1760
        %2036 = vmatprep.subr.mxu0 %v1769
        %2037 = vmatpush1.msra.mxu0 %v1768
        %2038 = vmatprep.subr.mxu0 %v1777
        %2039 = vmatpush1.msra.mxu0 %v1776
        %2040 = vmatprep.subr.mxu0 %v1785
        %2041 = vmatpush1.msra.mxu0 %v1784
        %2042 = vmatprep.subr.mxu0 %v1793
        %2043 = vmatpush1.msra.mxu0 %v1792
        %2044 = vmatprep.subr.mxu0 %v1801
        %2045 = vmatpush1.msra.mxu0 %v1800
        %2046 = vmatprep.subr.mxu0 %v1809
        %2047 = vmatpush1.msra.mxu0 %v1808
        %2048 = vmatprep.subr.mxu0 %v1817
        %2049 = vmatpush1.msra.mxu0 %v1816
        %2050 = vmatprep.subr.mxu0 %v1825
        %2051 = vmatpush1.msra.mxu0 %v1824
        %2052 = vmatprep.subr.mxu0 %v1833
        %2053 = vmatpush1.msra.mxu0 %v1832
        %2054 = vmatprep.mubr.f32.mxu0 %v1577
        %2055 = vmatmul.mubr.f32.gmra.mrb[0].mxu0 %v1576
        %v2056 = vpop.f32.mrb[0].mxu0
        %v2057 = vadd.f32 0.0, %v2056
        %v2058 = vpop.f32.mrb[0].mxu0
        %v2059 = vadd.f32 0.0, %v2058
        %2060 = vmatprep.mubr.f32.mxu0 %v1579
        %2061 = vmatmul.mubr.f32.gmra.mrb[0].mxu0 %v1578
        %v2062 = vpop.f32.mrb[0].mxu0
        %v2063 = vadd.f32 0.0, %v2062
        %v2064 = vpop.f32.mrb[0].mxu0
        %v2065 = vadd.f32 0.0, %v2064
        %2066 = vdwg.mxu0
        %2067 = vmatprep.subr.mxu0 %v1587
        %2068 = vmatpush1.msra.mxu0 %v1586
        %2069 = vmatprep.subr.mxu0 %v1595
        %2070 = vmatpush1.msra.mxu0 %v1594
        %2071 = vmatprep.subr.mxu0 %v1603
        %2072 = vmatpush1.msra.mxu0 %v1602
        %2073 = vmatprep.subr.mxu0 %v1611
        %2074 = vmatpush1.msra.mxu0 %v1610
        %2075 = vmatprep.subr.mxu0 %v1619
        %2076 = vmatpush1.msra.mxu0 %v1618
        %2077 = vmatprep.subr.mxu0 %v1627
        %2078 = vmatpush1.msra.mxu0 %v1626
        %2079 = vmatprep.subr.mxu0 %v1635
        %2080 = vmatpush1.msra.mxu0 %v1634
        %2081 = vmatprep.subr.mxu0 %v1643
        %2082 = vmatpush1.msra.mxu0 %v1642
        %2083 = vmatprep.subr.mxu0 %v1651
        %2084 = vmatpush1.msra.mxu0 %v1650
        %2085 = vmatprep.subr.mxu0 %v1659
        %2086 = vmatpush1.msra.mxu0 %v1658
        %2087 = vmatprep.subr.mxu0 %v1667
        %2088 = vmatpush1.msra.mxu0 %v1666
        %2089 = vmatprep.subr.mxu0 %v1675
        %2090 = vmatpush1.msra.mxu0 %v1674
        %2091 = vmatprep.subr.mxu0 %v1683
        %2092 = vmatpush1.msra.mxu0 %v1682
        %2093 = vmatprep.subr.mxu0 %v1691
        %2094 = vmatpush1.msra.mxu0 %v1690
        %2095 = vmatprep.subr.mxu0 %v1699
        %2096 = vmatpush1.msra.mxu0 %v1698
        %2097 = vmatprep.subr.mxu0 %v1707
        %2098 = vmatpush1.msra.mxu0 %v1706
        %2099 = vmatprep.subr.mxu0 %v1715
        %2100 = vmatpush1.msra.mxu0 %v1714
        %2101 = vmatprep.subr.mxu0 %v1723
        %2102 = vmatpush1.msra.mxu0 %v1722
        %2103 = vmatprep.subr.mxu0 %v1731
        %2104 = vmatpush1.msra.mxu0 %v1730
        %2105 = vmatprep.subr.mxu0 %v1739
        %2106 = vmatpush1.msra.mxu0 %v1738
        %2107 = vmatprep.subr.mxu0 %v1747
        %2108 = vmatpush1.msra.mxu0 %v1746
        %2109 = vmatprep.subr.mxu0 %v1755
        %2110 = vmatpush1.msra.mxu0 %v1754
        %2111 = vmatprep.subr.mxu0 %v1763
        %2112 = vmatpush1.msra.mxu0 %v1762
        %2113 = vmatprep.subr.mxu0 %v1771
        %2114 = vmatpush1.msra.mxu0 %v1770
        %2115 = vmatprep.subr.mxu0 %v1779
        %2116 = vmatpush1.msra.mxu0 %v1778
        %2117 = vmatprep.subr.mxu0 %v1787
        %2118 = vmatpush1.msra.mxu0 %v1786
        %2119 = vmatprep.subr.mxu0 %v1795
        %2120 = vmatpush1.msra.mxu0 %v1794
        %2121 = vmatprep.subr.mxu0 %v1803
        %2122 = vmatpush1.msra.mxu0 %v1802
        %2123 = vmatprep.subr.mxu0 %v1811
        %2124 = vmatpush1.msra.mxu0 %v1810
        %2125 = vmatprep.subr.mxu0 %v1819
        %2126 = vmatpush1.msra.mxu0 %v1818
        %2127 = vmatprep.subr.mxu0 %v1827
        %2128 = vmatpush1.msra.mxu0 %v1826
        %2129 = vmatprep.subr.mxu0 %v1835
        %2130 = vmatpush1.msra.mxu0 %v1834
        %2131 = vmatprep.mubr.f32.mxu0 %v1577
        %2132 = vmatmul.mubr.f32.gmra.mrb[0].mxu0 %v1576
        %v2133 = vpop.f32.mrb[0].mxu0
        %v2134 = vadd.f32 0.0, %v2133
        %v2135 = vpop.f32.mrb[0].mxu0
        %v2136 = vadd.f32 0.0, %v2135
        %2137 = vmatprep.mubr.f32.mxu0 %v1579
        %2138 = vmatmul.mubr.f32.gmra.mrb[0].mxu0 %v1578
        %v2139 = vpop.f32.mrb[0].mxu0
        %v2140 = vadd.f32 0.0, %v2139
        %v2141 = vpop.f32.mrb[0].mxu0
        %v2142 = vadd.f32 0.0, %v2141
        %2143 = vdwg.mxu0
        %v2144 = vld [vmem:[%s5] sm:$0xff]
        %v2145 = vld [vmem:[%s5 + $0x8] sm:$0xff]
        %v2146 = vld [vmem:[%s5 + $0x10] sm:$0xff]
        %v2147 = vld [vmem:[%s5 + $0x18] sm:$0xff]
        %v2148 = vld [vmem:[%s6] sm:$0xff]
        %v2149 = vld [vmem:[%s11] sm:$0x1f]
        %v2150 = vld [vmem:[%s11 + $0x8] sm:$0x1f]
        %v2151 = vld [vmem:[%s11 + $0x10] sm:$0x1f]
        %v2152 = vld [vmem:[%s11 + $0x18] sm:$0x1f]
        %v2153 = vld [vmem:[%s11 + $0x20] sm:$0x1f]
        %v2154 = vld [vmem:[%s11 + $0x28] sm:$0x1f]
        %v2155 = vld [vmem:[%s11 + $0x30] sm:$0x1f]
        %v2156 = vld [vmem:[%s11 + $0x38] sm:$0x1f]
        %2173 = vrot.lane.b32.xlu0 %v1903, 66
        %v2174 = vpop.permute.xlu0 %2173
        %2175 = vrot.lane.b32.xlu0 %v1905, 66
        %v2176 = vpop.permute.xlu0 %2175
        %2177 = vrot.lane.b32.xlu0 %v1980, 66
        %v2178 = vpop.permute.xlu0 %2177
        %2179 = vrot.lane.b32.xlu0 %v1982, 66
        %v2180 = vpop.permute.xlu0 %2179
        %2181 = vrot.lane.b32.xlu0 %v2057, 66
        %v2182 = vpop.permute.xlu0 %2181
        %2183 = vrot.lane.b32.xlu0 %v2059, 66
        %v2184 = vpop.permute.xlu0 %2183
        %2185 = vrot.lane.b32.xlu0 %v2134, 66
        %v2186 = vpop.permute.xlu0 %2185
        %2187 = vrot.lane.b32.xlu0 %v2136, 66
        %v2188 = vpop.permute.xlu0 %2187
        %2189 = vrot.lane.b32.xlu0 %v1909, 66
        %v2190 = vpop.permute.xlu0 %2189
        %2191 = vrot.lane.b32.xlu0 %v1911, 66
        %v2192 = vpop.permute.xlu0 %2191
        %2193 = vrot.lane.b32.xlu0 %v1986, 66
        %v2194 = vpop.permute.xlu0 %2193
        %2195 = vrot.lane.b32.xlu0 %v1988, 66
        %v2196 = vpop.permute.xlu0 %2195
        %2197 = vrot.lane.b32.xlu0 %v2063, 66
        %v2198 = vpop.permute.xlu0 %2197
        %2199 = vrot.lane.b32.xlu0 %v2065, 66
        %v2200 = vpop.permute.xlu0 %2199
        %2201 = vrot.lane.b32.xlu0 %v2140, 66
        %v2202 = vpop.permute.xlu0 %2201
        %2203 = vrot.lane.b32.xlu0 %v2142, 66
        %v2204 = vpop.permute.xlu0 %2203
        %vm2205 = vcmask 539648
        %v2206 = vsel %vm2205, %v2174, %v2176
        %v2207 = vsel %vm2205, %v2176, %v2178
        %v2208 = vsel %vm2205, %v2178, %v2180
        %v2209 = vsel %vm2205, %v2180, %v2182
        %v2210 = vsel %vm2205, %v2182, %v2184
        %v2211 = vsel %vm2205, %v2184, %v2186
        %v2212 = vsel %vm2205, %v2186, %v2188
        %v2213 = vsel %vm2205, %v2190, %v2192
        %v2214 = vsel %vm2205, %v2192, %v2194
        %v2215 = vsel %vm2205, %v2194, %v2196
        %v2216 = vsel %vm2205, %v2196, %v2198
        %v2217 = vsel %vm2205, %v2198, %v2200
        %v2218 = vsel %vm2205, %v2200, %v2202
        %v2219 = vsel %vm2205, %v2202, %v2204
        %v2238 = vsel %vm2205, 0.0, %v2174
        %v2239 = vsel %vm2205, 0.0, %v2190
        %v2240 = vsel %vm2205, %v2188, 0.0
        %v2241 = vsel %vm2205, %v2204, 0.0
        %v2242 = vlaneseq
        %v2243 = vshrl.u32 %v2242, 7
        %v2244 = vsub.s32 0, %v2243
        %v2245 = vrot.slane %v2149, %v2244
        %v2246 = vlaneseq
        %v2247 = vshrl.u32 %v2246, 7
        %v2248 = vsub.s32 0, %v2247
        %v2249 = vrot.slane %v2150, %v2248
        %v2250 = vlaneseq
        %v2251 = vshrl.u32 %v2250, 7
        %v2252 = vsub.s32 0, %v2251
        %v2253 = vrot.slane %v2151, %v2252
        %v2254 = vlaneseq
        %v2255 = vshrl.u32 %v2254, 7
        %v2256 = vsub.s32 0, %v2255
        %v2257 = vrot.slane %v2152, %v2256
        %v2258 = vlaneseq
        %v2259 = vshrl.u32 %v2258, 7
        %v2260 = vsub.s32 0, %v2259
        %v2261 = vrot.slane %v2153, %v2260
        %v2262 = vlaneseq
        %v2263 = vshrl.u32 %v2262, 7
        %v2264 = vsub.s32 0, %v2263
        %v2265 = vrot.slane %v2154, %v2264
        %v2266 = vlaneseq
        %v2267 = vshrl.u32 %v2266, 7
        %v2268 = vsub.s32 0, %v2267
        %v2269 = vrot.slane %v2155, %v2268
        %v2270 = vlaneseq
        %v2271 = vshrl.u32 %v2270, 7
        %v2272 = vsub.s32 0, %v2271
        %v2273 = vrot.slane %v2156, %v2272
        %v2274 = vmul.f32 %v2238, %v2245
        %v2275 = vmul.f32 %v2206, %v2249
        %v2276 = vmul.f32 %v2207, %v2253
        %v2277 = vmul.f32 %v2208, %v2257
        %v2278 = vmul.f32 %v2209, %v2261
        %v2279 = vmul.f32 %v2210, %v2265
        %v2280 = vmul.f32 %v2211, %v2269
        %v2281 = vmul.f32 %v2212, %v2273
        %v2282 = vmul.f32 %v2239, %v2245
        %v2283 = vmul.f32 %v2213, %v2249
        %v2284 = vmul.f32 %v2214, %v2253
        %v2285 = vmul.f32 %v2215, %v2257
        %v2286 = vmul.f32 %v2216, %v2261
        %v2287 = vmul.f32 %v2217, %v2265
        %v2288 = vmul.f32 %v2218, %v2269
        %v2289 = vmul.f32 %v2219, %v2273
        %v2290 = vlaneseq
        %v2291 = vshrl.u32 %v2290, 7
        %v2292 = vsub.s32 1, %v2291
        %v2293 = vrot.slane %v2149, %v2292
        %v2294 = vlaneseq
        %v2295 = vshrl.u32 %v2294, 7
        %v2296 = vsub.s32 1, %v2295
        %v2297 = vrot.slane %v2150, %v2296
        %v2298 = vlaneseq
        %v2299 = vshrl.u32 %v2298, 7
        %v2300 = vsub.s32 1, %v2299
        %v2301 = vrot.slane %v2151, %v2300
        %v2302 = vlaneseq
        %v2303 = vshrl.u32 %v2302, 7
        %v2304 = vsub.s32 1, %v2303
        %v2305 = vrot.slane %v2152, %v2304
        %v2306 = vlaneseq
        %v2307 = vshrl.u32 %v2306, 7
        %v2308 = vsub.s32 1, %v2307
        %v2309 = vrot.slane %v2153, %v2308
        %v2310 = vlaneseq
        %v2311 = vshrl.u32 %v2310, 7
        %v2312 = vsub.s32 1, %v2311
        %v2313 = vrot.slane %v2154, %v2312
        %v2314 = vlaneseq
        %v2315 = vshrl.u32 %v2314, 7
        %v2316 = vsub.s32 1, %v2315
        %v2317 = vrot.slane %v2155, %v2316
        %v2318 = vlaneseq
        %v2319 = vshrl.u32 %v2318, 7
        %v2320 = vsub.s32 1, %v2319
        %v2321 = vrot.slane %v2156, %v2320
        %2330 = vrot.lane.b32.xlu0 %v2293, 1
        %v2331 = vpop.permute.xlu0 %2330
        %2332 = vrot.lane.b32.xlu0 %v2297, 1
        %v2333 = vpop.permute.xlu0 %2332
        %2334 = vrot.lane.b32.xlu0 %v2301, 1
        %v2335 = vpop.permute.xlu0 %2334
        %2336 = vrot.lane.b32.xlu0 %v2305, 1
        %v2337 = vpop.permute.xlu0 %2336
        %2338 = vrot.lane.b32.xlu0 %v2309, 1
        %v2339 = vpop.permute.xlu0 %2338
        %2340 = vrot.lane.b32.xlu0 %v2313, 1
        %v2341 = vpop.permute.xlu0 %2340
        %2342 = vrot.lane.b32.xlu0 %v2317, 1
        %v2343 = vpop.permute.xlu0 %2342
        %2344 = vrot.lane.b32.xlu0 %v2321, 1
        %v2345 = vpop.permute.xlu0 %2344
        %v2346 = vsel %vm858, %v2331, %v2333
        %v2347 = vsel %vm858, %v2333, %v2335
        %v2348 = vsel %vm858, %v2335, %v2337
        %v2349 = vsel %vm858, %v2337, %v2339
        %v2350 = vsel %vm858, %v2339, %v2341
        %v2351 = vsel %vm858, %v2341, %v2343
        %v2352 = vsel %vm858, %v2343, %v2345
        %v2362 = vmul.f32 %v2238, %v2331
        %v2363 = vmul.f32 %v2206, %v2346
        %v2364 = vmul.f32 %v2207, %v2347
        %v2365 = vmul.f32 %v2208, %v2348
        %v2366 = vmul.f32 %v2209, %v2349
        %v2367 = vmul.f32 %v2210, %v2350
        %v2368 = vmul.f32 %v2211, %v2351
        %v2369 = vmul.f32 %v2212, %v2352
        %v2370 = vmul.f32 %v2240, %v2345
        %v2371 = vmul.f32 %v2239, %v2331
        %v2372 = vmul.f32 %v2213, %v2346
        %v2373 = vmul.f32 %v2214, %v2347
        %v2374 = vmul.f32 %v2215, %v2348
        %v2375 = vmul.f32 %v2216, %v2349
        %v2376 = vmul.f32 %v2217, %v2350
        %v2377 = vmul.f32 %v2218, %v2351
        %v2378 = vmul.f32 %v2219, %v2352
        %v2379 = vmul.f32 %v2241, %v2345
        %v2380 = vlaneseq
        %v2381 = vshrl.u32 %v2380, 7
        %v2382 = vsub.s32 3, %v2381
        %v2383 = vrot.slane %v2149, %v2382
        %v2384 = vlaneseq
        %v2385 = vshrl.u32 %v2384, 7
        %v2386 = vsub.s32 3, %v2385
        %v2387 = vrot.slane %v2150, %v2386
        %v2388 = vlaneseq
        %v2389 = vshrl.u32 %v2388, 7
        %v2390 = vsub.s32 3, %v2389
        %v2391 = vrot.slane %v2151, %v2390
        %v2392 = vlaneseq
        %v2393 = vshrl.u32 %v2392, 7
        %v2394 = vsub.s32 3, %v2393
        %v2395 = vrot.slane %v2152, %v2394
        %v2396 = vlaneseq
        %v2397 = vshrl.u32 %v2396, 7
        %v2398 = vsub.s32 3, %v2397
        %v2399 = vrot.slane %v2153, %v2398
        %v2400 = vlaneseq
        %v2401 = vshrl.u32 %v2400, 7
        %v2402 = vsub.s32 3, %v2401
        %v2403 = vrot.slane %v2154, %v2402
        %v2404 = vlaneseq
        %v2405 = vshrl.u32 %v2404, 7
        %v2406 = vsub.s32 3, %v2405
        %v2407 = vrot.slane %v2155, %v2406
        %v2408 = vlaneseq
        %v2409 = vshrl.u32 %v2408, 7
        %v2410 = vsub.s32 3, %v2409
        %v2411 = vrot.slane %v2156, %v2410
        %2420 = vrot.lane.b32.xlu0 %v2383, 3
        %v2421 = vpop.permute.xlu0 %2420
        %2422 = vrot.lane.b32.xlu0 %v2387, 3
        %v2423 = vpop.permute.xlu0 %2422
        %2424 = vrot.lane.b32.xlu0 %v2391, 3
        %v2425 = vpop.permute.xlu0 %2424
        %2426 = vrot.lane.b32.xlu0 %v2395, 3
        %v2427 = vpop.permute.xlu0 %2426
        %2428 = vrot.lane.b32.xlu0 %v2399, 3
        %v2429 = vpop.permute.xlu0 %2428
        %2430 = vrot.lane.b32.xlu0 %v2403, 3
        %v2431 = vpop.permute.xlu0 %2430
        %2432 = vrot.lane.b32.xlu0 %v2407, 3
        %v2433 = vpop.permute.xlu0 %2432
        %2434 = vrot.lane.b32.xlu0 %v2411, 3
        %v2435 = vpop.permute.xlu0 %2434
        %v2436 = vsel %vm880, %v2421, %v2423
        %v2437 = vsel %vm880, %v2423, %v2425
        %v2438 = vsel %vm880, %v2425, %v2427
        %v2439 = vsel %vm880, %v2427, %v2429
        %v2440 = vsel %vm880, %v2429, %v2431
        %v2441 = vsel %vm880, %v2431, %v2433
        %v2442 = vsel %vm880, %v2433, %v2435
        %v2452 = vmul.f32 %v2238, %v2421
        %v2453 = vmul.f32 %v2206, %v2436
        %v2454 = vmul.f32 %v2207, %v2437
        %v2455 = vmul.f32 %v2208, %v2438
        %v2456 = vmul.f32 %v2209, %v2439
        %v2457 = vmul.f32 %v2210, %v2440
        %v2458 = vmul.f32 %v2211, %v2441
        %v2459 = vmul.f32 %v2212, %v2442
        %v2460 = vmul.f32 %v2240, %v2435
        %v2461 = vmul.f32 %v2239, %v2421
        %v2462 = vmul.f32 %v2213, %v2436
        %v2463 = vmul.f32 %v2214, %v2437
        %v2464 = vmul.f32 %v2215, %v2438
        %v2465 = vmul.f32 %v2216, %v2439
        %v2466 = vmul.f32 %v2217, %v2440
        %v2467 = vmul.f32 %v2218, %v2441
        %v2468 = vmul.f32 %v2219, %v2442
        %v2469 = vmul.f32 %v2241, %v2435
        %v2470 = vlaneseq
        %v2471 = vshrl.u32 %v2470, 7
        %v2472 = vsub.s32 4, %v2471
        %v2473 = vrot.slane %v2149, %v2472
        %v2474 = vlaneseq
        %v2475 = vshrl.u32 %v2474, 7
        %v2476 = vsub.s32 4, %v2475
        %v2477 = vrot.slane %v2150, %v2476
        %v2478 = vlaneseq
        %v2479 = vshrl.u32 %v2478, 7
        %v2480 = vsub.s32 4, %v2479
        %v2481 = vrot.slane %v2151, %v2480
        %v2482 = vlaneseq
        %v2483 = vshrl.u32 %v2482, 7
        %v2484 = vsub.s32 4, %v2483
        %v2485 = vrot.slane %v2152, %v2484
        %v2486 = vlaneseq
        %v2487 = vshrl.u32 %v2486, 7
        %v2488 = vsub.s32 4, %v2487
        %v2489 = vrot.slane %v2153, %v2488
        %v2490 = vlaneseq
        %v2491 = vshrl.u32 %v2490, 7
        %v2492 = vsub.s32 4, %v2491
        %v2493 = vrot.slane %v2154, %v2492
        %v2494 = vlaneseq
        %v2495 = vshrl.u32 %v2494, 7
        %v2496 = vsub.s32 4, %v2495
        %v2497 = vrot.slane %v2155, %v2496
        %v2498 = vlaneseq
        %v2499 = vshrl.u32 %v2498, 7
        %v2500 = vsub.s32 4, %v2499
        %v2501 = vrot.slane %v2156, %v2500
        %2510 = vrot.lane.b32.xlu0 %v2473, 4
        %v2511 = vpop.permute.xlu0 %2510
        %2512 = vrot.lane.b32.xlu0 %v2477, 4
        %v2513 = vpop.permute.xlu0 %2512
        %2514 = vrot.lane.b32.xlu0 %v2481, 4
        %v2515 = vpop.permute.xlu0 %2514
        %2516 = vrot.lane.b32.xlu0 %v2485, 4
        %v2517 = vpop.permute.xlu0 %2516
        %2518 = vrot.lane.b32.xlu0 %v2489, 4
        %v2519 = vpop.permute.xlu0 %2518
        %2520 = vrot.lane.b32.xlu0 %v2493, 4
        %v2521 = vpop.permute.xlu0 %2520
        %2522 = vrot.lane.b32.xlu0 %v2497, 4
        %v2523 = vpop.permute.xlu0 %2522
        %2524 = vrot.lane.b32.xlu0 %v2501, 4
        %v2525 = vpop.permute.xlu0 %2524
        %v2526 = vsel %vm902, %v2511, %v2513
        %v2527 = vsel %vm902, %v2513, %v2515
        %v2528 = vsel %vm902, %v2515, %v2517
        %v2529 = vsel %vm902, %v2517, %v2519
        %v2530 = vsel %vm902, %v2519, %v2521
        %v2531 = vsel %vm902, %v2521, %v2523
        %v2532 = vsel %vm902, %v2523, %v2525
        %v2542 = vmul.f32 %v2238, %v2511
        %v2543 = vmul.f32 %v2206, %v2526
        %v2544 = vmul.f32 %v2207, %v2527
        %v2545 = vmul.f32 %v2208, %v2528
        %v2546 = vmul.f32 %v2209, %v2529
        %v2547 = vmul.f32 %v2210, %v2530
        %v2548 = vmul.f32 %v2211, %v2531
        %v2549 = vmul.f32 %v2212, %v2532
        %v2550 = vmul.f32 %v2240, %v2525
        %v2551 = vmul.f32 %v2239, %v2511
        %v2552 = vmul.f32 %v2213, %v2526
        %v2553 = vmul.f32 %v2214, %v2527
        %v2554 = vmul.f32 %v2215, %v2528
        %v2555 = vmul.f32 %v2216, %v2529
        %v2556 = vmul.f32 %v2217, %v2530
        %v2557 = vmul.f32 %v2218, %v2531
        %v2558 = vmul.f32 %v2219, %v2532
        %v2559 = vmul.f32 %v2241, %v2525
        %2568 = vrot.lane.b32.xlu0 %v2245, 32
        %v2569 = vpop.permute.xlu0 %2568
        %2570 = vrot.lane.b32.xlu0 %v2249, 32
        %v2571 = vpop.permute.xlu0 %2570
        %2572 = vrot.lane.b32.xlu0 %v2253, 32
        %v2573 = vpop.permute.xlu0 %2572
        %2574 = vrot.lane.b32.xlu0 %v2257, 32
        %v2575 = vpop.permute.xlu0 %2574
        %2576 = vrot.lane.b32.xlu0 %v2261, 32
        %v2577 = vpop.permute.xlu0 %2576
        %2578 = vrot.lane.b32.xlu0 %v2265, 32
        %v2579 = vpop.permute.xlu0 %2578
        %2580 = vrot.lane.b32.xlu0 %v2269, 32
        %v2581 = vpop.permute.xlu0 %2580
        %2582 = vrot.lane.b32.xlu0 %v2273, 32
        %v2583 = vpop.permute.xlu0 %2582
        %v2584 = vsel %vm964, %v2569, %v2571
        %v2585 = vsel %vm964, %v2571, %v2573
        %v2586 = vsel %vm964, %v2573, %v2575
        %v2587 = vsel %vm964, %v2575, %v2577
        %v2588 = vsel %vm964, %v2577, %v2579
        %v2589 = vsel %vm964, %v2579, %v2581
        %v2590 = vsel %vm964, %v2581, %v2583
        %v2600 = vmul.f32 %v2238, %v2569
        %v2601 = vmul.f32 %v2206, %v2584
        %v2602 = vmul.f32 %v2207, %v2585
        %v2603 = vmul.f32 %v2208, %v2586
        %v2604 = vmul.f32 %v2209, %v2587
        %v2605 = vmul.f32 %v2210, %v2588
        %v2606 = vmul.f32 %v2211, %v2589
        %v2607 = vmul.f32 %v2212, %v2590
        %v2608 = vmul.f32 %v2240, %v2583
        %v2609 = vmul.f32 %v2239, %v2569
        %v2610 = vmul.f32 %v2213, %v2584
        %v2611 = vmul.f32 %v2214, %v2585
        %v2612 = vmul.f32 %v2215, %v2586
        %v2613 = vmul.f32 %v2216, %v2587
        %v2614 = vmul.f32 %v2217, %v2588
        %v2615 = vmul.f32 %v2218, %v2589
        %v2616 = vmul.f32 %v2219, %v2590
        %v2617 = vmul.f32 %v2241, %v2583
        %2618 = vrot.lane.b32.xlu0 %v2293, 33
        %v2619 = vpop.permute.xlu0 %2618
        %2620 = vrot.lane.b32.xlu0 %v2297, 33
        %v2621 = vpop.permute.xlu0 %2620
        %2622 = vrot.lane.b32.xlu0 %v2301, 33
        %v2623 = vpop.permute.xlu0 %2622
        %2624 = vrot.lane.b32.xlu0 %v2305, 33
        %v2625 = vpop.permute.xlu0 %2624
        %2626 = vrot.lane.b32.xlu0 %v2309, 33
        %v2627 = vpop.permute.xlu0 %2626
        %2628 = vrot.lane.b32.xlu0 %v2313, 33
        %v2629 = vpop.permute.xlu0 %2628
        %2630 = vrot.lane.b32.xlu0 %v2317, 33
        %v2631 = vpop.permute.xlu0 %2630
        %2632 = vrot.lane.b32.xlu0 %v2321, 33
        %v2633 = vpop.permute.xlu0 %2632
        %v2634 = vsel %vm976, %v2619, %v2621
        %v2635 = vsel %vm976, %v2621, %v2623
        %v2636 = vsel %vm976, %v2623, %v2625
        %v2637 = vsel %vm976, %v2625, %v2627
        %v2638 = vsel %vm976, %v2627, %v2629
        %v2639 = vsel %vm976, %v2629, %v2631
        %v2640 = vsel %vm976, %v2631, %v2633
        %v2650 = vmul.f32 %v2238, %v2619
        %v2651 = vmul.f32 %v2206, %v2634
        %v2652 = vmul.f32 %v2207, %v2635
        %v2653 = vmul.f32 %v2208, %v2636
        %v2654 = vmul.f32 %v2209, %v2637
        %v2655 = vmul.f32 %v2210, %v2638
        %v2656 = vmul.f32 %v2211, %v2639
        %v2657 = vmul.f32 %v2212, %v2640
        %v2658 = vmul.f32 %v2240, %v2633
        %v2659 = vmul.f32 %v2239, %v2619
        %v2660 = vmul.f32 %v2213, %v2634
        %v2661 = vmul.f32 %v2214, %v2635
        %v2662 = vmul.f32 %v2215, %v2636
        %v2663 = vmul.f32 %v2216, %v2637
        %v2664 = vmul.f32 %v2217, %v2638
        %v2665 = vmul.f32 %v2218, %v2639
        %v2666 = vmul.f32 %v2219, %v2640
        %v2667 = vmul.f32 %v2241, %v2633
        %2668 = vrot.lane.b32.xlu0 %v2383, 35
        %v2669 = vpop.permute.xlu0 %2668
        %2670 = vrot.lane.b32.xlu0 %v2387, 35
        %v2671 = vpop.permute.xlu0 %2670
        %2672 = vrot.lane.b32.xlu0 %v2391, 35
        %v2673 = vpop.permute.xlu0 %2672
        %2674 = vrot.lane.b32.xlu0 %v2395, 35
        %v2675 = vpop.permute.xlu0 %2674
        %2676 = vrot.lane.b32.xlu0 %v2399, 35
        %v2677 = vpop.permute.xlu0 %2676
        %2678 = vrot.lane.b32.xlu0 %v2403, 35
        %v2679 = vpop.permute.xlu0 %2678
        %2680 = vrot.lane.b32.xlu0 %v2407, 35
        %v2681 = vpop.permute.xlu0 %2680
        %2682 = vrot.lane.b32.xlu0 %v2411, 35
        %v2683 = vpop.permute.xlu0 %2682
        %v2684 = vsel %vm988, %v2669, %v2671
        %v2685 = vsel %vm988, %v2671, %v2673
        %v2686 = vsel %vm988, %v2673, %v2675
        %v2687 = vsel %vm988, %v2675, %v2677
        %v2688 = vsel %vm988, %v2677, %v2679
        %v2689 = vsel %vm988, %v2679, %v2681
        %v2690 = vsel %vm988, %v2681, %v2683
        %v2700 = vmul.f32 %v2238, %v2669
        %v2701 = vmul.f32 %v2206, %v2684
        %v2702 = vmul.f32 %v2207, %v2685
        %v2703 = vmul.f32 %v2208, %v2686
        %v2704 = vmul.f32 %v2209, %v2687
        %v2705 = vmul.f32 %v2210, %v2688
        %v2706 = vmul.f32 %v2211, %v2689
        %v2707 = vmul.f32 %v2212, %v2690
        %v2708 = vmul.f32 %v2240, %v2683
        %v2709 = vmul.f32 %v2239, %v2669
        %v2710 = vmul.f32 %v2213, %v2684
        %v2711 = vmul.f32 %v2214, %v2685
        %v2712 = vmul.f32 %v2215, %v2686
        %v2713 = vmul.f32 %v2216, %v2687
        %v2714 = vmul.f32 %v2217, %v2688
        %v2715 = vmul.f32 %v2218, %v2689
        %v2716 = vmul.f32 %v2219, %v2690
        %v2717 = vmul.f32 %v2241, %v2683
        %2718 = vrot.lane.b32.xlu0 %v2473, 36
        %v2719 = vpop.permute.xlu0 %2718
        %2720 = vrot.lane.b32.xlu0 %v2477, 36
        %v2721 = vpop.permute.xlu0 %2720
        %2722 = vrot.lane.b32.xlu0 %v2481, 36
        %v2723 = vpop.permute.xlu0 %2722
        %2724 = vrot.lane.b32.xlu0 %v2485, 36
        %v2725 = vpop.permute.xlu0 %2724
        %2726 = vrot.lane.b32.xlu0 %v2489, 36
        %v2727 = vpop.permute.xlu0 %2726
        %2728 = vrot.lane.b32.xlu0 %v2493, 36
        %v2729 = vpop.permute.xlu0 %2728
        %2730 = vrot.lane.b32.xlu0 %v2497, 36
        %v2731 = vpop.permute.xlu0 %2730
        %2732 = vrot.lane.b32.xlu0 %v2501, 36
        %v2733 = vpop.permute.xlu0 %2732
        %v2734 = vsel %vm1000, %v2719, %v2721
        %v2735 = vsel %vm1000, %v2721, %v2723
        %v2736 = vsel %vm1000, %v2723, %v2725
        %v2737 = vsel %vm1000, %v2725, %v2727
        %v2738 = vsel %vm1000, %v2727, %v2729
        %v2739 = vsel %vm1000, %v2729, %v2731
        %v2740 = vsel %vm1000, %v2731, %v2733
        %v2750 = vmul.f32 %v2238, %v2719
        %v2751 = vmul.f32 %v2206, %v2734
        %v2752 = vmul.f32 %v2207, %v2735
        %v2753 = vmul.f32 %v2208, %v2736
        %v2754 = vmul.f32 %v2209, %v2737
        %v2755 = vmul.f32 %v2210, %v2738
        %v2756 = vmul.f32 %v2211, %v2739
        %v2757 = vmul.f32 %v2212, %v2740
        %v2758 = vmul.f32 %v2240, %v2733
        %v2759 = vmul.f32 %v2239, %v2719
        %v2760 = vmul.f32 %v2213, %v2734
        %v2761 = vmul.f32 %v2214, %v2735
        %v2762 = vmul.f32 %v2215, %v2736
        %v2763 = vmul.f32 %v2216, %v2737
        %v2764 = vmul.f32 %v2217, %v2738
        %v2765 = vmul.f32 %v2218, %v2739
        %v2766 = vmul.f32 %v2219, %v2740
        %v2767 = vmul.f32 %v2241, %v2733
        %2768 = vrot.lane.b32.xlu0 %v2245, 64
        %v2769 = vpop.permute.xlu0 %2768
        %2770 = vrot.lane.b32.xlu0 %v2249, 64
        %v2771 = vpop.permute.xlu0 %2770
        %2772 = vrot.lane.b32.xlu0 %v2253, 64
        %v2773 = vpop.permute.xlu0 %2772
        %2774 = vrot.lane.b32.xlu0 %v2257, 64
        %v2775 = vpop.permute.xlu0 %2774
        %2776 = vrot.lane.b32.xlu0 %v2261, 64
        %v2777 = vpop.permute.xlu0 %2776
        %2778 = vrot.lane.b32.xlu0 %v2265, 64
        %v2779 = vpop.permute.xlu0 %2778
        %2780 = vrot.lane.b32.xlu0 %v2269, 64
        %v2781 = vpop.permute.xlu0 %2780
        %2782 = vrot.lane.b32.xlu0 %v2273, 64
        %v2783 = vpop.permute.xlu0 %2782
        %v2784 = vsel %vm738, %v2769, %v2771
        %v2785 = vsel %vm738, %v2771, %v2773
        %v2786 = vsel %vm738, %v2773, %v2775
        %v2787 = vsel %vm738, %v2775, %v2777
        %v2788 = vsel %vm738, %v2777, %v2779
        %v2789 = vsel %vm738, %v2779, %v2781
        %v2790 = vsel %vm738, %v2781, %v2783
        %v2800 = vmul.f32 %v2238, %v2769
        %v2801 = vmul.f32 %v2206, %v2784
        %v2802 = vmul.f32 %v2207, %v2785
        %v2803 = vmul.f32 %v2208, %v2786
        %v2804 = vmul.f32 %v2209, %v2787
        %v2805 = vmul.f32 %v2210, %v2788
        %v2806 = vmul.f32 %v2211, %v2789
        %v2807 = vmul.f32 %v2212, %v2790
        %v2808 = vmul.f32 %v2240, %v2783
        %v2809 = vmul.f32 %v2239, %v2769
        %v2810 = vmul.f32 %v2213, %v2784
        %v2811 = vmul.f32 %v2214, %v2785
        %v2812 = vmul.f32 %v2215, %v2786
        %v2813 = vmul.f32 %v2216, %v2787
        %v2814 = vmul.f32 %v2217, %v2788
        %v2815 = vmul.f32 %v2218, %v2789
        %v2816 = vmul.f32 %v2219, %v2790
        %v2817 = vmul.f32 %v2241, %v2783
        %2818 = vrot.lane.b32.xlu0 %v2293, 65
        %v2819 = vpop.permute.xlu0 %2818
        %2820 = vrot.lane.b32.xlu0 %v2297, 65
        %v2821 = vpop.permute.xlu0 %2820
        %2822 = vrot.lane.b32.xlu0 %v2301, 65
        %v2823 = vpop.permute.xlu0 %2822
        %2824 = vrot.lane.b32.xlu0 %v2305, 65
        %v2825 = vpop.permute.xlu0 %2824
        %2826 = vrot.lane.b32.xlu0 %v2309, 65
        %v2827 = vpop.permute.xlu0 %2826
        %2828 = vrot.lane.b32.xlu0 %v2313, 65
        %v2829 = vpop.permute.xlu0 %2828
        %2830 = vrot.lane.b32.xlu0 %v2317, 65
        %v2831 = vpop.permute.xlu0 %2830
        %2832 = vrot.lane.b32.xlu0 %v2321, 65
        %v2833 = vpop.permute.xlu0 %2832
        %v2834 = vsel %vm1071, %v2819, %v2821
        %v2835 = vsel %vm1071, %v2821, %v2823
        %v2836 = vsel %vm1071, %v2823, %v2825
        %v2837 = vsel %vm1071, %v2825, %v2827
        %v2838 = vsel %vm1071, %v2827, %v2829
        %v2839 = vsel %vm1071, %v2829, %v2831
        %v2840 = vsel %vm1071, %v2831, %v2833
        %v2850 = vmul.f32 %v2238, %v2819
        %v2851 = vmul.f32 %v2206, %v2834
        %v2852 = vmul.f32 %v2207, %v2835
        %v2853 = vmul.f32 %v2208, %v2836
        %v2854 = vmul.f32 %v2209, %v2837
        %v2855 = vmul.f32 %v2210, %v2838
        %v2856 = vmul.f32 %v2211, %v2839
        %v2857 = vmul.f32 %v2212, %v2840
        %v2858 = vmul.f32 %v2240, %v2833
        %v2859 = vmul.f32 %v2239, %v2819
        %v2860 = vmul.f32 %v2213, %v2834
        %v2861 = vmul.f32 %v2214, %v2835
        %v2862 = vmul.f32 %v2215, %v2836
        %v2863 = vmul.f32 %v2216, %v2837
        %v2864 = vmul.f32 %v2217, %v2838
        %v2865 = vmul.f32 %v2218, %v2839
        %v2866 = vmul.f32 %v2219, %v2840
        %v2867 = vmul.f32 %v2241, %v2833
        %2868 = vrot.lane.b32.xlu0 %v2383, 67
        %v2869 = vpop.permute.xlu0 %2868
        %2870 = vrot.lane.b32.xlu0 %v2387, 67
        %v2871 = vpop.permute.xlu0 %2870
        %2872 = vrot.lane.b32.xlu0 %v2391, 67
        %v2873 = vpop.permute.xlu0 %2872
        %2874 = vrot.lane.b32.xlu0 %v2395, 67
        %v2875 = vpop.permute.xlu0 %2874
        %2876 = vrot.lane.b32.xlu0 %v2399, 67
        %v2877 = vpop.permute.xlu0 %2876
        %2878 = vrot.lane.b32.xlu0 %v2403, 67
        %v2879 = vpop.permute.xlu0 %2878
        %2880 = vrot.lane.b32.xlu0 %v2407, 67
        %v2881 = vpop.permute.xlu0 %2880
        %2882 = vrot.lane.b32.xlu0 %v2411, 67
        %v2883 = vpop.permute.xlu0 %2882
        %v2884 = vsel %vm1083, %v2869, %v2871
        %v2885 = vsel %vm1083, %v2871, %v2873
        %v2886 = vsel %vm1083, %v2873, %v2875
        %v2887 = vsel %vm1083, %v2875, %v2877
        %v2888 = vsel %vm1083, %v2877, %v2879
        %v2889 = vsel %vm1083, %v2879, %v2881
        %v2890 = vsel %vm1083, %v2881, %v2883
        %v2900 = vmul.f32 %v2238, %v2869
        %v2901 = vmul.f32 %v2206, %v2884
        %v2902 = vmul.f32 %v2207, %v2885
        %v2903 = vmul.f32 %v2208, %v2886
        %v2904 = vmul.f32 %v2209, %v2887
        %v2905 = vmul.f32 %v2210, %v2888
        %v2906 = vmul.f32 %v2211, %v2889
        %v2907 = vmul.f32 %v2212, %v2890
        %v2908 = vmul.f32 %v2240, %v2883
        %v2909 = vmul.f32 %v2239, %v2869
        %v2910 = vmul.f32 %v2213, %v2884
        %v2911 = vmul.f32 %v2214, %v2885
        %v2912 = vmul.f32 %v2215, %v2886
        %v2913 = vmul.f32 %v2216, %v2887
        %v2914 = vmul.f32 %v2217, %v2888
        %v2915 = vmul.f32 %v2218, %v2889
        %v2916 = vmul.f32 %v2219, %v2890
        %v2917 = vmul.f32 %v2241, %v2883
        %2918 = vrot.lane.b32.xlu0 %v2473, 68
        %v2919 = vpop.permute.xlu0 %2918
        %2920 = vrot.lane.b32.xlu0 %v2477, 68
        %v2921 = vpop.permute.xlu0 %2920
        %2922 = vrot.lane.b32.xlu0 %v2481, 68
        %v2923 = vpop.permute.xlu0 %2922
        %2924 = vrot.lane.b32.xlu0 %v2485, 68
        %v2925 = vpop.permute.xlu0 %2924
        %2926 = vrot.lane.b32.xlu0 %v2489, 68
        %v2927 = vpop.permute.xlu0 %2926
        %2928 = vrot.lane.b32.xlu0 %v2493, 68
        %v2929 = vpop.permute.xlu0 %2928
        %2930 = vrot.lane.b32.xlu0 %v2497, 68
        %v2931 = vpop.permute.xlu0 %2930
        %2932 = vrot.lane.b32.xlu0 %v2501, 68
        %v2933 = vpop.permute.xlu0 %2932
        %v2934 = vsel %vm1095, %v2919, %v2921
        %v2935 = vsel %vm1095, %v2921, %v2923
        %v2936 = vsel %vm1095, %v2923, %v2925
        %v2937 = vsel %vm1095, %v2925, %v2927
        %v2938 = vsel %vm1095, %v2927, %v2929
        %v2939 = vsel %vm1095, %v2929, %v2931
        %v2940 = vsel %vm1095, %v2931, %v2933
        %v2950 = vmul.f32 %v2238, %v2919
        %v2951 = vmul.f32 %v2206, %v2934
        %v2952 = vmul.f32 %v2207, %v2935
        %v2953 = vmul.f32 %v2208, %v2936
        %v2954 = vmul.f32 %v2209, %v2937
        %v2955 = vmul.f32 %v2210, %v2938
        %v2956 = vmul.f32 %v2211, %v2939
        %v2957 = vmul.f32 %v2212, %v2940
        %v2958 = vmul.f32 %v2240, %v2933
        %v2959 = vmul.f32 %v2239, %v2919
        %v2960 = vmul.f32 %v2213, %v2934
        %v2961 = vmul.f32 %v2214, %v2935
        %v2962 = vmul.f32 %v2215, %v2936
        %v2963 = vmul.f32 %v2216, %v2937
        %v2964 = vmul.f32 %v2217, %v2938
        %v2965 = vmul.f32 %v2218, %v2939
        %v2966 = vmul.f32 %v2219, %v2940
        %v2967 = vmul.f32 %v2241, %v2933
        %2968 = vrot.lane.b32.xlu0 %v2245, 96
        %v2969 = vpop.permute.xlu0 %2968
        %2970 = vrot.lane.b32.xlu0 %v2249, 96
        %v2971 = vpop.permute.xlu0 %2970
        %2972 = vrot.lane.b32.xlu0 %v2253, 96
        %v2973 = vpop.permute.xlu0 %2972
        %2974 = vrot.lane.b32.xlu0 %v2257, 96
        %v2975 = vpop.permute.xlu0 %2974
        %2976 = vrot.lane.b32.xlu0 %v2261, 96
        %v2977 = vpop.permute.xlu0 %2976
        %2978 = vrot.lane.b32.xlu0 %v2265, 96
        %v2979 = vpop.permute.xlu0 %2978
        %2980 = vrot.lane.b32.xlu0 %v2269, 96
        %v2981 = vpop.permute.xlu0 %2980
        %2982 = vrot.lane.b32.xlu0 %v2273, 96
        %v2983 = vpop.permute.xlu0 %2982
        %v2984 = vsel %vm1234, %v2969, %v2971
        %v2985 = vsel %vm1234, %v2971, %v2973
        %v2986 = vsel %vm1234, %v2973, %v2975
        %v2987 = vsel %vm1234, %v2975, %v2977
        %v2988 = vsel %vm1234, %v2977, %v2979
        %v2989 = vsel %vm1234, %v2979, %v2981
        %v2990 = vsel %vm1234, %v2981, %v2983
        %v3000 = vmul.f32 %v2238, %v2969
        %v3001 = vmul.f32 %v2206, %v2984
        %v3002 = vmul.f32 %v2207, %v2985
        %v3003 = vmul.f32 %v2208, %v2986
        %v3004 = vmul.f32 %v2209, %v2987
        %v3005 = vmul.f32 %v2210, %v2988
        %v3006 = vmul.f32 %v2211, %v2989
        %v3007 = vmul.f32 %v2212, %v2990
        %v3008 = vmul.f32 %v2240, %v2983
        %v3009 = vmul.f32 %v2239, %v2969
        %v3010 = vmul.f32 %v2213, %v2984
        %v3011 = vmul.f32 %v2214, %v2985
        %v3012 = vmul.f32 %v2215, %v2986
        %v3013 = vmul.f32 %v2216, %v2987
        %v3014 = vmul.f32 %v2217, %v2988
        %v3015 = vmul.f32 %v2218, %v2989
        %v3016 = vmul.f32 %v2219, %v2990
        %v3017 = vmul.f32 %v2241, %v2983
        %3018 = vrot.lane.b32.xlu0 %v2293, 97
        %v3019 = vpop.permute.xlu0 %3018
        %3020 = vrot.lane.b32.xlu0 %v2297, 97
        %v3021 = vpop.permute.xlu0 %3020
        %3022 = vrot.lane.b32.xlu0 %v2301, 97
        %v3023 = vpop.permute.xlu0 %3022
        %3024 = vrot.lane.b32.xlu0 %v2305, 97
        %v3025 = vpop.permute.xlu0 %3024
        %3026 = vrot.lane.b32.xlu0 %v2309, 97
        %v3027 = vpop.permute.xlu0 %3026
        %3028 = vrot.lane.b32.xlu0 %v2313, 97
        %v3029 = vpop.permute.xlu0 %3028
        %3030 = vrot.lane.b32.xlu0 %v2317, 97
        %v3031 = vpop.permute.xlu0 %3030
        %3032 = vrot.lane.b32.xlu0 %v2321, 97
        %v3033 = vpop.permute.xlu0 %3032
        %vm3034 = vcmask 793600
        %v3035 = vsel %vm3034, %v3019, %v3021
        %v3036 = vsel %vm3034, %v3021, %v3023
        %v3037 = vsel %vm3034, %v3023, %v3025
        %v3038 = vsel %vm3034, %v3025, %v3027
        %v3039 = vsel %vm3034, %v3027, %v3029
        %v3040 = vsel %vm3034, %v3029, %v3031
        %v3041 = vsel %vm3034, %v3031, %v3033
        %v3051 = vmul.f32 %v2238, %v3019
        %v3052 = vmul.f32 %v2206, %v3035
        %v3053 = vmul.f32 %v2207, %v3036
        %v3054 = vmul.f32 %v2208, %v3037
        %v3055 = vmul.f32 %v2209, %v3038
        %v3056 = vmul.f32 %v2210, %v3039
        %v3057 = vmul.f32 %v2211, %v3040
        %v3058 = vmul.f32 %v2212, %v3041
        %v3059 = vmul.f32 %v2240, %v3033
        %v3060 = vmul.f32 %v2239, %v3019
        %v3061 = vmul.f32 %v2213, %v3035
        %v3062 = vmul.f32 %v2214, %v3036
        %v3063 = vmul.f32 %v2215, %v3037
        %v3064 = vmul.f32 %v2216, %v3038
        %v3065 = vmul.f32 %v2217, %v3039
        %v3066 = vmul.f32 %v2218, %v3040
        %v3067 = vmul.f32 %v2219, %v3041
        %v3068 = vmul.f32 %v2241, %v3033
        %3069 = vrot.lane.b32.xlu0 %v2383, 99
        %v3070 = vpop.permute.xlu0 %3069
        %3071 = vrot.lane.b32.xlu0 %v2387, 99
        %v3072 = vpop.permute.xlu0 %3071
        %3073 = vrot.lane.b32.xlu0 %v2391, 99
        %v3074 = vpop.permute.xlu0 %3073
        %3075 = vrot.lane.b32.xlu0 %v2395, 99
        %v3076 = vpop.permute.xlu0 %3075
        %3077 = vrot.lane.b32.xlu0 %v2399, 99
        %v3078 = vpop.permute.xlu0 %3077
        %3079 = vrot.lane.b32.xlu0 %v2403, 99
        %v3080 = vpop.permute.xlu0 %3079
        %3081 = vrot.lane.b32.xlu0 %v2407, 99
        %v3082 = vpop.permute.xlu0 %3081
        %3083 = vrot.lane.b32.xlu0 %v2411, 99
        %v3084 = vpop.permute.xlu0 %3083
        %vm3085 = vcmask 809984
        %v3086 = vsel %vm3085, %v3070, %v3072
        %v3087 = vsel %vm3085, %v3072, %v3074
        %v3088 = vsel %vm3085, %v3074, %v3076
        %v3089 = vsel %vm3085, %v3076, %v3078
        %v3090 = vsel %vm3085, %v3078, %v3080
        %v3091 = vsel %vm3085, %v3080, %v3082
        %v3092 = vsel %vm3085, %v3082, %v3084
        %v3102 = vmul.f32 %v2238, %v3070
        %v3103 = vmul.f32 %v2206, %v3086
        %v3104 = vmul.f32 %v2207, %v3087
        %v3105 = vmul.f32 %v2208, %v3088
        %v3106 = vmul.f32 %v2209, %v3089
        %v3107 = vmul.f32 %v2210, %v3090
        %v3108 = vmul.f32 %v2211, %v3091
        %v3109 = vmul.f32 %v2212, %v3092
        %v3110 = vmul.f32 %v2240, %v3084
        %v3111 = vmul.f32 %v2239, %v3070
        %v3112 = vmul.f32 %v2213, %v3086
        %v3113 = vmul.f32 %v2214, %v3087
        %v3114 = vmul.f32 %v2215, %v3088
        %v3115 = vmul.f32 %v2216, %v3089
        %v3116 = vmul.f32 %v2217, %v3090
        %v3117 = vmul.f32 %v2218, %v3091
        %v3118 = vmul.f32 %v2219, %v3092
        %v3119 = vmul.f32 %v2241, %v3084
        %3120 = vrot.lane.b32.xlu0 %v2473, 100
        %v3121 = vpop.permute.xlu0 %3120
        %3122 = vrot.lane.b32.xlu0 %v2477, 100
        %v3123 = vpop.permute.xlu0 %3122
        %3124 = vrot.lane.b32.xlu0 %v2481, 100
        %v3125 = vpop.permute.xlu0 %3124
        %3126 = vrot.lane.b32.xlu0 %v2485, 100
        %v3127 = vpop.permute.xlu0 %3126
        %3128 = vrot.lane.b32.xlu0 %v2489, 100
        %v3129 = vpop.permute.xlu0 %3128
        %3130 = vrot.lane.b32.xlu0 %v2493, 100
        %v3131 = vpop.permute.xlu0 %3130
        %3132 = vrot.lane.b32.xlu0 %v2497, 100
        %v3133 = vpop.permute.xlu0 %3132
        %3134 = vrot.lane.b32.xlu0 %v2501, 100
        %v3135 = vpop.permute.xlu0 %3134
        %vm3136 = vcmask 818176
        %v3137 = vsel %vm3136, %v3121, %v3123
        %v3138 = vsel %vm3136, %v3123, %v3125
        %v3139 = vsel %vm3136, %v3125, %v3127
        %v3140 = vsel %vm3136, %v3127, %v3129
        %v3141 = vsel %vm3136, %v3129, %v3131
        %v3142 = vsel %vm3136, %v3131, %v3133
        %v3143 = vsel %vm3136, %v3133, %v3135
        %v3153 = vmul.f32 %v2238, %v3121
        %v3154 = vmul.f32 %v2206, %v3137
        %v3155 = vmul.f32 %v2207, %v3138
        %v3156 = vmul.f32 %v2208, %v3139
        %v3157 = vmul.f32 %v2209, %v3140
        %v3158 = vmul.f32 %v2210, %v3141
        %v3159 = vmul.f32 %v2211, %v3142
        %v3160 = vmul.f32 %v2212, %v3143
        %v3161 = vmul.f32 %v2240, %v3135
        %v3162 = vmul.f32 %v2239, %v3121
        %v3163 = vmul.f32 %v2213, %v3137
        %v3164 = vmul.f32 %v2214, %v3138
        %v3165 = vmul.f32 %v2215, %v3139
        %v3166 = vmul.f32 %v2216, %v3140
        %v3167 = vmul.f32 %v2217, %v3141
        %v3168 = vmul.f32 %v2218, %v3142
        %v3169 = vmul.f32 %v2219, %v3143
        %v3170 = vmul.f32 %v2241, %v3135
        %v3171 = vmul.f32 %v2206, %v2245
        %v3172 = vmul.f32 %v2207, %v2249
        %v3173 = vmul.f32 %v2208, %v2253
        %v3174 = vmul.f32 %v2209, %v2257
        %v3175 = vmul.f32 %v2210, %v2261
        %v3176 = vmul.f32 %v2211, %v2265
        %v3177 = vmul.f32 %v2212, %v2269
        %v3178 = vmul.f32 %v2240, %v2273
        %v3179 = vmul.f32 %v2213, %v2245
        %v3180 = vmul.f32 %v2214, %v2249
        %v3181 = vmul.f32 %v2215, %v2253
        %v3182 = vmul.f32 %v2216, %v2257
        %v3183 = vmul.f32 %v2217, %v2261
        %v3184 = vmul.f32 %v2218, %v2265
        %v3185 = vmul.f32 %v2219, %v2269
        %v3186 = vmul.f32 %v2241, %v2273
        %v3187 = vmul.f32 %v2206, %v2331
        %v3188 = vmul.f32 %v2207, %v2346
        %v3189 = vmul.f32 %v2208, %v2347
        %v3190 = vmul.f32 %v2209, %v2348
        %v3191 = vmul.f32 %v2210, %v2349
        %v3192 = vmul.f32 %v2211, %v2350
        %v3193 = vmul.f32 %v2212, %v2351
        %v3194 = vmul.f32 %v2240, %v2352
        %v3195 = vmul.f32 %v2345, 0.0
        %v3196 = vmul.f32 %v2213, %v2331
        %v3197 = vmul.f32 %v2214, %v2346
        %v3198 = vmul.f32 %v2215, %v2347
        %v3199 = vmul.f32 %v2216, %v2348
        %v3200 = vmul.f32 %v2217, %v2349
        %v3201 = vmul.f32 %v2218, %v2350
        %v3202 = vmul.f32 %v2219, %v2351
        %v3203 = vmul.f32 %v2241, %v2352
        %v3204 = vmul.f32 %v2206, %v2421
        %v3205 = vmul.f32 %v2207, %v2436
        %v3206 = vmul.f32 %v2208, %v2437
        %v3207 = vmul.f32 %v2209, %v2438
        %v3208 = vmul.f32 %v2210, %v2439
        %v3209 = vmul.f32 %v2211, %v2440
        %v3210 = vmul.f32 %v2212, %v2441
        %v3211 = vmul.f32 %v2240, %v2442
        %v3212 = vmul.f32 %v2435, 0.0
        %v3213 = vmul.f32 %v2213, %v2421
        %v3214 = vmul.f32 %v2214, %v2436
        %v3215 = vmul.f32 %v2215, %v2437
        %v3216 = vmul.f32 %v2216, %v2438
        %v3217 = vmul.f32 %v2217, %v2439
        %v3218 = vmul.f32 %v2218, %v2440
        %v3219 = vmul.f32 %v2219, %v2441
        %v3220 = vmul.f32 %v2241, %v2442
        %v3221 = vmul.f32 %v2206, %v2511
        %v3222 = vmul.f32 %v2207, %v2526
        %v3223 = vmul.f32 %v2208, %v2527
        %v3224 = vmul.f32 %v2209, %v2528
        %v3225 = vmul.f32 %v2210, %v2529
        %v3226 = vmul.f32 %v2211, %v2530
        %v3227 = vmul.f32 %v2212, %v2531
        %v3228 = vmul.f32 %v2240, %v2532
        %v3229 = vmul.f32 %v2525, 0.0
        %v3230 = vmul.f32 %v2213, %v2511
        %v3231 = vmul.f32 %v2214, %v2526
        %v3232 = vmul.f32 %v2215, %v2527
        %v3233 = vmul.f32 %v2216, %v2528
        %v3234 = vmul.f32 %v2217, %v2529
        %v3235 = vmul.f32 %v2218, %v2530
        %v3236 = vmul.f32 %v2219, %v2531
        %v3237 = vmul.f32 %v2241, %v2532
        %3256 = vrot.lane.b32.xlu0 %v2362, 127
        %v3257 = vpop.permute.xlu0 %3256
        %3258 = vrot.lane.b32.xlu0 %v2363, 127
        %v3259 = vpop.permute.xlu0 %3258
        %3260 = vrot.lane.b32.xlu0 %v2364, 127
        %v3261 = vpop.permute.xlu0 %3260
        %3262 = vrot.lane.b32.xlu0 %v2365, 127
        %v3263 = vpop.permute.xlu0 %3262
        %3264 = vrot.lane.b32.xlu0 %v2366, 127
        %v3265 = vpop.permute.xlu0 %3264
        %3266 = vrot.lane.b32.xlu0 %v2367, 127
        %v3267 = vpop.permute.xlu0 %3266
        %3268 = vrot.lane.b32.xlu0 %v2368, 127
        %v3269 = vpop.permute.xlu0 %3268
        %3270 = vrot.lane.b32.xlu0 %v2369, 127
        %v3271 = vpop.permute.xlu0 %3270
        %3272 = vrot.lane.b32.xlu0 %v2370, 127
        %v3273 = vpop.permute.xlu0 %3272
        %3274 = vrot.lane.b32.xlu0 %v2371, 127
        %v3275 = vpop.permute.xlu0 %3274
        %3276 = vrot.lane.b32.xlu0 %v2372, 127
        %v3277 = vpop.permute.xlu0 %3276
        %3278 = vrot.lane.b32.xlu0 %v2373, 127
        %v3279 = vpop.permute.xlu0 %3278
        %3280 = vrot.lane.b32.xlu0 %v2374, 127
        %v3281 = vpop.permute.xlu0 %3280
        %3282 = vrot.lane.b32.xlu0 %v2375, 127
        %v3283 = vpop.permute.xlu0 %3282
        %3284 = vrot.lane.b32.xlu0 %v2376, 127
        %v3285 = vpop.permute.xlu0 %3284
        %3286 = vrot.lane.b32.xlu0 %v2377, 127
        %v3287 = vpop.permute.xlu0 %3286
        %3288 = vrot.lane.b32.xlu0 %v2378, 127
        %v3289 = vpop.permute.xlu0 %3288
        %3290 = vrot.lane.b32.xlu0 %v2379, 127
        %v3291 = vpop.permute.xlu0 %3290
        %v3292 = vsel %vm1112, %v3257, %v3259
        %v3293 = vsel %vm1112, %v3259, %v3261
        %v3294 = vsel %vm1112, %v3261, %v3263
        %v3295 = vsel %vm1112, %v3263, %v3265
        %v3296 = vsel %vm1112, %v3265, %v3267
        %v3297 = vsel %vm1112, %v3267, %v3269
        %v3298 = vsel %vm1112, %v3269, %v3271
        %v3299 = vsel %vm1112, %v3271, %v3273
        %v3300 = vsel %vm1112, %v3275, %v3277
        %v3301 = vsel %vm1112, %v3277, %v3279
        %v3302 = vsel %vm1112, %v3279, %v3281
        %v3303 = vsel %vm1112, %v3281, %v3283
        %v3304 = vsel %vm1112, %v3283, %v3285
        %v3305 = vsel %vm1112, %v3285, %v3287
        %v3306 = vsel %vm1112, %v3287, %v3289
        %v3307 = vsel %vm1112, %v3289, %v3291
        %3328 = vrot.lane.b32.xlu0 %v2238, 126
        %v3329 = vpop.permute.xlu0 %3328
        %3330 = vrot.lane.b32.xlu0 %v2206, 126
        %v3331 = vpop.permute.xlu0 %3330
        %3332 = vrot.lane.b32.xlu0 %v2207, 126
        %v3333 = vpop.permute.xlu0 %3332
        %3334 = vrot.lane.b32.xlu0 %v2208, 126
        %v3335 = vpop.permute.xlu0 %3334
        %3336 = vrot.lane.b32.xlu0 %v2209, 126
        %v3337 = vpop.permute.xlu0 %3336
        %3338 = vrot.lane.b32.xlu0 %v2210, 126
        %v3339 = vpop.permute.xlu0 %3338
        %3340 = vrot.lane.b32.xlu0 %v2211, 126
        %v3341 = vpop.permute.xlu0 %3340
        %3342 = vrot.lane.b32.xlu0 %v2212, 126
        %v3343 = vpop.permute.xlu0 %3342
        %3344 = vrot.lane.b32.xlu0 %v2240, 126
        %v3345 = vpop.permute.xlu0 %3344
        %3346 = vrot.lane.b32.xlu0 %v2239, 126
        %v3347 = vpop.permute.xlu0 %3346
        %3348 = vrot.lane.b32.xlu0 %v2213, 126
        %v3349 = vpop.permute.xlu0 %3348
        %3350 = vrot.lane.b32.xlu0 %v2214, 126
        %v3351 = vpop.permute.xlu0 %3350
        %3352 = vrot.lane.b32.xlu0 %v2215, 126
        %v3353 = vpop.permute.xlu0 %3352
        %3354 = vrot.lane.b32.xlu0 %v2216, 126
        %v3355 = vpop.permute.xlu0 %3354
        %3356 = vrot.lane.b32.xlu0 %v2217, 126
        %v3357 = vpop.permute.xlu0 %3356
        %3358 = vrot.lane.b32.xlu0 %v2218, 126
        %v3359 = vpop.permute.xlu0 %3358
        %3360 = vrot.lane.b32.xlu0 %v2219, 126
        %v3361 = vpop.permute.xlu0 %3360
        %3362 = vrot.lane.b32.xlu0 %v2241, 126
        %v3363 = vpop.permute.xlu0 %3362
        %v3364 = vsel %vm1125, %v3329, %v3331
        %v3365 = vsel %vm1125, %v3331, %v3333
        %v3366 = vsel %vm1125, %v3333, %v3335
        %v3367 = vsel %vm1125, %v3335, %v3337
        %v3368 = vsel %vm1125, %v3337, %v3339
        %v3369 = vsel %vm1125, %v3339, %v3341
        %v3370 = vsel %vm1125, %v3341, %v3343
        %v3371 = vsel %vm1125, %v3343, %v3345
        %v3372 = vsel %vm1125, %v3347, %v3349
        %v3373 = vsel %vm1125, %v3349, %v3351
        %v3374 = vsel %vm1125, %v3351, %v3353
        %v3375 = vsel %vm1125, %v3353, %v3355
        %v3376 = vsel %vm1125, %v3355, %v3357
        %v3377 = vsel %vm1125, %v3357, %v3359
        %v3378 = vsel %vm1125, %v3359, %v3361
        %v3379 = vsel %vm1125, %v3361, %v3363
        %3414 = vrot.lane.b32.xlu0 %v2452, 125
        %v3415 = vpop.permute.xlu0 %3414
        %3416 = vrot.lane.b32.xlu0 %v2453, 125
        %v3417 = vpop.permute.xlu0 %3416
        %3418 = vrot.lane.b32.xlu0 %v2454, 125
        %v3419 = vpop.permute.xlu0 %3418
        %3420 = vrot.lane.b32.xlu0 %v2455, 125
        %v3421 = vpop.permute.xlu0 %3420
        %3422 = vrot.lane.b32.xlu0 %v2456, 125
        %v3423 = vpop.permute.xlu0 %3422
        %3424 = vrot.lane.b32.xlu0 %v2457, 125
        %v3425 = vpop.permute.xlu0 %3424
        %3426 = vrot.lane.b32.xlu0 %v2458, 125
        %v3427 = vpop.permute.xlu0 %3426
        %3428 = vrot.lane.b32.xlu0 %v2459, 125
        %v3429 = vpop.permute.xlu0 %3428
        %3430 = vrot.lane.b32.xlu0 %v2460, 125
        %v3431 = vpop.permute.xlu0 %3430
        %3432 = vrot.lane.b32.xlu0 %v2461, 125
        %v3433 = vpop.permute.xlu0 %3432
        %3434 = vrot.lane.b32.xlu0 %v2462, 125
        %v3435 = vpop.permute.xlu0 %3434
        %3436 = vrot.lane.b32.xlu0 %v2463, 125
        %v3437 = vpop.permute.xlu0 %3436
        %3438 = vrot.lane.b32.xlu0 %v2464, 125
        %v3439 = vpop.permute.xlu0 %3438
        %3440 = vrot.lane.b32.xlu0 %v2465, 125
        %v3441 = vpop.permute.xlu0 %3440
        %3442 = vrot.lane.b32.xlu0 %v2466, 125
        %v3443 = vpop.permute.xlu0 %3442
        %3444 = vrot.lane.b32.xlu0 %v2467, 125
        %v3445 = vpop.permute.xlu0 %3444
        %3446 = vrot.lane.b32.xlu0 %v2468, 125
        %v3447 = vpop.permute.xlu0 %3446
        %3448 = vrot.lane.b32.xlu0 %v2469, 125
        %v3449 = vpop.permute.xlu0 %3448
        %v3450 = vsel %vm1139, %v3415, %v3417
        %v3451 = vsel %vm1139, %v3417, %v3419
        %v3452 = vsel %vm1139, %v3419, %v3421
        %v3453 = vsel %vm1139, %v3421, %v3423
        %v3454 = vsel %vm1139, %v3423, %v3425
        %v3455 = vsel %vm1139, %v3425, %v3427
        %v3456 = vsel %vm1139, %v3427, %v3429
        %v3457 = vsel %vm1139, %v3429, %v3431
        %v3458 = vsel %vm1139, %v3433, %v3435
        %v3459 = vsel %vm1139, %v3435, %v3437
        %v3460 = vsel %vm1139, %v3437, %v3439
        %v3461 = vsel %vm1139, %v3439, %v3441
        %v3462 = vsel %vm1139, %v3441, %v3443
        %v3463 = vsel %vm1139, %v3443, %v3445
        %v3464 = vsel %vm1139, %v3445, %v3447
        %v3465 = vsel %vm1139, %v3447, %v3449
        %3500 = vrot.lane.b32.xlu0 %v2542, 124
        %v3501 = vpop.permute.xlu0 %3500
        %3502 = vrot.lane.b32.xlu0 %v2543, 124
        %v3503 = vpop.permute.xlu0 %3502
        %3504 = vrot.lane.b32.xlu0 %v2544, 124
        %v3505 = vpop.permute.xlu0 %3504
        %3506 = vrot.lane.b32.xlu0 %v2545, 124
        %v3507 = vpop.permute.xlu0 %3506
        %3508 = vrot.lane.b32.xlu0 %v2546, 124
        %v3509 = vpop.permute.xlu0 %3508
        %3510 = vrot.lane.b32.xlu0 %v2547, 124
        %v3511 = vpop.permute.xlu0 %3510
        %3512 = vrot.lane.b32.xlu0 %v2548, 124
        %v3513 = vpop.permute.xlu0 %3512
        %3514 = vrot.lane.b32.xlu0 %v2549, 124
        %v3515 = vpop.permute.xlu0 %3514
        %3516 = vrot.lane.b32.xlu0 %v2550, 124
        %v3517 = vpop.permute.xlu0 %3516
        %3518 = vrot.lane.b32.xlu0 %v2551, 124
        %v3519 = vpop.permute.xlu0 %3518
        %3520 = vrot.lane.b32.xlu0 %v2552, 124
        %v3521 = vpop.permute.xlu0 %3520
        %3522 = vrot.lane.b32.xlu0 %v2553, 124
        %v3523 = vpop.permute.xlu0 %3522
        %3524 = vrot.lane.b32.xlu0 %v2554, 124
        %v3525 = vpop.permute.xlu0 %3524
        %3526 = vrot.lane.b32.xlu0 %v2555, 124
        %v3527 = vpop.permute.xlu0 %3526
        %3528 = vrot.lane.b32.xlu0 %v2556, 124
        %v3529 = vpop.permute.xlu0 %3528
        %3530 = vrot.lane.b32.xlu0 %v2557, 124
        %v3531 = vpop.permute.xlu0 %3530
        %3532 = vrot.lane.b32.xlu0 %v2558, 124
        %v3533 = vpop.permute.xlu0 %3532
        %3534 = vrot.lane.b32.xlu0 %v2559, 124
        %v3535 = vpop.permute.xlu0 %3534
        %v3536 = vsel %vm1153, %v3501, %v3503
        %v3537 = vsel %vm1153, %v3503, %v3505
        %v3538 = vsel %vm1153, %v3505, %v3507
        %v3539 = vsel %vm1153, %v3507, %v3509
        %v3540 = vsel %vm1153, %v3509, %v3511
        %v3541 = vsel %vm1153, %v3511, %v3513
        %v3542 = vsel %vm1153, %v3513, %v3515
        %v3543 = vsel %vm1153, %v3515, %v3517
        %v3544 = vsel %vm1153, %v3519, %v3521
        %v3545 = vsel %vm1153, %v3521, %v3523
        %v3546 = vsel %vm1153, %v3523, %v3525
        %v3547 = vsel %vm1153, %v3525, %v3527
        %v3548 = vsel %vm1153, %v3527, %v3529
        %v3549 = vsel %vm1153, %v3529, %v3531
        %v3550 = vsel %vm1153, %v3531, %v3533
        %v3551 = vsel %vm1153, %v3533, %v3535
        %3586 = vrot.lane.b32.xlu0 %v2600, 96
        %v3587 = vpop.permute.xlu0 %3586
        %3588 = vrot.lane.b32.xlu0 %v2601, 96
        %v3589 = vpop.permute.xlu0 %3588
        %3590 = vrot.lane.b32.xlu0 %v2602, 96
        %v3591 = vpop.permute.xlu0 %3590
        %3592 = vrot.lane.b32.xlu0 %v2603, 96
        %v3593 = vpop.permute.xlu0 %3592
        %3594 = vrot.lane.b32.xlu0 %v2604, 96
        %v3595 = vpop.permute.xlu0 %3594
        %3596 = vrot.lane.b32.xlu0 %v2605, 96
        %v3597 = vpop.permute.xlu0 %3596
        %3598 = vrot.lane.b32.xlu0 %v2606, 96
        %v3599 = vpop.permute.xlu0 %3598
        %3600 = vrot.lane.b32.xlu0 %v2607, 96
        %v3601 = vpop.permute.xlu0 %3600
        %3602 = vrot.lane.b32.xlu0 %v2608, 96
        %v3603 = vpop.permute.xlu0 %3602
        %3604 = vrot.lane.b32.xlu0 %v2609, 96
        %v3605 = vpop.permute.xlu0 %3604
        %3606 = vrot.lane.b32.xlu0 %v2610, 96
        %v3607 = vpop.permute.xlu0 %3606
        %3608 = vrot.lane.b32.xlu0 %v2611, 96
        %v3609 = vpop.permute.xlu0 %3608
        %3610 = vrot.lane.b32.xlu0 %v2612, 96
        %v3611 = vpop.permute.xlu0 %3610
        %3612 = vrot.lane.b32.xlu0 %v2613, 96
        %v3613 = vpop.permute.xlu0 %3612
        %3614 = vrot.lane.b32.xlu0 %v2614, 96
        %v3615 = vpop.permute.xlu0 %3614
        %3616 = vrot.lane.b32.xlu0 %v2615, 96
        %v3617 = vpop.permute.xlu0 %3616
        %3618 = vrot.lane.b32.xlu0 %v2616, 96
        %v3619 = vpop.permute.xlu0 %3618
        %3620 = vrot.lane.b32.xlu0 %v2617, 96
        %v3621 = vpop.permute.xlu0 %3620
        %v3622 = vsel %vm1234, %v3587, %v3589
        %v3623 = vsel %vm1234, %v3589, %v3591
        %v3624 = vsel %vm1234, %v3591, %v3593
        %v3625 = vsel %vm1234, %v3593, %v3595
        %v3626 = vsel %vm1234, %v3595, %v3597
        %v3627 = vsel %vm1234, %v3597, %v3599
        %v3628 = vsel %vm1234, %v3599, %v3601
        %v3629 = vsel %vm1234, %v3601, %v3603
        %v3630 = vsel %vm1234, %v3605, %v3607
        %v3631 = vsel %vm1234, %v3607, %v3609
        %v3632 = vsel %vm1234, %v3609, %v3611
        %v3633 = vsel %vm1234, %v3611, %v3613
        %v3634 = vsel %vm1234, %v3613, %v3615
        %v3635 = vsel %vm1234, %v3615, %v3617
        %v3636 = vsel %vm1234, %v3617, %v3619
        %v3637 = vsel %vm1234, %v3619, %v3621
        %3672 = vrot.lane.b32.xlu0 %v2650, 95
        %v3673 = vpop.permute.xlu0 %3672
        %3674 = vrot.lane.b32.xlu0 %v2651, 95
        %v3675 = vpop.permute.xlu0 %3674
        %3676 = vrot.lane.b32.xlu0 %v2652, 95
        %v3677 = vpop.permute.xlu0 %3676
        %3678 = vrot.lane.b32.xlu0 %v2653, 95
        %v3679 = vpop.permute.xlu0 %3678
        %3680 = vrot.lane.b32.xlu0 %v2654, 95
        %v3681 = vpop.permute.xlu0 %3680
        %3682 = vrot.lane.b32.xlu0 %v2655, 95
        %v3683 = vpop.permute.xlu0 %3682
        %3684 = vrot.lane.b32.xlu0 %v2656, 95
        %v3685 = vpop.permute.xlu0 %3684
        %3686 = vrot.lane.b32.xlu0 %v2657, 95
        %v3687 = vpop.permute.xlu0 %3686
        %3688 = vrot.lane.b32.xlu0 %v2658, 95
        %v3689 = vpop.permute.xlu0 %3688
        %3690 = vrot.lane.b32.xlu0 %v2659, 95
        %v3691 = vpop.permute.xlu0 %3690
        %3692 = vrot.lane.b32.xlu0 %v2660, 95
        %v3693 = vpop.permute.xlu0 %3692
        %3694 = vrot.lane.b32.xlu0 %v2661, 95
        %v3695 = vpop.permute.xlu0 %3694
        %3696 = vrot.lane.b32.xlu0 %v2662, 95
        %v3697 = vpop.permute.xlu0 %3696
        %3698 = vrot.lane.b32.xlu0 %v2663, 95
        %v3699 = vpop.permute.xlu0 %3698
        %3700 = vrot.lane.b32.xlu0 %v2664, 95
        %v3701 = vpop.permute.xlu0 %3700
        %3702 = vrot.lane.b32.xlu0 %v2665, 95
        %v3703 = vpop.permute.xlu0 %3702
        %3704 = vrot.lane.b32.xlu0 %v2666, 95
        %v3705 = vpop.permute.xlu0 %3704
        %3706 = vrot.lane.b32.xlu0 %v2667, 95
        %v3707 = vpop.permute.xlu0 %3706
        %v3708 = vsel %vm1248, %v3673, %v3675
        %v3709 = vsel %vm1248, %v3675, %v3677
        %v3710 = vsel %vm1248, %v3677, %v3679
        %v3711 = vsel %vm1248, %v3679, %v3681
        %v3712 = vsel %vm1248, %v3681, %v3683
        %v3713 = vsel %vm1248, %v3683, %v3685
        %v3714 = vsel %vm1248, %v3685, %v3687
        %v3715 = vsel %vm1248, %v3687, %v3689
        %v3716 = vsel %vm1248, %v3691, %v3693
        %v3717 = vsel %vm1248, %v3693, %v3695
        %v3718 = vsel %vm1248, %v3695, %v3697
        %v3719 = vsel %vm1248, %v3697, %v3699
        %v3720 = vsel %vm1248, %v3699, %v3701
        %v3721 = vsel %vm1248, %v3701, %v3703
        %v3722 = vsel %vm1248, %v3703, %v3705
        %v3723 = vsel %vm1248, %v3705, %v3707
        %3740 = vrot.lane.b32.xlu0 %v2238, 94
        %v3741 = vpop.permute.xlu0 %3740
        %3742 = vrot.lane.b32.xlu0 %v2206, 94
        %v3743 = vpop.permute.xlu0 %3742
        %3744 = vrot.lane.b32.xlu0 %v2207, 94
        %v3745 = vpop.permute.xlu0 %3744
        %3746 = vrot.lane.b32.xlu0 %v2208, 94
        %v3747 = vpop.permute.xlu0 %3746
        %3748 = vrot.lane.b32.xlu0 %v2209, 94
        %v3749 = vpop.permute.xlu0 %3748
        %3750 = vrot.lane.b32.xlu0 %v2210, 94
        %v3751 = vpop.permute.xlu0 %3750
        %3752 = vrot.lane.b32.xlu0 %v2211, 94
        %v3753 = vpop.permute.xlu0 %3752
        %3754 = vrot.lane.b32.xlu0 %v2212, 94
        %v3755 = vpop.permute.xlu0 %3754
        %3756 = vrot.lane.b32.xlu0 %v2240, 94
        %v3757 = vpop.permute.xlu0 %3756
        %3758 = vrot.lane.b32.xlu0 %v2239, 94
        %v3759 = vpop.permute.xlu0 %3758
        %3760 = vrot.lane.b32.xlu0 %v2213, 94
        %v3761 = vpop.permute.xlu0 %3760
        %3762 = vrot.lane.b32.xlu0 %v2214, 94
        %v3763 = vpop.permute.xlu0 %3762
        %3764 = vrot.lane.b32.xlu0 %v2215, 94
        %v3765 = vpop.permute.xlu0 %3764
        %3766 = vrot.lane.b32.xlu0 %v2216, 94
        %v3767 = vpop.permute.xlu0 %3766
        %3768 = vrot.lane.b32.xlu0 %v2217, 94
        %v3769 = vpop.permute.xlu0 %3768
        %3770 = vrot.lane.b32.xlu0 %v2218, 94
        %v3771 = vpop.permute.xlu0 %3770
        %3772 = vrot.lane.b32.xlu0 %v2219, 94
        %v3773 = vpop.permute.xlu0 %3772
        %3774 = vrot.lane.b32.xlu0 %v2241, 94
        %v3775 = vpop.permute.xlu0 %3774
        %v3776 = vsel %vm1259, %v3741, %v3743
        %v3777 = vsel %vm1259, %v3743, %v3745
        %v3778 = vsel %vm1259, %v3745, %v3747
        %v3779 = vsel %vm1259, %v3747, %v3749
        %v3780 = vsel %vm1259, %v3749, %v3751
        %v3781 = vsel %vm1259, %v3751, %v3753
        %v3782 = vsel %vm1259, %v3753, %v3755
        %v3783 = vsel %vm1259, %v3755, %v3757
        %v3784 = vsel %vm1259, %v3759, %v3761
        %v3785 = vsel %vm1259, %v3761, %v3763
        %v3786 = vsel %vm1259, %v3763, %v3765
        %v3787 = vsel %vm1259, %v3765, %v3767
        %v3788 = vsel %vm1259, %v3767, %v3769
        %v3789 = vsel %vm1259, %v3769, %v3771
        %v3790 = vsel %vm1259, %v3771, %v3773
        %v3791 = vsel %vm1259, %v3773, %v3775
        %3826 = vrot.lane.b32.xlu0 %v2700, 93
        %v3827 = vpop.permute.xlu0 %3826
        %3828 = vrot.lane.b32.xlu0 %v2701, 93
        %v3829 = vpop.permute.xlu0 %3828
        %3830 = vrot.lane.b32.xlu0 %v2702, 93
        %v3831 = vpop.permute.xlu0 %3830
        %3832 = vrot.lane.b32.xlu0 %v2703, 93
        %v3833 = vpop.permute.xlu0 %3832
        %3834 = vrot.lane.b32.xlu0 %v2704, 93
        %v3835 = vpop.permute.xlu0 %3834
        %3836 = vrot.lane.b32.xlu0 %v2705, 93
        %v3837 = vpop.permute.xlu0 %3836
        %3838 = vrot.lane.b32.xlu0 %v2706, 93
        %v3839 = vpop.permute.xlu0 %3838
        %3840 = vrot.lane.b32.xlu0 %v2707, 93
        %v3841 = vpop.permute.xlu0 %3840
        %3842 = vrot.lane.b32.xlu0 %v2708, 93
        %v3843 = vpop.permute.xlu0 %3842
        %3844 = vrot.lane.b32.xlu0 %v2709, 93
        %v3845 = vpop.permute.xlu0 %3844
        %3846 = vrot.lane.b32.xlu0 %v2710, 93
        %v3847 = vpop.permute.xlu0 %3846
        %3848 = vrot.lane.b32.xlu0 %v2711, 93
        %v3849 = vpop.permute.xlu0 %3848
        %3850 = vrot.lane.b32.xlu0 %v2712, 93
        %v3851 = vpop.permute.xlu0 %3850
        %3852 = vrot.lane.b32.xlu0 %v2713, 93
        %v3853 = vpop.permute.xlu0 %3852
        %3854 = vrot.lane.b32.xlu0 %v2714, 93
        %v3855 = vpop.permute.xlu0 %3854
        %3856 = vrot.lane.b32.xlu0 %v2715, 93
        %v3857 = vpop.permute.xlu0 %3856
        %3858 = vrot.lane.b32.xlu0 %v2716, 93
        %v3859 = vpop.permute.xlu0 %3858
        %3860 = vrot.lane.b32.xlu0 %v2717, 93
        %v3861 = vpop.permute.xlu0 %3860
        %v3862 = vsel %vm1273, %v3827, %v3829
        %v3863 = vsel %vm1273, %v3829, %v3831
        %v3864 = vsel %vm1273, %v3831, %v3833
        %v3865 = vsel %vm1273, %v3833, %v3835
        %v3866 = vsel %vm1273, %v3835, %v3837
        %v3867 = vsel %vm1273, %v3837, %v3839
        %v3868 = vsel %vm1273, %v3839, %v3841
        %v3869 = vsel %vm1273, %v3841, %v3843
        %v3870 = vsel %vm1273, %v3845, %v3847
        %v3871 = vsel %vm1273, %v3847, %v3849
        %v3872 = vsel %vm1273, %v3849, %v3851
        %v3873 = vsel %vm1273, %v3851, %v3853
        %v3874 = vsel %vm1273, %v3853, %v3855
        %v3875 = vsel %vm1273, %v3855, %v3857
        %v3876 = vsel %vm1273, %v3857, %v3859
        %v3877 = vsel %vm1273, %v3859, %v3861
        %3912 = vrot.lane.b32.xlu0 %v2750, 92
        %v3913 = vpop.permute.xlu0 %3912
        %3914 = vrot.lane.b32.xlu0 %v2751, 92
        %v3915 = vpop.permute.xlu0 %3914
        %3916 = vrot.lane.b32.xlu0 %v2752, 92
        %v3917 = vpop.permute.xlu0 %3916
        %3918 = vrot.lane.b32.xlu0 %v2753, 92
        %v3919 = vpop.permute.xlu0 %3918
        %3920 = vrot.lane.b32.xlu0 %v2754, 92
        %v3921 = vpop.permute.xlu0 %3920
        %3922 = vrot.lane.b32.xlu0 %v2755, 92
        %v3923 = vpop.permute.xlu0 %3922
        %3924 = vrot.lane.b32.xlu0 %v2756, 92
        %v3925 = vpop.permute.xlu0 %3924
        %3926 = vrot.lane.b32.xlu0 %v2757, 92
        %v3927 = vpop.permute.xlu0 %3926
        %3928 = vrot.lane.b32.xlu0 %v2758, 92
        %v3929 = vpop.permute.xlu0 %3928
        %3930 = vrot.lane.b32.xlu0 %v2759, 92
        %v3931 = vpop.permute.xlu0 %3930
        %3932 = vrot.lane.b32.xlu0 %v2760, 92
        %v3933 = vpop.permute.xlu0 %3932
        %3934 = vrot.lane.b32.xlu0 %v2761, 92
        %v3935 = vpop.permute.xlu0 %3934
        %3936 = vrot.lane.b32.xlu0 %v2762, 92
        %v3937 = vpop.permute.xlu0 %3936
        %3938 = vrot.lane.b32.xlu0 %v2763, 92
        %v3939 = vpop.permute.xlu0 %3938
        %3940 = vrot.lane.b32.xlu0 %v2764, 92
        %v3941 = vpop.permute.xlu0 %3940
        %3942 = vrot.lane.b32.xlu0 %v2765, 92
        %v3943 = vpop.permute.xlu0 %3942
        %3944 = vrot.lane.b32.xlu0 %v2766, 92
        %v3945 = vpop.permute.xlu0 %3944
        %3946 = vrot.lane.b32.xlu0 %v2767, 92
        %v3947 = vpop.permute.xlu0 %3946
        %v3948 = vsel %vm1287, %v3913, %v3915
        %v3949 = vsel %vm1287, %v3915, %v3917
        %v3950 = vsel %vm1287, %v3917, %v3919
        %v3951 = vsel %vm1287, %v3919, %v3921
        %v3952 = vsel %vm1287, %v3921, %v3923
        %v3953 = vsel %vm1287, %v3923, %v3925
        %v3954 = vsel %vm1287, %v3925, %v3927
        %v3955 = vsel %vm1287, %v3927, %v3929
        %v3956 = vsel %vm1287, %v3931, %v3933
        %v3957 = vsel %vm1287, %v3933, %v3935
        %v3958 = vsel %vm1287, %v3935, %v3937
        %v3959 = vsel %vm1287, %v3937, %v3939
        %v3960 = vsel %vm1287, %v3939, %v3941
        %v3961 = vsel %vm1287, %v3941, %v3943
        %v3962 = vsel %vm1287, %v3943, %v3945
        %v3963 = vsel %vm1287, %v3945, %v3947
        %3998 = vrot.lane.b32.xlu0 %v2800, 64
        %v3999 = vpop.permute.xlu0 %3998
        %4000 = vrot.lane.b32.xlu0 %v2801, 64
        %v4001 = vpop.permute.xlu0 %4000
        %4002 = vrot.lane.b32.xlu0 %v2802, 64
        %v4003 = vpop.permute.xlu0 %4002
        %4004 = vrot.lane.b32.xlu0 %v2803, 64
        %v4005 = vpop.permute.xlu0 %4004
        %4006 = vrot.lane.b32.xlu0 %v2804, 64
        %v4007 = vpop.permute.xlu0 %4006
        %4008 = vrot.lane.b32.xlu0 %v2805, 64
        %v4009 = vpop.permute.xlu0 %4008
        %4010 = vrot.lane.b32.xlu0 %v2806, 64
        %v4011 = vpop.permute.xlu0 %4010
        %4012 = vrot.lane.b32.xlu0 %v2807, 64
        %v4013 = vpop.permute.xlu0 %4012
        %4014 = vrot.lane.b32.xlu0 %v2808, 64
        %v4015 = vpop.permute.xlu0 %4014
        %4016 = vrot.lane.b32.xlu0 %v2809, 64
        %v4017 = vpop.permute.xlu0 %4016
        %4018 = vrot.lane.b32.xlu0 %v2810, 64
        %v4019 = vpop.permute.xlu0 %4018
        %4020 = vrot.lane.b32.xlu0 %v2811, 64
        %v4021 = vpop.permute.xlu0 %4020
        %4022 = vrot.lane.b32.xlu0 %v2812, 64
        %v4023 = vpop.permute.xlu0 %4022
        %4024 = vrot.lane.b32.xlu0 %v2813, 64
        %v4025 = vpop.permute.xlu0 %4024
        %4026 = vrot.lane.b32.xlu0 %v2814, 64
        %v4027 = vpop.permute.xlu0 %4026
        %4028 = vrot.lane.b32.xlu0 %v2815, 64
        %v4029 = vpop.permute.xlu0 %4028
        %4030 = vrot.lane.b32.xlu0 %v2816, 64
        %v4031 = vpop.permute.xlu0 %4030
        %4032 = vrot.lane.b32.xlu0 %v2817, 64
        %v4033 = vpop.permute.xlu0 %4032
        %v4034 = vsel %vm738, %v3999, %v4001
        %v4035 = vsel %vm738, %v4001, %v4003
        %v4036 = vsel %vm738, %v4003, %v4005
        %v4037 = vsel %vm738, %v4005, %v4007
        %v4038 = vsel %vm738, %v4007, %v4009
        %v4039 = vsel %vm738, %v4009, %v4011
        %v4040 = vsel %vm738, %v4011, %v4013
        %v4041 = vsel %vm738, %v4013, %v4015
        %v4042 = vsel %vm738, %v4017, %v4019
        %v4043 = vsel %vm738, %v4019, %v4021
        %v4044 = vsel %vm738, %v4021, %v4023
        %v4045 = vsel %vm738, %v4023, %v4025
        %v4046 = vsel %vm738, %v4025, %v4027
        %v4047 = vsel %vm738, %v4027, %v4029
        %v4048 = vsel %vm738, %v4029, %v4031
        %v4049 = vsel %vm738, %v4031, %v4033
        %4084 = vrot.lane.b32.xlu0 %v2850, 63
        %v4085 = vpop.permute.xlu0 %4084
        %4086 = vrot.lane.b32.xlu0 %v2851, 63
        %v4087 = vpop.permute.xlu0 %4086
        %4088 = vrot.lane.b32.xlu0 %v2852, 63
        %v4089 = vpop.permute.xlu0 %4088
        %4090 = vrot.lane.b32.xlu0 %v2853, 63
        %v4091 = vpop.permute.xlu0 %4090
        %4092 = vrot.lane.b32.xlu0 %v2854, 63
        %v4093 = vpop.permute.xlu0 %4092
        %4094 = vrot.lane.b32.xlu0 %v2855, 63
        %v4095 = vpop.permute.xlu0 %4094
        %4096 = vrot.lane.b32.xlu0 %v2856, 63
        %v4097 = vpop.permute.xlu0 %4096
        %4098 = vrot.lane.b32.xlu0 %v2857, 63
        %v4099 = vpop.permute.xlu0 %4098
        %4100 = vrot.lane.b32.xlu0 %v2858, 63
        %v4101 = vpop.permute.xlu0 %4100
        %4102 = vrot.lane.b32.xlu0 %v2859, 63
        %v4103 = vpop.permute.xlu0 %4102
        %4104 = vrot.lane.b32.xlu0 %v2860, 63
        %v4105 = vpop.permute.xlu0 %4104
        %4106 = vrot.lane.b32.xlu0 %v2861, 63
        %v4107 = vpop.permute.xlu0 %4106
        %4108 = vrot.lane.b32.xlu0 %v2862, 63
        %v4109 = vpop.permute.xlu0 %4108
        %4110 = vrot.lane.b32.xlu0 %v2863, 63
        %v4111 = vpop.permute.xlu0 %4110
        %4112 = vrot.lane.b32.xlu0 %v2864, 63
        %v4113 = vpop.permute.xlu0 %4112
        %4114 = vrot.lane.b32.xlu0 %v2865, 63
        %v4115 = vpop.permute.xlu0 %4114
        %4116 = vrot.lane.b32.xlu0 %v2866, 63
        %v4117 = vpop.permute.xlu0 %4116
        %4118 = vrot.lane.b32.xlu0 %v2867, 63
        %v4119 = vpop.permute.xlu0 %4118
        %vm4120 = vcmask 515072
        %v4121 = vsel %vm4120, %v4085, %v4087
        %v4122 = vsel %vm4120, %v4087, %v4089
        %v4123 = vsel %vm4120, %v4089, %v4091
        %v4124 = vsel %vm4120, %v4091, %v4093
        %v4125 = vsel %vm4120, %v4093, %v4095
        %v4126 = vsel %vm4120, %v4095, %v4097
        %v4127 = vsel %vm4120, %v4097, %v4099
        %v4128 = vsel %vm4120, %v4099, %v4101
        %v4129 = vsel %vm4120, %v4103, %v4105
        %v4130 = vsel %vm4120, %v4105, %v4107
        %v4131 = vsel %vm4120, %v4107, %v4109
        %v4132 = vsel %vm4120, %v4109, %v4111
        %v4133 = vsel %vm4120, %v4111, %v4113
        %v4134 = vsel %vm4120, %v4113, %v4115
        %v4135 = vsel %vm4120, %v4115, %v4117
        %v4136 = vsel %vm4120, %v4117, %v4119
        %4153 = vrot.lane.b32.xlu0 %v2238, 62
        %v4154 = vpop.permute.xlu0 %4153
        %4155 = vrot.lane.b32.xlu0 %v2206, 62
        %v4156 = vpop.permute.xlu0 %4155
        %4157 = vrot.lane.b32.xlu0 %v2207, 62
        %v4158 = vpop.permute.xlu0 %4157
        %4159 = vrot.lane.b32.xlu0 %v2208, 62
        %v4160 = vpop.permute.xlu0 %4159
        %4161 = vrot.lane.b32.xlu0 %v2209, 62
        %v4162 = vpop.permute.xlu0 %4161
        %4163 = vrot.lane.b32.xlu0 %v2210, 62
        %v4164 = vpop.permute.xlu0 %4163
        %4165 = vrot.lane.b32.xlu0 %v2211, 62
        %v4166 = vpop.permute.xlu0 %4165
        %4167 = vrot.lane.b32.xlu0 %v2212, 62
        %v4168 = vpop.permute.xlu0 %4167
        %4169 = vrot.lane.b32.xlu0 %v2240, 62
        %v4170 = vpop.permute.xlu0 %4169
        %4171 = vrot.lane.b32.xlu0 %v2239, 62
        %v4172 = vpop.permute.xlu0 %4171
        %4173 = vrot.lane.b32.xlu0 %v2213, 62
        %v4174 = vpop.permute.xlu0 %4173
        %4175 = vrot.lane.b32.xlu0 %v2214, 62
        %v4176 = vpop.permute.xlu0 %4175
        %4177 = vrot.lane.b32.xlu0 %v2215, 62
        %v4178 = vpop.permute.xlu0 %4177
        %4179 = vrot.lane.b32.xlu0 %v2216, 62
        %v4180 = vpop.permute.xlu0 %4179
        %4181 = vrot.lane.b32.xlu0 %v2217, 62
        %v4182 = vpop.permute.xlu0 %4181
        %4183 = vrot.lane.b32.xlu0 %v2218, 62
        %v4184 = vpop.permute.xlu0 %4183
        %4185 = vrot.lane.b32.xlu0 %v2219, 62
        %v4186 = vpop.permute.xlu0 %4185
        %4187 = vrot.lane.b32.xlu0 %v2241, 62
        %v4188 = vpop.permute.xlu0 %4187
        %vm4189 = vcmask 506880
        %v4190 = vsel %vm4189, %v4154, %v4156
        %v4191 = vsel %vm4189, %v4156, %v4158
        %v4192 = vsel %vm4189, %v4158, %v4160
        %v4193 = vsel %vm4189, %v4160, %v4162
        %v4194 = vsel %vm4189, %v4162, %v4164
        %v4195 = vsel %vm4189, %v4164, %v4166
        %v4196 = vsel %vm4189, %v4166, %v4168
        %v4197 = vsel %vm4189, %v4168, %v4170
        %v4198 = vsel %vm4189, %v4172, %v4174
        %v4199 = vsel %vm4189, %v4174, %v4176
        %v4200 = vsel %vm4189, %v4176, %v4178
        %v4201 = vsel %vm4189, %v4178, %v4180
        %v4202 = vsel %vm4189, %v4180, %v4182
        %v4203 = vsel %vm4189, %v4182, %v4184
        %v4204 = vsel %vm4189, %v4184, %v4186
        %v4205 = vsel %vm4189, %v4186, %v4188
        %4240 = vrot.lane.b32.xlu0 %v2900, 61
        %v4241 = vpop.permute.xlu0 %4240
        %4242 = vrot.lane.b32.xlu0 %v2901, 61
        %v4243 = vpop.permute.xlu0 %4242
        %4244 = vrot.lane.b32.xlu0 %v2902, 61
        %v4245 = vpop.permute.xlu0 %4244
        %4246 = vrot.lane.b32.xlu0 %v2903, 61
        %v4247 = vpop.permute.xlu0 %4246
        %4248 = vrot.lane.b32.xlu0 %v2904, 61
        %v4249 = vpop.permute.xlu0 %4248
        %4250 = vrot.lane.b32.xlu0 %v2905, 61
        %v4251 = vpop.permute.xlu0 %4250
        %4252 = vrot.lane.b32.xlu0 %v2906, 61
        %v4253 = vpop.permute.xlu0 %4252
        %4254 = vrot.lane.b32.xlu0 %v2907, 61
        %v4255 = vpop.permute.xlu0 %4254
        %4256 = vrot.lane.b32.xlu0 %v2908, 61
        %v4257 = vpop.permute.xlu0 %4256
        %4258 = vrot.lane.b32.xlu0 %v2909, 61
        %v4259 = vpop.permute.xlu0 %4258
        %4260 = vrot.lane.b32.xlu0 %v2910, 61
        %v4261 = vpop.permute.xlu0 %4260
        %4262 = vrot.lane.b32.xlu0 %v2911, 61
        %v4263 = vpop.permute.xlu0 %4262
        %4264 = vrot.lane.b32.xlu0 %v2912, 61
        %v4265 = vpop.permute.xlu0 %4264
        %4266 = vrot.lane.b32.xlu0 %v2913, 61
        %v4267 = vpop.permute.xlu0 %4266
        %4268 = vrot.lane.b32.xlu0 %v2914, 61
        %v4269 = vpop.permute.xlu0 %4268
        %4270 = vrot.lane.b32.xlu0 %v2915, 61
        %v4271 = vpop.permute.xlu0 %4270
        %4272 = vrot.lane.b32.xlu0 %v2916, 61
        %v4273 = vpop.permute.xlu0 %4272
        %4274 = vrot.lane.b32.xlu0 %v2917, 61
        %v4275 = vpop.permute.xlu0 %4274
        %vm4276 = vcmask 498688
        %v4277 = vsel %vm4276, %v4241, %v4243
        %v4278 = vsel %vm4276, %v4243, %v4245
        %v4279 = vsel %vm4276, %v4245, %v4247
        %v4280 = vsel %vm4276, %v4247, %v4249
        %v4281 = vsel %vm4276, %v4249, %v4251
        %v4282 = vsel %vm4276, %v4251, %v4253
        %v4283 = vsel %vm4276, %v4253, %v4255
        %v4284 = vsel %vm4276, %v4255, %v4257
        %v4285 = vsel %vm4276, %v4259, %v4261
        %v4286 = vsel %vm4276, %v4261, %v4263
        %v4287 = vsel %vm4276, %v4263, %v4265
        %v4288 = vsel %vm4276, %v4265, %v4267
        %v4289 = vsel %vm4276, %v4267, %v4269
        %v4290 = vsel %vm4276, %v4269, %v4271
        %v4291 = vsel %vm4276, %v4271, %v4273
        %v4292 = vsel %vm4276, %v4273, %v4275
        %4327 = vrot.lane.b32.xlu0 %v2950, 60
        %v4328 = vpop.permute.xlu0 %4327
        %4329 = vrot.lane.b32.xlu0 %v2951, 60
        %v4330 = vpop.permute.xlu0 %4329
        %4331 = vrot.lane.b32.xlu0 %v2952, 60
        %v4332 = vpop.permute.xlu0 %4331
        %4333 = vrot.lane.b32.xlu0 %v2953, 60
        %v4334 = vpop.permute.xlu0 %4333
        %4335 = vrot.lane.b32.xlu0 %v2954, 60
        %v4336 = vpop.permute.xlu0 %4335
        %4337 = vrot.lane.b32.xlu0 %v2955, 60
        %v4338 = vpop.permute.xlu0 %4337
        %4339 = vrot.lane.b32.xlu0 %v2956, 60
        %v4340 = vpop.permute.xlu0 %4339
        %4341 = vrot.lane.b32.xlu0 %v2957, 60
        %v4342 = vpop.permute.xlu0 %4341
        %4343 = vrot.lane.b32.xlu0 %v2958, 60
        %v4344 = vpop.permute.xlu0 %4343
        %4345 = vrot.lane.b32.xlu0 %v2959, 60
        %v4346 = vpop.permute.xlu0 %4345
        %4347 = vrot.lane.b32.xlu0 %v2960, 60
        %v4348 = vpop.permute.xlu0 %4347
        %4349 = vrot.lane.b32.xlu0 %v2961, 60
        %v4350 = vpop.permute.xlu0 %4349
        %4351 = vrot.lane.b32.xlu0 %v2962, 60
        %v4352 = vpop.permute.xlu0 %4351
        %4353 = vrot.lane.b32.xlu0 %v2963, 60
        %v4354 = vpop.permute.xlu0 %4353
        %4355 = vrot.lane.b32.xlu0 %v2964, 60
        %v4356 = vpop.permute.xlu0 %4355
        %4357 = vrot.lane.b32.xlu0 %v2965, 60
        %v4358 = vpop.permute.xlu0 %4357
        %4359 = vrot.lane.b32.xlu0 %v2966, 60
        %v4360 = vpop.permute.xlu0 %4359
        %4361 = vrot.lane.b32.xlu0 %v2967, 60
        %v4362 = vpop.permute.xlu0 %4361
        %vm4363 = vcmask 490496
        %v4364 = vsel %vm4363, %v4328, %v4330
        %v4365 = vsel %vm4363, %v4330, %v4332
        %v4366 = vsel %vm4363, %v4332, %v4334
        %v4367 = vsel %vm4363, %v4334, %v4336
        %v4368 = vsel %vm4363, %v4336, %v4338
        %v4369 = vsel %vm4363, %v4338, %v4340
        %v4370 = vsel %vm4363, %v4340, %v4342
        %v4371 = vsel %vm4363, %v4342, %v4344
        %v4372 = vsel %vm4363, %v4346, %v4348
        %v4373 = vsel %vm4363, %v4348, %v4350
        %v4374 = vsel %vm4363, %v4350, %v4352
        %v4375 = vsel %vm4363, %v4352, %v4354
        %v4376 = vsel %vm4363, %v4354, %v4356
        %v4377 = vsel %vm4363, %v4356, %v4358
        %v4378 = vsel %vm4363, %v4358, %v4360
        %v4379 = vsel %vm4363, %v4360, %v4362
        %4414 = vrot.lane.b32.xlu0 %v3000, 32
        %v4415 = vpop.permute.xlu0 %4414
        %4416 = vrot.lane.b32.xlu0 %v3001, 32
        %v4417 = vpop.permute.xlu0 %4416
        %4418 = vrot.lane.b32.xlu0 %v3002, 32
        %v4419 = vpop.permute.xlu0 %4418
        %4420 = vrot.lane.b32.xlu0 %v3003, 32
        %v4421 = vpop.permute.xlu0 %4420
        %4422 = vrot.lane.b32.xlu0 %v3004, 32
        %v4423 = vpop.permute.xlu0 %4422
        %4424 = vrot.lane.b32.xlu0 %v3005, 32
        %v4425 = vpop.permute.xlu0 %4424
        %4426 = vrot.lane.b32.xlu0 %v3006, 32
        %v4427 = vpop.permute.xlu0 %4426
        %4428 = vrot.lane.b32.xlu0 %v3007, 32
        %v4429 = vpop.permute.xlu0 %4428
        %4430 = vrot.lane.b32.xlu0 %v3008, 32
        %v4431 = vpop.permute.xlu0 %4430
        %4432 = vrot.lane.b32.xlu0 %v3009, 32
        %v4433 = vpop.permute.xlu0 %4432
        %4434 = vrot.lane.b32.xlu0 %v3010, 32
        %v4435 = vpop.permute.xlu0 %4434
        %4436 = vrot.lane.b32.xlu0 %v3011, 32
        %v4437 = vpop.permute.xlu0 %4436
        %4438 = vrot.lane.b32.xlu0 %v3012, 32
        %v4439 = vpop.permute.xlu0 %4438
        %4440 = vrot.lane.b32.xlu0 %v3013, 32
        %v4441 = vpop.permute.xlu0 %4440
        %4442 = vrot.lane.b32.xlu0 %v3014, 32
        %v4443 = vpop.permute.xlu0 %4442
        %4444 = vrot.lane.b32.xlu0 %v3015, 32
        %v4445 = vpop.permute.xlu0 %4444
        %4446 = vrot.lane.b32.xlu0 %v3016, 32
        %v4447 = vpop.permute.xlu0 %4446
        %4448 = vrot.lane.b32.xlu0 %v3017, 32
        %v4449 = vpop.permute.xlu0 %4448
        %v4450 = vsel %vm964, %v4415, %v4417
        %v4451 = vsel %vm964, %v4417, %v4419
        %v4452 = vsel %vm964, %v4419, %v4421
        %v4453 = vsel %vm964, %v4421, %v4423
        %v4454 = vsel %vm964, %v4423, %v4425
        %v4455 = vsel %vm964, %v4425, %v4427
        %v4456 = vsel %vm964, %v4427, %v4429
        %v4457 = vsel %vm964, %v4429, %v4431
        %v4458 = vsel %vm964, %v4433, %v4435
        %v4459 = vsel %vm964, %v4435, %v4437
        %v4460 = vsel %vm964, %v4437, %v4439
        %v4461 = vsel %vm964, %v4439, %v4441
        %v4462 = vsel %vm964, %v4441, %v4443
        %v4463 = vsel %vm964, %v4443, %v4445
        %v4464 = vsel %vm964, %v4445, %v4447
        %v4465 = vsel %vm964, %v4447, %v4449
        %4482 = vrot.lane.b32.xlu0 %v2238, 127
        %v4483 = vpop.permute.xlu0 %4482
        %4484 = vrot.lane.b32.xlu0 %v2206, 127
        %v4485 = vpop.permute.xlu0 %4484
        %4486 = vrot.lane.b32.xlu0 %v2207, 127
        %v4487 = vpop.permute.xlu0 %4486
        %4488 = vrot.lane.b32.xlu0 %v2208, 127
        %v4489 = vpop.permute.xlu0 %4488
        %4490 = vrot.lane.b32.xlu0 %v2209, 127
        %v4491 = vpop.permute.xlu0 %4490
        %4492 = vrot.lane.b32.xlu0 %v2210, 127
        %v4493 = vpop.permute.xlu0 %4492
        %4494 = vrot.lane.b32.xlu0 %v2211, 127
        %v4495 = vpop.permute.xlu0 %4494
        %4496 = vrot.lane.b32.xlu0 %v2212, 127
        %v4497 = vpop.permute.xlu0 %4496
        %4498 = vrot.lane.b32.xlu0 %v2240, 127
        %v4499 = vpop.permute.xlu0 %4498
        %4500 = vrot.lane.b32.xlu0 %v2239, 127
        %v4501 = vpop.permute.xlu0 %4500
        %4502 = vrot.lane.b32.xlu0 %v2213, 127
        %v4503 = vpop.permute.xlu0 %4502
        %4504 = vrot.lane.b32.xlu0 %v2214, 127
        %v4505 = vpop.permute.xlu0 %4504
        %4506 = vrot.lane.b32.xlu0 %v2215, 127
        %v4507 = vpop.permute.xlu0 %4506
        %4508 = vrot.lane.b32.xlu0 %v2216, 127
        %v4509 = vpop.permute.xlu0 %4508
        %4510 = vrot.lane.b32.xlu0 %v2217, 127
        %v4511 = vpop.permute.xlu0 %4510
        %4512 = vrot.lane.b32.xlu0 %v2218, 127
        %v4513 = vpop.permute.xlu0 %4512
        %4514 = vrot.lane.b32.xlu0 %v2219, 127
        %v4515 = vpop.permute.xlu0 %4514
        %4516 = vrot.lane.b32.xlu0 %v2241, 127
        %v4517 = vpop.permute.xlu0 %4516
        %v4518 = vsel %vm1112, %v4483, %v4485
        %v4519 = vsel %vm1112, %v4485, %v4487
        %v4520 = vsel %vm1112, %v4487, %v4489
        %v4521 = vsel %vm1112, %v4489, %v4491
        %v4522 = vsel %vm1112, %v4491, %v4493
        %v4523 = vsel %vm1112, %v4493, %v4495
        %v4524 = vsel %vm1112, %v4495, %v4497
        %v4525 = vsel %vm1112, %v4497, %v4499
        %v4526 = vsel %vm1112, %v4501, %v4503
        %v4527 = vsel %vm1112, %v4503, %v4505
        %v4528 = vsel %vm1112, %v4505, %v4507
        %v4529 = vsel %vm1112, %v4507, %v4509
        %v4530 = vsel %vm1112, %v4509, %v4511
        %v4531 = vsel %vm1112, %v4511, %v4513
        %v4532 = vsel %vm1112, %v4513, %v4515
        %v4533 = vsel %vm1112, %v4515, %v4517
        %4552 = vrot.lane.b32.xlu0 %v3102, 126
        %v4553 = vpop.permute.xlu0 %4552
        %4554 = vrot.lane.b32.xlu0 %v3103, 126
        %v4555 = vpop.permute.xlu0 %4554
        %4556 = vrot.lane.b32.xlu0 %v3104, 126
        %v4557 = vpop.permute.xlu0 %4556
        %4558 = vrot.lane.b32.xlu0 %v3105, 126
        %v4559 = vpop.permute.xlu0 %4558
        %4560 = vrot.lane.b32.xlu0 %v3106, 126
        %v4561 = vpop.permute.xlu0 %4560
        %4562 = vrot.lane.b32.xlu0 %v3107, 126
        %v4563 = vpop.permute.xlu0 %4562
        %4564 = vrot.lane.b32.xlu0 %v3108, 126
        %v4565 = vpop.permute.xlu0 %4564
        %4566 = vrot.lane.b32.xlu0 %v3109, 126
        %v4567 = vpop.permute.xlu0 %4566
        %4568 = vrot.lane.b32.xlu0 %v3110, 126
        %v4569 = vpop.permute.xlu0 %4568
        %4570 = vrot.lane.b32.xlu0 %v3111, 126
        %v4571 = vpop.permute.xlu0 %4570
        %4572 = vrot.lane.b32.xlu0 %v3112, 126
        %v4573 = vpop.permute.xlu0 %4572
        %4574 = vrot.lane.b32.xlu0 %v3113, 126
        %v4575 = vpop.permute.xlu0 %4574
        %4576 = vrot.lane.b32.xlu0 %v3114, 126
        %v4577 = vpop.permute.xlu0 %4576
        %4578 = vrot.lane.b32.xlu0 %v3115, 126
        %v4579 = vpop.permute.xlu0 %4578
        %4580 = vrot.lane.b32.xlu0 %v3116, 126
        %v4581 = vpop.permute.xlu0 %4580
        %4582 = vrot.lane.b32.xlu0 %v3117, 126
        %v4583 = vpop.permute.xlu0 %4582
        %4584 = vrot.lane.b32.xlu0 %v3118, 126
        %v4585 = vpop.permute.xlu0 %4584
        %4586 = vrot.lane.b32.xlu0 %v3119, 126
        %v4587 = vpop.permute.xlu0 %4586
        %v4588 = vsel %vm1125, %v4553, %v4555
        %v4589 = vsel %vm1125, %v4555, %v4557
        %v4590 = vsel %vm1125, %v4557, %v4559
        %v4591 = vsel %vm1125, %v4559, %v4561
        %v4592 = vsel %vm1125, %v4561, %v4563
        %v4593 = vsel %vm1125, %v4563, %v4565
        %v4594 = vsel %vm1125, %v4565, %v4567
        %v4595 = vsel %vm1125, %v4567, %v4569
        %v4596 = vsel %vm1125, %v4571, %v4573
        %v4597 = vsel %vm1125, %v4573, %v4575
        %v4598 = vsel %vm1125, %v4575, %v4577
        %v4599 = vsel %vm1125, %v4577, %v4579
        %v4600 = vsel %vm1125, %v4579, %v4581
        %v4601 = vsel %vm1125, %v4581, %v4583
        %v4602 = vsel %vm1125, %v4583, %v4585
        %v4603 = vsel %vm1125, %v4585, %v4587
        %4622 = vrot.lane.b32.xlu0 %v3153, 125
        %v4623 = vpop.permute.xlu0 %4622
        %4624 = vrot.lane.b32.xlu0 %v3154, 125
        %v4625 = vpop.permute.xlu0 %4624
        %4626 = vrot.lane.b32.xlu0 %v3155, 125
        %v4627 = vpop.permute.xlu0 %4626
        %4628 = vrot.lane.b32.xlu0 %v3156, 125
        %v4629 = vpop.permute.xlu0 %4628
        %4630 = vrot.lane.b32.xlu0 %v3157, 125
        %v4631 = vpop.permute.xlu0 %4630
        %4632 = vrot.lane.b32.xlu0 %v3158, 125
        %v4633 = vpop.permute.xlu0 %4632
        %4634 = vrot.lane.b32.xlu0 %v3159, 125
        %v4635 = vpop.permute.xlu0 %4634
        %4636 = vrot.lane.b32.xlu0 %v3160, 125
        %v4637 = vpop.permute.xlu0 %4636
        %4638 = vrot.lane.b32.xlu0 %v3161, 125
        %v4639 = vpop.permute.xlu0 %4638
        %4640 = vrot.lane.b32.xlu0 %v3162, 125
        %v4641 = vpop.permute.xlu0 %4640
        %4642 = vrot.lane.b32.xlu0 %v3163, 125
        %v4643 = vpop.permute.xlu0 %4642
        %4644 = vrot.lane.b32.xlu0 %v3164, 125
        %v4645 = vpop.permute.xlu0 %4644
        %4646 = vrot.lane.b32.xlu0 %v3165, 125
        %v4647 = vpop.permute.xlu0 %4646
        %4648 = vrot.lane.b32.xlu0 %v3166, 125
        %v4649 = vpop.permute.xlu0 %4648
        %4650 = vrot.lane.b32.xlu0 %v3167, 125
        %v4651 = vpop.permute.xlu0 %4650
        %4652 = vrot.lane.b32.xlu0 %v3168, 125
        %v4653 = vpop.permute.xlu0 %4652
        %4654 = vrot.lane.b32.xlu0 %v3169, 125
        %v4655 = vpop.permute.xlu0 %4654
        %4656 = vrot.lane.b32.xlu0 %v3170, 125
        %v4657 = vpop.permute.xlu0 %4656
        %v4658 = vsel %vm1139, %v4623, %v4625
        %v4659 = vsel %vm1139, %v4625, %v4627
        %v4660 = vsel %vm1139, %v4627, %v4629
        %v4661 = vsel %vm1139, %v4629, %v4631
        %v4662 = vsel %vm1139, %v4631, %v4633
        %v4663 = vsel %vm1139, %v4633, %v4635
        %v4664 = vsel %vm1139, %v4635, %v4637
        %v4665 = vsel %vm1139, %v4637, %v4639
        %v4666 = vsel %vm1139, %v4641, %v4643
        %v4667 = vsel %vm1139, %v4643, %v4645
        %v4668 = vsel %vm1139, %v4645, %v4647
        %v4669 = vsel %vm1139, %v4647, %v4649
        %v4670 = vsel %vm1139, %v4649, %v4651
        %v4671 = vsel %vm1139, %v4651, %v4653
        %v4672 = vsel %vm1139, %v4653, %v4655
        %v4673 = vsel %vm1139, %v4655, %v4657
        %4690 = vrot.lane.b32.xlu0 %v3171, 97
        %v4691 = vpop.permute.xlu0 %4690
        %4692 = vrot.lane.b32.xlu0 %v3172, 97
        %v4693 = vpop.permute.xlu0 %4692
        %4694 = vrot.lane.b32.xlu0 %v3173, 97
        %v4695 = vpop.permute.xlu0 %4694
        %4696 = vrot.lane.b32.xlu0 %v3174, 97
        %v4697 = vpop.permute.xlu0 %4696
        %4698 = vrot.lane.b32.xlu0 %v3175, 97
        %v4699 = vpop.permute.xlu0 %4698
        %4700 = vrot.lane.b32.xlu0 %v3176, 97
        %v4701 = vpop.permute.xlu0 %4700
        %4702 = vrot.lane.b32.xlu0 %v3177, 97
        %v4703 = vpop.permute.xlu0 %4702
        %4704 = vrot.lane.b32.xlu0 %v3178, 97
        %v4705 = vpop.permute.xlu0 %4704
        %4706 = vrot.lane.b32.xlu0 %v3179, 97
        %v4707 = vpop.permute.xlu0 %4706
        %4708 = vrot.lane.b32.xlu0 %v3180, 97
        %v4709 = vpop.permute.xlu0 %4708
        %4710 = vrot.lane.b32.xlu0 %v3181, 97
        %v4711 = vpop.permute.xlu0 %4710
        %4712 = vrot.lane.b32.xlu0 %v3182, 97
        %v4713 = vpop.permute.xlu0 %4712
        %4714 = vrot.lane.b32.xlu0 %v3183, 97
        %v4715 = vpop.permute.xlu0 %4714
        %4716 = vrot.lane.b32.xlu0 %v3184, 97
        %v4717 = vpop.permute.xlu0 %4716
        %4718 = vrot.lane.b32.xlu0 %v3185, 97
        %v4719 = vpop.permute.xlu0 %4718
        %4720 = vrot.lane.b32.xlu0 %v3186, 97
        %v4721 = vpop.permute.xlu0 %4720
        %v4722 = vsel %vm3034, %v4691, %v4693
        %v4723 = vsel %vm3034, %v4693, %v4695
        %v4724 = vsel %vm3034, %v4695, %v4697
        %v4725 = vsel %vm3034, %v4697, %v4699
        %v4726 = vsel %vm3034, %v4699, %v4701
        %v4727 = vsel %vm3034, %v4701, %v4703
        %v4728 = vsel %vm3034, %v4703, %v4705
        %v4729 = vsel %vm3034, %v4707, %v4709
        %v4730 = vsel %vm3034, %v4709, %v4711
        %v4731 = vsel %vm3034, %v4711, %v4713
        %v4732 = vsel %vm3034, %v4713, %v4715
        %v4733 = vsel %vm3034, %v4715, %v4717
        %v4734 = vsel %vm3034, %v4717, %v4719
        %v4735 = vsel %vm3034, %v4719, %v4721
        %4753 = vrot.lane.b32.xlu0 %v3187, 96
        %v4754 = vpop.permute.xlu0 %4753
        %4755 = vrot.lane.b32.xlu0 %v3188, 96
        %v4756 = vpop.permute.xlu0 %4755
        %4757 = vrot.lane.b32.xlu0 %v3189, 96
        %v4758 = vpop.permute.xlu0 %4757
        %4759 = vrot.lane.b32.xlu0 %v3190, 96
        %v4760 = vpop.permute.xlu0 %4759
        %4761 = vrot.lane.b32.xlu0 %v3191, 96
        %v4762 = vpop.permute.xlu0 %4761
        %4763 = vrot.lane.b32.xlu0 %v3192, 96
        %v4764 = vpop.permute.xlu0 %4763
        %4765 = vrot.lane.b32.xlu0 %v3193, 96
        %v4766 = vpop.permute.xlu0 %4765
        %4767 = vrot.lane.b32.xlu0 %v3194, 96
        %v4768 = vpop.permute.xlu0 %4767
        %4769 = vrot.lane.b32.xlu0 %v3195, 96
        %v4770 = vpop.permute.xlu0 %4769
        %4771 = vrot.lane.b32.xlu0 %v3196, 96
        %v4772 = vpop.permute.xlu0 %4771
        %4773 = vrot.lane.b32.xlu0 %v3197, 96
        %v4774 = vpop.permute.xlu0 %4773
        %4775 = vrot.lane.b32.xlu0 %v3198, 96
        %v4776 = vpop.permute.xlu0 %4775
        %4777 = vrot.lane.b32.xlu0 %v3199, 96
        %v4778 = vpop.permute.xlu0 %4777
        %4779 = vrot.lane.b32.xlu0 %v3200, 96
        %v4780 = vpop.permute.xlu0 %4779
        %4781 = vrot.lane.b32.xlu0 %v3201, 96
        %v4782 = vpop.permute.xlu0 %4781
        %4783 = vrot.lane.b32.xlu0 %v3202, 96
        %v4784 = vpop.permute.xlu0 %4783
        %4785 = vrot.lane.b32.xlu0 %v3203, 96
        %v4786 = vpop.permute.xlu0 %4785
        %v4787 = vsel %vm1234, %v4754, %v4756
        %v4788 = vsel %vm1234, %v4756, %v4758
        %v4789 = vsel %vm1234, %v4758, %v4760
        %v4790 = vsel %vm1234, %v4760, %v4762
        %v4791 = vsel %vm1234, %v4762, %v4764
        %v4792 = vsel %vm1234, %v4764, %v4766
        %v4793 = vsel %vm1234, %v4766, %v4768
        %v4794 = vsel %vm1234, %v4768, %v4770
        %v4795 = vsel %vm1234, %v4772, %v4774
        %v4796 = vsel %vm1234, %v4774, %v4776
        %v4797 = vsel %vm1234, %v4776, %v4778
        %v4798 = vsel %vm1234, %v4778, %v4780
        %v4799 = vsel %vm1234, %v4780, %v4782
        %v4800 = vsel %vm1234, %v4782, %v4784
        %v4801 = vsel %vm1234, %v4784, %v4786
        %v4802 = vsel %vm1234, %v4786, %v4770
        %4804 = vrot.lane.b32.xlu0 %v2206, 95
        %v4805 = vpop.permute.xlu0 %4804
        %4806 = vrot.lane.b32.xlu0 %v2207, 95
        %v4807 = vpop.permute.xlu0 %4806
        %4808 = vrot.lane.b32.xlu0 %v2208, 95
        %v4809 = vpop.permute.xlu0 %4808
        %4810 = vrot.lane.b32.xlu0 %v2209, 95
        %v4811 = vpop.permute.xlu0 %4810
        %4812 = vrot.lane.b32.xlu0 %v2210, 95
        %v4813 = vpop.permute.xlu0 %4812
        %4814 = vrot.lane.b32.xlu0 %v2211, 95
        %v4815 = vpop.permute.xlu0 %4814
        %4816 = vrot.lane.b32.xlu0 %v2212, 95
        %v4817 = vpop.permute.xlu0 %4816
        %4818 = vrot.lane.b32.xlu0 %v2240, 95
        %v4819 = vpop.permute.xlu0 %4818
        %4820 = vrot.lane.b32.xlu0 0.0, 95
        %v4821 = vpop.permute.xlu0 %4820
        %4822 = vrot.lane.b32.xlu0 %v2213, 95
        %v4823 = vpop.permute.xlu0 %4822
        %4824 = vrot.lane.b32.xlu0 %v2214, 95
        %v4825 = vpop.permute.xlu0 %4824
        %4826 = vrot.lane.b32.xlu0 %v2215, 95
        %v4827 = vpop.permute.xlu0 %4826
        %4828 = vrot.lane.b32.xlu0 %v2216, 95
        %v4829 = vpop.permute.xlu0 %4828
        %4830 = vrot.lane.b32.xlu0 %v2217, 95
        %v4831 = vpop.permute.xlu0 %4830
        %4832 = vrot.lane.b32.xlu0 %v2218, 95
        %v4833 = vpop.permute.xlu0 %4832
        %4834 = vrot.lane.b32.xlu0 %v2219, 95
        %v4835 = vpop.permute.xlu0 %4834
        %4836 = vrot.lane.b32.xlu0 %v2241, 95
        %v4837 = vpop.permute.xlu0 %4836
        %v4838 = vsel %vm1248, %v4805, %v4807
        %v4839 = vsel %vm1248, %v4807, %v4809
        %v4840 = vsel %vm1248, %v4809, %v4811
        %v4841 = vsel %vm1248, %v4811, %v4813
        %v4842 = vsel %vm1248, %v4813, %v4815
        %v4843 = vsel %vm1248, %v4815, %v4817
        %v4844 = vsel %vm1248, %v4817, %v4819
        %v4845 = vsel %vm1248, %v4819, %v4821
        %v4846 = vsel %vm1248, %v4823, %v4825
        %v4847 = vsel %vm1248, %v4825, %v4827
        %v4848 = vsel %vm1248, %v4827, %v4829
        %v4849 = vsel %vm1248, %v4829, %v4831
        %v4850 = vsel %vm1248, %v4831, %v4833
        %v4851 = vsel %vm1248, %v4833, %v4835
        %v4852 = vsel %vm1248, %v4835, %v4837
        %v4853 = vsel %vm1248, %v4837, %v4821
        %4871 = vrot.lane.b32.xlu0 %v3204, 94
        %v4872 = vpop.permute.xlu0 %4871
        %4873 = vrot.lane.b32.xlu0 %v3205, 94
        %v4874 = vpop.permute.xlu0 %4873
        %4875 = vrot.lane.b32.xlu0 %v3206, 94
        %v4876 = vpop.permute.xlu0 %4875
        %4877 = vrot.lane.b32.xlu0 %v3207, 94
        %v4878 = vpop.permute.xlu0 %4877
        %4879 = vrot.lane.b32.xlu0 %v3208, 94
        %v4880 = vpop.permute.xlu0 %4879
        %4881 = vrot.lane.b32.xlu0 %v3209, 94
        %v4882 = vpop.permute.xlu0 %4881
        %4883 = vrot.lane.b32.xlu0 %v3210, 94
        %v4884 = vpop.permute.xlu0 %4883
        %4885 = vrot.lane.b32.xlu0 %v3211, 94
        %v4886 = vpop.permute.xlu0 %4885
        %4887 = vrot.lane.b32.xlu0 %v3212, 94
        %v4888 = vpop.permute.xlu0 %4887
        %4889 = vrot.lane.b32.xlu0 %v3213, 94
        %v4890 = vpop.permute.xlu0 %4889
        %4891 = vrot.lane.b32.xlu0 %v3214, 94
        %v4892 = vpop.permute.xlu0 %4891
        %4893 = vrot.lane.b32.xlu0 %v3215, 94
        %v4894 = vpop.permute.xlu0 %4893
        %4895 = vrot.lane.b32.xlu0 %v3216, 94
        %v4896 = vpop.permute.xlu0 %4895
        %4897 = vrot.lane.b32.xlu0 %v3217, 94
        %v4898 = vpop.permute.xlu0 %4897
        %4899 = vrot.lane.b32.xlu0 %v3218, 94
        %v4900 = vpop.permute.xlu0 %4899
        %4901 = vrot.lane.b32.xlu0 %v3219, 94
        %v4902 = vpop.permute.xlu0 %4901
        %4903 = vrot.lane.b32.xlu0 %v3220, 94
        %v4904 = vpop.permute.xlu0 %4903
        %v4905 = vsel %vm1259, %v4872, %v4874
        %v4906 = vsel %vm1259, %v4874, %v4876
        %v4907 = vsel %vm1259, %v4876, %v4878
        %v4908 = vsel %vm1259, %v4878, %v4880
        %v4909 = vsel %vm1259, %v4880, %v4882
        %v4910 = vsel %vm1259, %v4882, %v4884
        %v4911 = vsel %vm1259, %v4884, %v4886
        %v4912 = vsel %vm1259, %v4886, %v4888
        %v4913 = vsel %vm1259, %v4890, %v4892
        %v4914 = vsel %vm1259, %v4892, %v4894
        %v4915 = vsel %vm1259, %v4894, %v4896
        %v4916 = vsel %vm1259, %v4896, %v4898
        %v4917 = vsel %vm1259, %v4898, %v4900
        %v4918 = vsel %vm1259, %v4900, %v4902
        %v4919 = vsel %vm1259, %v4902, %v4904
        %v4920 = vsel %vm1259, %v4904, %v4888
        %4938 = vrot.lane.b32.xlu0 %v3221, 93
        %v4939 = vpop.permute.xlu0 %4938
        %4940 = vrot.lane.b32.xlu0 %v3222, 93
        %v4941 = vpop.permute.xlu0 %4940
        %4942 = vrot.lane.b32.xlu0 %v3223, 93
        %v4943 = vpop.permute.xlu0 %4942
        %4944 = vrot.lane.b32.xlu0 %v3224, 93
        %v4945 = vpop.permute.xlu0 %4944
        %4946 = vrot.lane.b32.xlu0 %v3225, 93
        %v4947 = vpop.permute.xlu0 %4946
        %4948 = vrot.lane.b32.xlu0 %v3226, 93
        %v4949 = vpop.permute.xlu0 %4948
        %4950 = vrot.lane.b32.xlu0 %v3227, 93
        %v4951 = vpop.permute.xlu0 %4950
        %4952 = vrot.lane.b32.xlu0 %v3228, 93
        %v4953 = vpop.permute.xlu0 %4952
        %4954 = vrot.lane.b32.xlu0 %v3229, 93
        %v4955 = vpop.permute.xlu0 %4954
        %4956 = vrot.lane.b32.xlu0 %v3230, 93
        %v4957 = vpop.permute.xlu0 %4956
        %4958 = vrot.lane.b32.xlu0 %v3231, 93
        %v4959 = vpop.permute.xlu0 %4958
        %4960 = vrot.lane.b32.xlu0 %v3232, 93
        %v4961 = vpop.permute.xlu0 %4960
        %4962 = vrot.lane.b32.xlu0 %v3233, 93
        %v4963 = vpop.permute.xlu0 %4962
        %4964 = vrot.lane.b32.xlu0 %v3234, 93
        %v4965 = vpop.permute.xlu0 %4964
        %4966 = vrot.lane.b32.xlu0 %v3235, 93
        %v4967 = vpop.permute.xlu0 %4966
        %4968 = vrot.lane.b32.xlu0 %v3236, 93
        %v4969 = vpop.permute.xlu0 %4968
        %4970 = vrot.lane.b32.xlu0 %v3237, 93
        %v4971 = vpop.permute.xlu0 %4970
        %v4972 = vsel %vm1273, %v4939, %v4941
        %v4973 = vsel %vm1273, %v4941, %v4943
        %v4974 = vsel %vm1273, %v4943, %v4945
        %v4975 = vsel %vm1273, %v4945, %v4947
        %v4976 = vsel %vm1273, %v4947, %v4949
        %v4977 = vsel %vm1273, %v4949, %v4951
        %v4978 = vsel %vm1273, %v4951, %v4953
        %v4979 = vsel %vm1273, %v4953, %v4955
        %v4980 = vsel %vm1273, %v4957, %v4959
        %v4981 = vsel %vm1273, %v4959, %v4961
        %v4982 = vsel %vm1273, %v4961, %v4963
        %v4983 = vsel %vm1273, %v4963, %v4965
        %v4984 = vsel %vm1273, %v4965, %v4967
        %v4985 = vsel %vm1273, %v4967, %v4969
        %v4986 = vsel %vm1273, %v4969, %v4971
        %v4987 = vsel %vm1273, %v4971, %v4955
        %5006 = vrot.lane.b32.xlu0 %v3051, 31
        %v5007 = vpop.permute.xlu0 %5006
        %5008 = vrot.lane.b32.xlu0 %v3052, 31
        %v5009 = vpop.permute.xlu0 %5008
        %5010 = vrot.lane.b32.xlu0 %v3053, 31
        %v5011 = vpop.permute.xlu0 %5010
        %5012 = vrot.lane.b32.xlu0 %v3054, 31
        %v5013 = vpop.permute.xlu0 %5012
        %5014 = vrot.lane.b32.xlu0 %v3055, 31
        %v5015 = vpop.permute.xlu0 %5014
        %5016 = vrot.lane.b32.xlu0 %v3056, 31
        %v5017 = vpop.permute.xlu0 %5016
        %5018 = vrot.lane.b32.xlu0 %v3057, 31
        %v5019 = vpop.permute.xlu0 %5018
        %5020 = vrot.lane.b32.xlu0 %v3058, 31
        %v5021 = vpop.permute.xlu0 %5020
        %5022 = vrot.lane.b32.xlu0 %v3059, 31
        %v5023 = vpop.permute.xlu0 %5022
        %5024 = vrot.lane.b32.xlu0 %v3060, 31
        %v5025 = vpop.permute.xlu0 %5024
        %5026 = vrot.lane.b32.xlu0 %v3061, 31
        %v5027 = vpop.permute.xlu0 %5026
        %5028 = vrot.lane.b32.xlu0 %v3062, 31
        %v5029 = vpop.permute.xlu0 %5028
        %5030 = vrot.lane.b32.xlu0 %v3063, 31
        %v5031 = vpop.permute.xlu0 %5030
        %5032 = vrot.lane.b32.xlu0 %v3064, 31
        %v5033 = vpop.permute.xlu0 %5032
        %5034 = vrot.lane.b32.xlu0 %v3065, 31
        %v5035 = vpop.permute.xlu0 %5034
        %5036 = vrot.lane.b32.xlu0 %v3066, 31
        %v5037 = vpop.permute.xlu0 %5036
        %5038 = vrot.lane.b32.xlu0 %v3067, 31
        %v5039 = vpop.permute.xlu0 %5038
        %5040 = vrot.lane.b32.xlu0 %v3068, 31
        %v5041 = vpop.permute.xlu0 %5040
        %5042 = vrot.lane.b32.xlu0 %v4518, 31
        %v5043 = vpop.permute.xlu0 %5042
        %5044 = vrot.lane.b32.xlu0 %v4519, 31
        %v5045 = vpop.permute.xlu0 %5044
        %5046 = vrot.lane.b32.xlu0 %v4520, 31
        %v5047 = vpop.permute.xlu0 %5046
        %5048 = vrot.lane.b32.xlu0 %v4521, 31
        %v5049 = vpop.permute.xlu0 %5048
        %5050 = vrot.lane.b32.xlu0 %v4522, 31
        %v5051 = vpop.permute.xlu0 %5050
        %5052 = vrot.lane.b32.xlu0 %v4523, 31
        %v5053 = vpop.permute.xlu0 %5052
        %5054 = vrot.lane.b32.xlu0 %v4524, 31
        %v5055 = vpop.permute.xlu0 %5054
        %5056 = vrot.lane.b32.xlu0 %v4525, 31
        %v5057 = vpop.permute.xlu0 %5056
        %5058 = vrot.lane.b32.xlu0 %v4499, 31
        %v5059 = vpop.permute.xlu0 %5058
        %5060 = vrot.lane.b32.xlu0 %v4526, 31
        %v5061 = vpop.permute.xlu0 %5060
        %5062 = vrot.lane.b32.xlu0 %v4527, 31
        %v5063 = vpop.permute.xlu0 %5062
        %5064 = vrot.lane.b32.xlu0 %v4528, 31
        %v5065 = vpop.permute.xlu0 %5064
        %5066 = vrot.lane.b32.xlu0 %v4529, 31
        %v5067 = vpop.permute.xlu0 %5066
        %5068 = vrot.lane.b32.xlu0 %v4530, 31
        %v5069 = vpop.permute.xlu0 %5068
        %5070 = vrot.lane.b32.xlu0 %v4531, 31
        %v5071 = vpop.permute.xlu0 %5070
        %5072 = vrot.lane.b32.xlu0 %v4532, 31
        %v5073 = vpop.permute.xlu0 %5072
        %5074 = vrot.lane.b32.xlu0 %v4533, 31
        %v5075 = vpop.permute.xlu0 %5074
        %5076 = vrot.lane.b32.xlu0 %v4517, 31
        %v5077 = vpop.permute.xlu0 %5076
        %5078 = vrot.lane.b32.xlu0 %v4588, 31
        %v5079 = vpop.permute.xlu0 %5078
        %5080 = vrot.lane.b32.xlu0 %v4589, 31
        %v5081 = vpop.permute.xlu0 %5080
        %5082 = vrot.lane.b32.xlu0 %v4590, 31
        %v5083 = vpop.permute.xlu0 %5082
        %5084 = vrot.lane.b32.xlu0 %v4591, 31
        %v5085 = vpop.permute.xlu0 %5084
        %5086 = vrot.lane.b32.xlu0 %v4592, 31
        %v5087 = vpop.permute.xlu0 %5086
        %5088 = vrot.lane.b32.xlu0 %v4593, 31
        %v5089 = vpop.permute.xlu0 %5088
        %5090 = vrot.lane.b32.xlu0 %v4594, 31
        %v5091 = vpop.permute.xlu0 %5090
        %5092 = vrot.lane.b32.xlu0 %v4595, 31
        %v5093 = vpop.permute.xlu0 %5092
        %5094 = vrot.lane.b32.xlu0 %v4569, 31
        %v5095 = vpop.permute.xlu0 %5094
        %5096 = vrot.lane.b32.xlu0 %v4596, 31
        %v5097 = vpop.permute.xlu0 %5096
        %5098 = vrot.lane.b32.xlu0 %v4597, 31
        %v5099 = vpop.permute.xlu0 %5098
        %5100 = vrot.lane.b32.xlu0 %v4598, 31
        %v5101 = vpop.permute.xlu0 %5100
        %5102 = vrot.lane.b32.xlu0 %v4599, 31
        %v5103 = vpop.permute.xlu0 %5102
        %5104 = vrot.lane.b32.xlu0 %v4600, 31
        %v5105 = vpop.permute.xlu0 %5104
        %5106 = vrot.lane.b32.xlu0 %v4601, 31
        %v5107 = vpop.permute.xlu0 %5106
        %5108 = vrot.lane.b32.xlu0 %v4602, 31
        %v5109 = vpop.permute.xlu0 %5108
        %5110 = vrot.lane.b32.xlu0 %v4603, 31
        %v5111 = vpop.permute.xlu0 %5110
        %5112 = vrot.lane.b32.xlu0 %v4587, 31
        %v5113 = vpop.permute.xlu0 %5112
        %5114 = vrot.lane.b32.xlu0 %v4658, 31
        %v5115 = vpop.permute.xlu0 %5114
        %5116 = vrot.lane.b32.xlu0 %v4659, 31
        %v5117 = vpop.permute.xlu0 %5116
        %5118 = vrot.lane.b32.xlu0 %v4660, 31
        %v5119 = vpop.permute.xlu0 %5118
        %5120 = vrot.lane.b32.xlu0 %v4661, 31
        %v5121 = vpop.permute.xlu0 %5120
        %5122 = vrot.lane.b32.xlu0 %v4662, 31
        %v5123 = vpop.permute.xlu0 %5122
        %5124 = vrot.lane.b32.xlu0 %v4663, 31
        %v5125 = vpop.permute.xlu0 %5124
        %5126 = vrot.lane.b32.xlu0 %v4664, 31
        %v5127 = vpop.permute.xlu0 %5126
        %5128 = vrot.lane.b32.xlu0 %v4665, 31
        %v5129 = vpop.permute.xlu0 %5128
        %5130 = vrot.lane.b32.xlu0 %v4639, 31
        %v5131 = vpop.permute.xlu0 %5130
        %5132 = vrot.lane.b32.xlu0 %v4666, 31
        %v5133 = vpop.permute.xlu0 %5132
        %5134 = vrot.lane.b32.xlu0 %v4667, 31
        %v5135 = vpop.permute.xlu0 %5134
        %5136 = vrot.lane.b32.xlu0 %v4668, 31
        %v5137 = vpop.permute.xlu0 %5136
        %5138 = vrot.lane.b32.xlu0 %v4669, 31
        %v5139 = vpop.permute.xlu0 %5138
        %5140 = vrot.lane.b32.xlu0 %v4670, 31
        %v5141 = vpop.permute.xlu0 %5140
        %5142 = vrot.lane.b32.xlu0 %v4671, 31
        %v5143 = vpop.permute.xlu0 %5142
        %5144 = vrot.lane.b32.xlu0 %v4672, 31
        %v5145 = vpop.permute.xlu0 %5144
        %5146 = vrot.lane.b32.xlu0 %v4673, 31
        %v5147 = vpop.permute.xlu0 %5146
        %5148 = vrot.lane.b32.xlu0 %v4657, 31
        %v5149 = vpop.permute.xlu0 %5148
        %5150 = vrot.lane.b32.xlu0 %v4691, 31
        %v5151 = vpop.permute.xlu0 %5150
        %5152 = vrot.lane.b32.xlu0 %v4722, 31
        %v5153 = vpop.permute.xlu0 %5152
        %5154 = vrot.lane.b32.xlu0 %v4723, 31
        %v5155 = vpop.permute.xlu0 %5154
        %5156 = vrot.lane.b32.xlu0 %v4724, 31
        %v5157 = vpop.permute.xlu0 %5156
        %5158 = vrot.lane.b32.xlu0 %v4725, 31
        %v5159 = vpop.permute.xlu0 %5158
        %5160 = vrot.lane.b32.xlu0 %v4726, 31
        %v5161 = vpop.permute.xlu0 %5160
        %5162 = vrot.lane.b32.xlu0 %v4727, 31
        %v5163 = vpop.permute.xlu0 %5162
        %5164 = vrot.lane.b32.xlu0 %v4728, 31
        %v5165 = vpop.permute.xlu0 %5164
        %5166 = vrot.lane.b32.xlu0 %v4705, 31
        %v5167 = vpop.permute.xlu0 %5166
        %5168 = vrot.lane.b32.xlu0 %v4707, 31
        %v5169 = vpop.permute.xlu0 %5168
        %5170 = vrot.lane.b32.xlu0 %v4729, 31
        %v5171 = vpop.permute.xlu0 %5170
        %5172 = vrot.lane.b32.xlu0 %v4730, 31
        %v5173 = vpop.permute.xlu0 %5172
        %5174 = vrot.lane.b32.xlu0 %v4731, 31
        %v5175 = vpop.permute.xlu0 %5174
        %5176 = vrot.lane.b32.xlu0 %v4732, 31
        %v5177 = vpop.permute.xlu0 %5176
        %5178 = vrot.lane.b32.xlu0 %v4733, 31
        %v5179 = vpop.permute.xlu0 %5178
        %5180 = vrot.lane.b32.xlu0 %v4734, 31
        %v5181 = vpop.permute.xlu0 %5180
        %5182 = vrot.lane.b32.xlu0 %v4735, 31
        %v5183 = vpop.permute.xlu0 %5182
        %5184 = vrot.lane.b32.xlu0 %v4721, 31
        %v5185 = vpop.permute.xlu0 %5184
        %5186 = vrot.lane.b32.xlu0 %v4754, 31
        %v5187 = vpop.permute.xlu0 %5186
        %5188 = vrot.lane.b32.xlu0 %v4787, 31
        %v5189 = vpop.permute.xlu0 %5188
        %5190 = vrot.lane.b32.xlu0 %v4788, 31
        %v5191 = vpop.permute.xlu0 %5190
        %5192 = vrot.lane.b32.xlu0 %v4789, 31
        %v5193 = vpop.permute.xlu0 %5192
        %5194 = vrot.lane.b32.xlu0 %v4790, 31
        %v5195 = vpop.permute.xlu0 %5194
        %5196 = vrot.lane.b32.xlu0 %v4791, 31
        %v5197 = vpop.permute.xlu0 %5196
        %5198 = vrot.lane.b32.xlu0 %v4792, 31
        %v5199 = vpop.permute.xlu0 %5198
        %5200 = vrot.lane.b32.xlu0 %v4793, 31
        %v5201 = vpop.permute.xlu0 %5200
        %5202 = vrot.lane.b32.xlu0 %v4794, 31
        %v5203 = vpop.permute.xlu0 %5202
        %5204 = vrot.lane.b32.xlu0 %v4772, 31
        %v5205 = vpop.permute.xlu0 %5204
        %5206 = vrot.lane.b32.xlu0 %v4795, 31
        %v5207 = vpop.permute.xlu0 %5206
        %5208 = vrot.lane.b32.xlu0 %v4796, 31
        %v5209 = vpop.permute.xlu0 %5208
        %5210 = vrot.lane.b32.xlu0 %v4797, 31
        %v5211 = vpop.permute.xlu0 %5210
        %5212 = vrot.lane.b32.xlu0 %v4798, 31
        %v5213 = vpop.permute.xlu0 %5212
        %5214 = vrot.lane.b32.xlu0 %v4799, 31
        %v5215 = vpop.permute.xlu0 %5214
        %5216 = vrot.lane.b32.xlu0 %v4800, 31
        %v5217 = vpop.permute.xlu0 %5216
        %5218 = vrot.lane.b32.xlu0 %v4801, 31
        %v5219 = vpop.permute.xlu0 %5218
        %5220 = vrot.lane.b32.xlu0 %v4802, 31
        %v5221 = vpop.permute.xlu0 %5220
        %5222 = vrot.lane.b32.xlu0 %v4805, 31
        %v5223 = vpop.permute.xlu0 %5222
        %5224 = vrot.lane.b32.xlu0 %v4838, 31
        %v5225 = vpop.permute.xlu0 %5224
        %5226 = vrot.lane.b32.xlu0 %v4839, 31
        %v5227 = vpop.permute.xlu0 %5226
        %5228 = vrot.lane.b32.xlu0 %v4840, 31
        %v5229 = vpop.permute.xlu0 %5228
        %5230 = vrot.lane.b32.xlu0 %v4841, 31
        %v5231 = vpop.permute.xlu0 %5230
        %5232 = vrot.lane.b32.xlu0 %v4842, 31
        %v5233 = vpop.permute.xlu0 %5232
        %5234 = vrot.lane.b32.xlu0 %v4843, 31
        %v5235 = vpop.permute.xlu0 %5234
        %5236 = vrot.lane.b32.xlu0 %v4844, 31
        %v5237 = vpop.permute.xlu0 %5236
        %5238 = vrot.lane.b32.xlu0 %v4845, 31
        %v5239 = vpop.permute.xlu0 %5238
        %5240 = vrot.lane.b32.xlu0 %v4823, 31
        %v5241 = vpop.permute.xlu0 %5240
        %5242 = vrot.lane.b32.xlu0 %v4846, 31
        %v5243 = vpop.permute.xlu0 %5242
        %5244 = vrot.lane.b32.xlu0 %v4847, 31
        %v5245 = vpop.permute.xlu0 %5244
        %5246 = vrot.lane.b32.xlu0 %v4848, 31
        %v5247 = vpop.permute.xlu0 %5246
        %5248 = vrot.lane.b32.xlu0 %v4849, 31
        %v5249 = vpop.permute.xlu0 %5248
        %5250 = vrot.lane.b32.xlu0 %v4850, 31
        %v5251 = vpop.permute.xlu0 %5250
        %5252 = vrot.lane.b32.xlu0 %v4851, 31
        %v5253 = vpop.permute.xlu0 %5252
        %5254 = vrot.lane.b32.xlu0 %v4852, 31
        %v5255 = vpop.permute.xlu0 %5254
        %5256 = vrot.lane.b32.xlu0 %v4853, 31
        %v5257 = vpop.permute.xlu0 %5256
        %5258 = vrot.lane.b32.xlu0 %v4872, 31
        %v5259 = vpop.permute.xlu0 %5258
        %5260 = vrot.lane.b32.xlu0 %v4905, 31
        %v5261 = vpop.permute.xlu0 %5260
        %5262 = vrot.lane.b32.xlu0 %v4906, 31
        %v5263 = vpop.permute.xlu0 %5262
        %5264 = vrot.lane.b32.xlu0 %v4907, 31
        %v5265 = vpop.permute.xlu0 %5264
        %5266 = vrot.lane.b32.xlu0 %v4908, 31
        %v5267 = vpop.permute.xlu0 %5266
        %5268 = vrot.lane.b32.xlu0 %v4909, 31
        %v5269 = vpop.permute.xlu0 %5268
        %5270 = vrot.lane.b32.xlu0 %v4910, 31
        %v5271 = vpop.permute.xlu0 %5270
        %5272 = vrot.lane.b32.xlu0 %v4911, 31
        %v5273 = vpop.permute.xlu0 %5272
        %5274 = vrot.lane.b32.xlu0 %v4912, 31
        %v5275 = vpop.permute.xlu0 %5274
        %5276 = vrot.lane.b32.xlu0 %v4890, 31
        %v5277 = vpop.permute.xlu0 %5276
        %5278 = vrot.lane.b32.xlu0 %v4913, 31
        %v5279 = vpop.permute.xlu0 %5278
        %5280 = vrot.lane.b32.xlu0 %v4914, 31
        %v5281 = vpop.permute.xlu0 %5280
        %5282 = vrot.lane.b32.xlu0 %v4915, 31
        %v5283 = vpop.permute.xlu0 %5282
        %5284 = vrot.lane.b32.xlu0 %v4916, 31
        %v5285 = vpop.permute.xlu0 %5284
        %5286 = vrot.lane.b32.xlu0 %v4917, 31
        %v5287 = vpop.permute.xlu0 %5286
        %5288 = vrot.lane.b32.xlu0 %v4918, 31
        %v5289 = vpop.permute.xlu0 %5288
        %5290 = vrot.lane.b32.xlu0 %v4919, 31
        %v5291 = vpop.permute.xlu0 %5290
        %5292 = vrot.lane.b32.xlu0 %v4920, 31
        %v5293 = vpop.permute.xlu0 %5292
        %5294 = vrot.lane.b32.xlu0 %v4939, 31
        %v5295 = vpop.permute.xlu0 %5294
        %5296 = vrot.lane.b32.xlu0 %v4972, 31
        %v5297 = vpop.permute.xlu0 %5296
        %5298 = vrot.lane.b32.xlu0 %v4973, 31
        %v5299 = vpop.permute.xlu0 %5298
        %5300 = vrot.lane.b32.xlu0 %v4974, 31
        %v5301 = vpop.permute.xlu0 %5300
        %5302 = vrot.lane.b32.xlu0 %v4975, 31
        %v5303 = vpop.permute.xlu0 %5302
        %5304 = vrot.lane.b32.xlu0 %v4976, 31
        %v5305 = vpop.permute.xlu0 %5304
        %5306 = vrot.lane.b32.xlu0 %v4977, 31
        %v5307 = vpop.permute.xlu0 %5306
        %5308 = vrot.lane.b32.xlu0 %v4978, 31
        %v5309 = vpop.permute.xlu0 %5308
        %5310 = vrot.lane.b32.xlu0 %v4979, 31
        %v5311 = vpop.permute.xlu0 %5310
        %5312 = vrot.lane.b32.xlu0 %v4957, 31
        %v5313 = vpop.permute.xlu0 %5312
        %5314 = vrot.lane.b32.xlu0 %v4980, 31
        %v5315 = vpop.permute.xlu0 %5314
        %5316 = vrot.lane.b32.xlu0 %v4981, 31
        %v5317 = vpop.permute.xlu0 %5316
        %5318 = vrot.lane.b32.xlu0 %v4982, 31
        %v5319 = vpop.permute.xlu0 %5318
        %5320 = vrot.lane.b32.xlu0 %v4983, 31
        %v5321 = vpop.permute.xlu0 %5320
        %5322 = vrot.lane.b32.xlu0 %v4984, 31
        %v5323 = vpop.permute.xlu0 %5322
        %5324 = vrot.lane.b32.xlu0 %v4985, 31
        %v5325 = vpop.permute.xlu0 %5324
        %5326 = vrot.lane.b32.xlu0 %v4986, 31
        %v5327 = vpop.permute.xlu0 %5326
        %5328 = vrot.lane.b32.xlu0 %v4987, 31
        %v5329 = vpop.permute.xlu0 %5328
        %vm5330 = vcmask 252928
        %v5331 = vsel %vm5330, %v5007, %v5009
        %v5332 = vsel %vm5330, %v5009, %v5011
        %v5333 = vsel %vm5330, %v5011, %v5013
        %v5334 = vsel %vm5330, %v5013, %v5015
        %v5335 = vsel %vm5330, %v5015, %v5017
        %v5336 = vsel %vm5330, %v5017, %v5019
        %v5337 = vsel %vm5330, %v5019, %v5021
        %v5338 = vsel %vm5330, %v5021, %v5023
        %v5339 = vsel %vm5330, %v5025, %v5027
        %v5340 = vsel %vm5330, %v5027, %v5029
        %v5341 = vsel %vm5330, %v5029, %v5031
        %v5342 = vsel %vm5330, %v5031, %v5033
        %v5343 = vsel %vm5330, %v5033, %v5035
        %v5344 = vsel %vm5330, %v5035, %v5037
        %v5345 = vsel %vm5330, %v5037, %v5039
        %v5346 = vsel %vm5330, %v5039, %v5041
        %v5347 = vsel %vm5330, %v5043, %v5045
        %v5348 = vsel %vm5330, %v5045, %v5047
        %v5349 = vsel %vm5330, %v5047, %v5049
        %v5350 = vsel %vm5330, %v5049, %v5051
        %v5351 = vsel %vm5330, %v5051, %v5053
        %v5352 = vsel %vm5330, %v5053, %v5055
        %v5353 = vsel %vm5330, %v5055, %v5057
        %v5354 = vsel %vm5330, %v5057, %v5059
        %v5355 = vsel %vm5330, %v5061, %v5063
        %v5356 = vsel %vm5330, %v5063, %v5065
        %v5357 = vsel %vm5330, %v5065, %v5067
        %v5358 = vsel %vm5330, %v5067, %v5069
        %v5359 = vsel %vm5330, %v5069, %v5071
        %v5360 = vsel %vm5330, %v5071, %v5073
        %v5361 = vsel %vm5330, %v5073, %v5075
        %v5362 = vsel %vm5330, %v5075, %v5077
        %v5363 = vsel %vm5330, %v5079, %v5081
        %v5364 = vsel %vm5330, %v5081, %v5083
        %v5365 = vsel %vm5330, %v5083, %v5085
        %v5366 = vsel %vm5330, %v5085, %v5087
        %v5367 = vsel %vm5330, %v5087, %v5089
        %v5368 = vsel %vm5330, %v5089, %v5091
        %v5369 = vsel %vm5330, %v5091, %v5093
        %v5370 = vsel %vm5330, %v5093, %v5095
        %v5371 = vsel %vm5330, %v5097, %v5099
        %v5372 = vsel %vm5330, %v5099, %v5101
        %v5373 = vsel %vm5330, %v5101, %v5103
        %v5374 = vsel %vm5330, %v5103, %v5105
        %v5375 = vsel %vm5330, %v5105, %v5107
        %v5376 = vsel %vm5330, %v5107, %v5109
        %v5377 = vsel %vm5330, %v5109, %v5111
        %v5378 = vsel %vm5330, %v5111, %v5113
        %v5379 = vsel %vm5330, %v5115, %v5117
        %v5380 = vsel %vm5330, %v5117, %v5119
        %v5381 = vsel %vm5330, %v5119, %v5121
        %v5382 = vsel %vm5330, %v5121, %v5123
        %v5383 = vsel %vm5330, %v5123, %v5125
        %v5384 = vsel %vm5330, %v5125, %v5127
        %v5385 = vsel %vm5330, %v5127, %v5129
        %v5386 = vsel %vm5330, %v5129, %v5131
        %v5387 = vsel %vm5330, %v5133, %v5135
        %v5388 = vsel %vm5330, %v5135, %v5137
        %v5389 = vsel %vm5330, %v5137, %v5139
        %v5390 = vsel %vm5330, %v5139, %v5141
        %v5391 = vsel %vm5330, %v5141, %v5143
        %v5392 = vsel %vm5330, %v5143, %v5145
        %v5393 = vsel %vm5330, %v5145, %v5147
        %v5394 = vsel %vm5330, %v5147, %v5149
        %v5395 = vsel %vm5330, %v5151, %v5153
        %v5396 = vsel %vm5330, %v5153, %v5155
        %v5397 = vsel %vm5330, %v5155, %v5157
        %v5398 = vsel %vm5330, %v5157, %v5159
        %v5399 = vsel %vm5330, %v5159, %v5161
        %v5400 = vsel %vm5330, %v5161, %v5163
        %v5401 = vsel %vm5330, %v5163, %v5165
        %v5402 = vsel %vm5330, %v5165, %v5167
        %v5403 = vsel %vm5330, %v5169, %v5171
        %v5404 = vsel %vm5330, %v5171, %v5173
        %v5405 = vsel %vm5330, %v5173, %v5175
        %v5406 = vsel %vm5330, %v5175, %v5177
        %v5407 = vsel %vm5330, %v5177, %v5179
        %v5408 = vsel %vm5330, %v5179, %v5181
        %v5409 = vsel %vm5330, %v5181, %v5183
        %v5410 = vsel %vm5330, %v5183, %v5185
        %v5411 = vsel %vm5330, %v5187, %v5189
        %v5412 = vsel %vm5330, %v5189, %v5191
        %v5413 = vsel %vm5330, %v5191, %v5193
        %v5414 = vsel %vm5330, %v5193, %v5195
        %v5415 = vsel %vm5330, %v5195, %v5197
        %v5416 = vsel %vm5330, %v5197, %v5199
        %v5417 = vsel %vm5330, %v5199, %v5201
        %v5418 = vsel %vm5330, %v5201, %v5203
        %v5419 = vsel %vm5330, %v5205, %v5207
        %v5420 = vsel %vm5330, %v5207, %v5209
        %v5421 = vsel %vm5330, %v5209, %v5211
        %v5422 = vsel %vm5330, %v5211, %v5213
        %v5423 = vsel %vm5330, %v5213, %v5215
        %v5424 = vsel %vm5330, %v5215, %v5217
        %v5425 = vsel %vm5330, %v5217, %v5219
        %v5426 = vsel %vm5330, %v5219, %v5221
        %v5427 = vsel %vm5330, %v5223, %v5225
        %v5428 = vsel %vm5330, %v5225, %v5227
        %v5429 = vsel %vm5330, %v5227, %v5229
        %v5430 = vsel %vm5330, %v5229, %v5231
        %v5431 = vsel %vm5330, %v5231, %v5233
        %v5432 = vsel %vm5330, %v5233, %v5235
        %v5433 = vsel %vm5330, %v5235, %v5237
        %v5434 = vsel %vm5330, %v5237, %v5239
        %v5435 = vsel %vm5330, %v5241, %v5243
        %v5436 = vsel %vm5330, %v5243, %v5245
        %v5437 = vsel %vm5330, %v5245, %v5247
        %v5438 = vsel %vm5330, %v5247, %v5249
        %v5439 = vsel %vm5330, %v5249, %v5251
        %v5440 = vsel %vm5330, %v5251, %v5253
        %v5441 = vsel %vm5330, %v5253, %v5255
        %v5442 = vsel %vm5330, %v5255, %v5257
        %v5443 = vsel %vm5330, %v5259, %v5261
        %v5444 = vsel %vm5330, %v5261, %v5263
        %v5445 = vsel %vm5330, %v5263, %v5265
        %v5446 = vsel %vm5330, %v5265, %v5267
        %v5447 = vsel %vm5330, %v5267, %v5269
        %v5448 = vsel %vm5330, %v5269, %v5271
        %v5449 = vsel %vm5330, %v5271, %v5273
        %v5450 = vsel %vm5330, %v5273, %v5275
        %v5451 = vsel %vm5330, %v5277, %v5279
        %v5452 = vsel %vm5330, %v5279, %v5281
        %v5453 = vsel %vm5330, %v5281, %v5283
        %v5454 = vsel %vm5330, %v5283, %v5285
        %v5455 = vsel %vm5330, %v5285, %v5287
        %v5456 = vsel %vm5330, %v5287, %v5289
        %v5457 = vsel %vm5330, %v5289, %v5291
        %v5458 = vsel %vm5330, %v5291, %v5293
        %v5459 = vsel %vm5330, %v5295, %v5297
        %v5460 = vsel %vm5330, %v5297, %v5299
        %v5461 = vsel %vm5330, %v5299, %v5301
        %v5462 = vsel %vm5330, %v5301, %v5303
        %v5463 = vsel %vm5330, %v5303, %v5305
        %v5464 = vsel %vm5330, %v5305, %v5307
        %v5465 = vsel %vm5330, %v5307, %v5309
        %v5466 = vsel %vm5330, %v5309, %v5311
        %v5467 = vsel %vm5330, %v5313, %v5315
        %v5468 = vsel %vm5330, %v5315, %v5317
        %v5469 = vsel %vm5330, %v5317, %v5319
        %v5470 = vsel %vm5330, %v5319, %v5321
        %v5471 = vsel %vm5330, %v5321, %v5323
        %v5472 = vsel %vm5330, %v5323, %v5325
        %v5473 = vsel %vm5330, %v5325, %v5327
        %v5474 = vsel %vm5330, %v5327, %v5329
        %5620 = vset.pattern.permute.xlu0 0
        %5621 = vperm.xlu0 %5620, %v2148
        %v5622 = vpop.permute.xlu0 %5621
        %v5625 = vsel %vm916, %v2147, 0
        %5627 = vmatprep.subr.mxu0 %v2275
        %5628 = vmatpush1.msra.mxu0 %v2274
        %5629 = vmatprep.subr.mxu0 %v2283
        %5630 = vmatpush1.msra.mxu0 %v2282
        %5631 = vmatprep.subr.mxu0 %v3293
        %5632 = vmatpush1.msra.mxu0 %v3292
        %5633 = vmatprep.subr.mxu0 %v3301
        %5634 = vmatpush1.msra.mxu0 %v3300
        %5635 = vmatprep.subr.mxu0 %v3365
        %5636 = vmatpush1.msra.mxu0 %v3364
        %5637 = vmatprep.subr.mxu0 %v3373
        %5638 = vmatpush1.msra.mxu0 %v3372
        %5639 = vmatprep.subr.mxu0 %v3451
        %5640 = vmatpush1.msra.mxu0 %v3450
        %5641 = vmatprep.subr.mxu0 %v3459
        %5642 = vmatpush1.msra.mxu0 %v3458
        %5643 = vmatprep.subr.mxu0 %v3537
        %5644 = vmatpush1.msra.mxu0 %v3536
        %5645 = vmatprep.subr.mxu0 %v3545
        %5646 = vmatpush1.msra.mxu0 %v3544
        %5647 = vmatprep.subr.mxu0 %v3623
        %5648 = vmatpush1.msra.mxu0 %v3622
        %5649 = vmatprep.subr.mxu0 %v3631
        %5650 = vmatpush1.msra.mxu0 %v3630
        %5651 = vmatprep.subr.mxu0 %v3709
        %5652 = vmatpush1.msra.mxu0 %v3708
        %5653 = vmatprep.subr.mxu0 %v3717
        %5654 = vmatpush1.msra.mxu0 %v3716
        %5655 = vmatprep.subr.mxu0 %v3777
        %5656 = vmatpush1.msra.mxu0 %v3776
        %5657 = vmatprep.subr.mxu0 %v3785
        %5658 = vmatpush1.msra.mxu0 %v3784
        %5659 = vmatprep.subr.mxu0 %v3863
        %5660 = vmatpush1.msra.mxu0 %v3862
        %5661 = vmatprep.subr.mxu0 %v3871
        %5662 = vmatpush1.msra.mxu0 %v3870
        %5663 = vmatprep.subr.mxu0 %v3949
        %5664 = vmatpush1.msra.mxu0 %v3948
        %5665 = vmatprep.subr.mxu0 %v3957
        %5666 = vmatpush1.msra.mxu0 %v3956
        %5667 = vmatprep.subr.mxu0 %v4035
        %5668 = vmatpush1.msra.mxu0 %v4034
        %5669 = vmatprep.subr.mxu0 %v4043
        %5670 = vmatpush1.msra.mxu0 %v4042
        %5671 = vmatprep.subr.mxu0 %v4122
        %5672 = vmatpush1.msra.mxu0 %v4121
        %5673 = vmatprep.subr.mxu0 %v4130
        %5674 = vmatpush1.msra.mxu0 %v4129
        %5675 = vmatprep.subr.mxu0 %v4191
        %5676 = vmatpush1.msra.mxu0 %v4190
        %5677 = vmatprep.subr.mxu0 %v4199
        %5678 = vmatpush1.msra.mxu0 %v4198
        %5679 = vmatprep.subr.mxu0 %v4278
        %5680 = vmatpush1.msra.mxu0 %v4277
        %5681 = vmatprep.subr.mxu0 %v4286
        %5682 = vmatpush1.msra.mxu0 %v4285
        %5683 = vmatprep.subr.mxu0 %v4365
        %5684 = vmatpush1.msra.mxu0 %v4364
        %5685 = vmatprep.subr.mxu0 %v4373
        %5686 = vmatpush1.msra.mxu0 %v4372
        %5687 = vmatprep.subr.mxu0 %v4451
        %5688 = vmatpush1.msra.mxu0 %v4450
        %5689 = vmatprep.subr.mxu0 %v4459
        %5690 = vmatpush1.msra.mxu0 %v4458
        %5691 = vmatprep.mubr.f32.mxu0 %v2145
        %5692 = vmatmul.mubr.f32.gmra.mrb[0].mxu0 %v2144
        %v5693 = vpop.f32.mrb[0].mxu0
        %v5694 = vadd.f32 %v5622, %v5693
        %v5695 = vpop.f32.mrb[0].mxu0
        %v5696 = vadd.f32 %v5622, %v5695
        %5697 = vdwg.mxu0
        %5698 = vmatprep.subr.mxu0 %v5332
        %5699 = vmatpush1.msra.mxu0 %v5331
        %5700 = vmatprep.subr.mxu0 %v5340
        %5701 = vmatpush1.msra.mxu0 %v5339
        %5702 = vmatprep.subr.mxu0 %v5348
        %5703 = vmatpush1.msra.mxu0 %v5347
        %5704 = vmatprep.subr.mxu0 %v5356
        %5705 = vmatpush1.msra.mxu0 %v5355
        %5706 = vmatprep.subr.mxu0 %v5364
        %5707 = vmatpush1.msra.mxu0 %v5363
        %5708 = vmatprep.subr.mxu0 %v5372
        %5709 = vmatpush1.msra.mxu0 %v5371
        %5710 = vmatprep.subr.mxu0 %v5380
        %5711 = vmatpush1.msra.mxu0 %v5379
        %5712 = vmatprep.subr.mxu0 %v5388
        %5713 = vmatpush1.msra.mxu0 %v5387
        %5714 = vmatprep.subr.mxu0 %v5396
        %5715 = vmatpush1.msra.mxu0 %v5395
        %5716 = vmatprep.subr.mxu0 %v5404
        %5717 = vmatpush1.msra.mxu0 %v5403
        %5718 = vmatprep.subr.mxu0 %v5412
        %5719 = vmatpush1.msra.mxu0 %v5411
        %5720 = vmatprep.subr.mxu0 %v5420
        %5721 = vmatpush1.msra.mxu0 %v5419
        %5722 = vmatprep.subr.mxu0 %v5428
        %5723 = vmatpush1.msra.mxu0 %v5427
        %5724 = vmatprep.subr.mxu0 %v5436
        %5725 = vmatpush1.msra.mxu0 %v5435
        %5726 = vmatprep.subr.mxu0 %v5444
        %5727 = vmatpush1.msra.mxu0 %v5443
        %5728 = vmatprep.subr.mxu0 %v5452
        %5729 = vmatpush1.msra.mxu0 %v5451
        %5730 = vmatprep.subr.mxu0 %v5460
        %5731 = vmatpush1.msra.mxu0 %v5459
        %5732 = vmatprep.subr.mxu0 %v5468
        %5733 = vmatpush1.msra.mxu0 %v5467
        %5734 = vmatprep.subr.mxu0 0.0
        %5735 = vmatpush1.msra.mxu0 0.0
        %5736 = vmatprep.subr.mxu0 0.0
        %5737 = vmatpush1.msra.mxu0 0.0
        %5738 = vmatprep.subr.mxu0 0.0
        %5739 = vmatpush1.msra.mxu0 0.0
        %5740 = vmatprep.subr.mxu0 0.0
        %5741 = vmatpush1.msra.mxu0 0.0
        %5742 = vmatprep.subr.mxu0 0.0
        %5743 = vmatpush1.msra.mxu0 0.0
        %5744 = vmatprep.subr.mxu0 0.0
        %5745 = vmatpush1.msra.mxu0 0.0
        %5746 = vmatprep.subr.mxu0 0.0
        %5747 = vmatpush1.msra.mxu0 0.0
        %5748 = vmatprep.subr.mxu0 0.0
        %5749 = vmatpush1.msra.mxu0 0.0
        %5750 = vmatprep.subr.mxu0 0.0
        %5751 = vmatpush1.msra.mxu0 0.0
        %5752 = vmatprep.subr.mxu0 0.0
        %5753 = vmatpush1.msra.mxu0 0.0
        %5754 = vmatprep.subr.mxu0 0.0
        %5755 = vmatpush1.msra.mxu0 0.0
        %5756 = vmatprep.subr.mxu0 0.0
        %5757 = vmatpush1.msra.mxu0 0.0
        %5758 = vmatprep.subr.mxu0 0.0
        %5759 = vmatpush1.msra.mxu0 0.0
        %5760 = vmatprep.subr.mxu0 0.0
        %5761 = vmatpush1.msra.mxu0 0.0
        %5762 = vmatprep.mubr.f32.mxu0 %v5625
        %5763 = vmatmul.mubr.f32.gmra.mrb[0].mxu0 %v2146
        %v5764 = vpop.f32.mrb[0].mxu0
        %v5765 = vadd.f32 %v5694, %v5764
        %v5766 = vpop.f32.mrb[0].mxu0
        %v5767 = vadd.f32 %v5696, %v5766
        %5768 = vdwg.mxu0
        %5769 = vmatprep.subr.mxu0 %v2277
        %5770 = vmatpush1.msra.mxu0 %v2276
        %5771 = vmatprep.subr.mxu0 %v2285
        %5772 = vmatpush1.msra.mxu0 %v2284
        %5773 = vmatprep.subr.mxu0 %v3295
        %5774 = vmatpush1.msra.mxu0 %v3294
        %5775 = vmatprep.subr.mxu0 %v3303
        %5776 = vmatpush1.msra.mxu0 %v3302
        %5777 = vmatprep.subr.mxu0 %v3367
        %5778 = vmatpush1.msra.mxu0 %v3366
        %5779 = vmatprep.subr.mxu0 %v3375
        %5780 = vmatpush1.msra.mxu0 %v3374
        %5781 = vmatprep.subr.mxu0 %v3453
        %5782 = vmatpush1.msra.mxu0 %v3452
        %5783 = vmatprep.subr.mxu0 %v3461
        %5784 = vmatpush1.msra.mxu0 %v3460
        %5785 = vmatprep.subr.mxu0 %v3539
        %5786 = vmatpush1.msra.mxu0 %v3538
        %5787 = vmatprep.subr.mxu0 %v3547
        %5788 = vmatpush1.msra.mxu0 %v3546
        %5789 = vmatprep.subr.mxu0 %v3625
        %5790 = vmatpush1.msra.mxu0 %v3624
        %5791 = vmatprep.subr.mxu0 %v3633
        %5792 = vmatpush1.msra.mxu0 %v3632
        %5793 = vmatprep.subr.mxu0 %v3711
        %5794 = vmatpush1.msra.mxu0 %v3710
        %5795 = vmatprep.subr.mxu0 %v3719
        %5796 = vmatpush1.msra.mxu0 %v3718
        %5797 = vmatprep.subr.mxu0 %v3779
        %5798 = vmatpush1.msra.mxu0 %v3778
        %5799 = vmatprep.subr.mxu0 %v3787
        %5800 = vmatpush1.msra.mxu0 %v3786
        %5801 = vmatprep.subr.mxu0 %v3865
        %5802 = vmatpush1.msra.mxu0 %v3864
        %5803 = vmatprep.subr.mxu0 %v3873
        %5804 = vmatpush1.msra.mxu0 %v3872
        %5805 = vmatprep.subr.mxu0 %v3951
        %5806 = vmatpush1.msra.mxu0 %v3950
        %5807 = vmatprep.subr.mxu0 %v3959
        %5808 = vmatpush1.msra.mxu0 %v3958
        %5809 = vmatprep.subr.mxu0 %v4037
        %5810 = vmatpush1.msra.mxu0 %v4036
        %5811 = vmatprep.subr.mxu0 %v4045
        %5812 = vmatpush1.msra.mxu0 %v4044
        %5813 = vmatprep.subr.mxu0 %v4124
        %5814 = vmatpush1.msra.mxu0 %v4123
        %5815 = vmatprep.subr.mxu0 %v4132
        %5816 = vmatpush1.msra.mxu0 %v4131
        %5817 = vmatprep.subr.mxu0 %v4193
        %5818 = vmatpush1.msra.mxu0 %v4192
        %5819 = vmatprep.subr.mxu0 %v4201
        %5820 = vmatpush1.msra.mxu0 %v4200
        %5821 = vmatprep.subr.mxu0 %v4280
        %5822 = vmatpush1.msra.mxu0 %v4279
        %5823 = vmatprep.subr.mxu0 %v4288
        %5824 = vmatpush1.msra.mxu0 %v4287
        %5825 = vmatprep.subr.mxu0 %v4367
        %5826 = vmatpush1.msra.mxu0 %v4366
        %5827 = vmatprep.subr.mxu0 %v4375
        %5828 = vmatpush1.msra.mxu0 %v4374
        %5829 = vmatprep.subr.mxu0 %v4453
        %5830 = vmatpush1.msra.mxu0 %v4452
        %5831 = vmatprep.subr.mxu0 %v4461
        %5832 = vmatpush1.msra.mxu0 %v4460
        %5833 = vmatprep.mubr.f32.mxu0 %v2145
        %5834 = vmatmul.mubr.f32.gmra.mrb[0].mxu0 %v2144
        %v5835 = vpop.f32.mrb[0].mxu0
        %v5836 = vadd.f32 %v5622, %v5835
        %v5837 = vpop.f32.mrb[0].mxu0
        %v5838 = vadd.f32 %v5622, %v5837
        %5839 = vdwg.mxu0
        %5840 = vmatprep.subr.mxu0 %v5334
        %5841 = vmatpush1.msra.mxu0 %v5333
        %5842 = vmatprep.subr.mxu0 %v5342
        %5843 = vmatpush1.msra.mxu0 %v5341
        %5844 = vmatprep.subr.mxu0 %v5350
        %5845 = vmatpush1.msra.mxu0 %v5349
        %5846 = vmatprep.subr.mxu0 %v5358
        %5847 = vmatpush1.msra.mxu0 %v5357
        %5848 = vmatprep.subr.mxu0 %v5366
        %5849 = vmatpush1.msra.mxu0 %v5365
        %5850 = vmatprep.subr.mxu0 %v5374
        %5851 = vmatpush1.msra.mxu0 %v5373
        %5852 = vmatprep.subr.mxu0 %v5382
        %5853 = vmatpush1.msra.mxu0 %v5381
        %5854 = vmatprep.subr.mxu0 %v5390
        %5855 = vmatpush1.msra.mxu0 %v5389
        %5856 = vmatprep.subr.mxu0 %v5398
        %5857 = vmatpush1.msra.mxu0 %v5397
        %5858 = vmatprep.subr.mxu0 %v5406
        %5859 = vmatpush1.msra.mxu0 %v5405
        %5860 = vmatprep.subr.mxu0 %v5414
        %5861 = vmatpush1.msra.mxu0 %v5413
        %5862 = vmatprep.subr.mxu0 %v5422
        %5863 = vmatpush1.msra.mxu0 %v5421
        %5864 = vmatprep.subr.mxu0 %v5430
        %5865 = vmatpush1.msra.mxu0 %v5429
        %5866 = vmatprep.subr.mxu0 %v5438
        %5867 = vmatpush1.msra.mxu0 %v5437
        %5868 = vmatprep.subr.mxu0 %v5446
        %5869 = vmatpush1.msra.mxu0 %v5445
        %5870 = vmatprep.subr.mxu0 %v5454
        %5871 = vmatpush1.msra.mxu0 %v5453
        %5872 = vmatprep.subr.mxu0 %v5462
        %5873 = vmatpush1.msra.mxu0 %v5461
        %5874 = vmatprep.subr.mxu0 %v5470
        %5875 = vmatpush1.msra.mxu0 %v5469
        %5876 = vmatprep.subr.mxu0 0.0
        %5877 = vmatpush1.msra.mxu0 0.0
        %5878 = vmatprep.subr.mxu0 0.0
        %5879 = vmatpush1.msra.mxu0 0.0
        %5880 = vmatprep.subr.mxu0 0.0
        %5881 = vmatpush1.msra.mxu0 0.0
        %5882 = vmatprep.subr.mxu0 0.0
        %5883 = vmatpush1.msra.mxu0 0.0
        %5884 = vmatprep.subr.mxu0 0.0
        %5885 = vmatpush1.msra.mxu0 0.0
        %5886 = vmatprep.subr.mxu0 0.0
        %5887 = vmatpush1.msra.mxu0 0.0
        %5888 = vmatprep.subr.mxu0 0.0
        %5889 = vmatpush1.msra.mxu0 0.0
        %5890 = vmatprep.subr.mxu0 0.0
        %5891 = vmatpush1.msra.mxu0 0.0
        %5892 = vmatprep.subr.mxu0 0.0
        %5893 = vmatpush1.msra.mxu0 0.0
        %5894 = vmatprep.subr.mxu0 0.0
        %5895 = vmatpush1.msra.mxu0 0.0
        %5896 = vmatprep.subr.mxu0 0.0
        %5897 = vmatpush1.msra.mxu0 0.0
        %5898 = vmatprep.subr.mxu0 0.0
        %5899 = vmatpush1.msra.mxu0 0.0
        %5900 = vmatprep.subr.mxu0 0.0
        %5901 = vmatpush1.msra.mxu0 0.0
        %5902 = vmatprep.subr.mxu0 0.0
        %5903 = vmatpush1.msra.mxu0 0.0
        %5904 = vmatprep.mubr.f32.mxu0 %v5625
        %5905 = vmatmul.mubr.f32.gmra.mrb[0].mxu0 %v2146
        %v5906 = vpop.f32.mrb[0].mxu0
        %v5907 = vadd.f32 %v5836, %v5906
        %v5908 = vpop.f32.mrb[0].mxu0
        %v5909 = vadd.f32 %v5838, %v5908
        %5910 = vdwg.mxu0
        %5911 = vmatprep.subr.mxu0 %v2279
        %5912 = vmatpush1.msra.mxu0 %v2278
        %5913 = vmatprep.subr.mxu0 %v2287
        %5914 = vmatpush1.msra.mxu0 %v2286
        %5915 = vmatprep.subr.mxu0 %v3297
        %5916 = vmatpush1.msra.mxu0 %v3296
        %5917 = vmatprep.subr.mxu0 %v3305
        %5918 = vmatpush1.msra.mxu0 %v3304
        %5919 = vmatprep.subr.mxu0 %v3369
        %5920 = vmatpush1.msra.mxu0 %v3368
        %5921 = vmatprep.subr.mxu0 %v3377
        %5922 = vmatpush1.msra.mxu0 %v3376
        %5923 = vmatprep.subr.mxu0 %v3455
        %5924 = vmatpush1.msra.mxu0 %v3454
        %5925 = vmatprep.subr.mxu0 %v3463
        %5926 = vmatpush1.msra.mxu0 %v3462
        %5927 = vmatprep.subr.mxu0 %v3541
        %5928 = vmatpush1.msra.mxu0 %v3540
        %5929 = vmatprep.subr.mxu0 %v3549
        %5930 = vmatpush1.msra.mxu0 %v3548
        %5931 = vmatprep.subr.mxu0 %v3627
        %5932 = vmatpush1.msra.mxu0 %v3626
        %5933 = vmatprep.subr.mxu0 %v3635
        %5934 = vmatpush1.msra.mxu0 %v3634
        %5935 = vmatprep.subr.mxu0 %v3713
        %5936 = vmatpush1.msra.mxu0 %v3712
        %5937 = vmatprep.subr.mxu0 %v3721
        %5938 = vmatpush1.msra.mxu0 %v3720
        %5939 = vmatprep.subr.mxu0 %v3781
        %5940 = vmatpush1.msra.mxu0 %v3780
        %5941 = vmatprep.subr.mxu0 %v3789
        %5942 = vmatpush1.msra.mxu0 %v3788
        %5943 = vmatprep.subr.mxu0 %v3867
        %5944 = vmatpush1.msra.mxu0 %v3866
        %5945 = vmatprep.subr.mxu0 %v3875
        %5946 = vmatpush1.msra.mxu0 %v3874
        %5947 = vmatprep.subr.mxu0 %v3953
        %5948 = vmatpush1.msra.mxu0 %v3952
        %5949 = vmatprep.subr.mxu0 %v3961
        %5950 = vmatpush1.msra.mxu0 %v3960
        %5951 = vmatprep.subr.mxu0 %v4039
        %5952 = vmatpush1.msra.mxu0 %v4038
        %5953 = vmatprep.subr.mxu0 %v4047
        %5954 = vmatpush1.msra.mxu0 %v4046
        %5955 = vmatprep.subr.mxu0 %v4126
        %5956 = vmatpush1.msra.mxu0 %v4125
        %5957 = vmatprep.subr.mxu0 %v4134
        %5958 = vmatpush1.msra.mxu0 %v4133
        %5959 = vmatprep.subr.mxu0 %v4195
        %5960 = vmatpush1.msra.mxu0 %v4194
        %5961 = vmatprep.subr.mxu0 %v4203
        %5962 = vmatpush1.msra.mxu0 %v4202
        %5963 = vmatprep.subr.mxu0 %v4282
        %5964 = vmatpush1.msra.mxu0 %v4281
        %5965 = vmatprep.subr.mxu0 %v4290
        %5966 = vmatpush1.msra.mxu0 %v4289
        %5967 = vmatprep.subr.mxu0 %v4369
        %5968 = vmatpush1.msra.mxu0 %v4368
        %5969 = vmatprep.subr.mxu0 %v4377
        %5970 = vmatpush1.msra.mxu0 %v4376
        %5971 = vmatprep.subr.mxu0 %v4455
        %5972 = vmatpush1.msra.mxu0 %v4454
        %5973 = vmatprep.subr.mxu0 %v4463
        %5974 = vmatpush1.msra.mxu0 %v4462
        %5975 = vmatprep.mubr.f32.mxu0 %v2145
        %5976 = vmatmul.mubr.f32.gmra.mrb[0].mxu0 %v2144
        %v5977 = vpop.f32.mrb[0].mxu0
        %v5978 = vadd.f32 %v5622, %v5977
        %v5979 = vpop.f32.mrb[0].mxu0
        %v5980 = vadd.f32 %v5622, %v5979
        %5981 = vdwg.mxu0
        %5982 = vmatprep.subr.mxu0 %v5336
        %5983 = vmatpush1.msra.mxu0 %v5335
        %5984 = vmatprep.subr.mxu0 %v5344
        %5985 = vmatpush1.msra.mxu0 %v5343
        %5986 = vmatprep.subr.mxu0 %v5352
        %5987 = vmatpush1.msra.mxu0 %v5351
        %5988 = vmatprep.subr.mxu0 %v5360
        %5989 = vmatpush1.msra.mxu0 %v5359
        %5990 = vmatprep.subr.mxu0 %v5368
        %5991 = vmatpush1.msra.mxu0 %v5367
        %5992 = vmatprep.subr.mxu0 %v5376
        %5993 = vmatpush1.msra.mxu0 %v5375
        %5994 = vmatprep.subr.mxu0 %v5384
        %5995 = vmatpush1.msra.mxu0 %v5383
        %5996 = vmatprep.subr.mxu0 %v5392
        %5997 = vmatpush1.msra.mxu0 %v5391
        %5998 = vmatprep.subr.mxu0 %v5400
        %5999 = vmatpush1.msra.mxu0 %v5399
        %6000 = vmatprep.subr.mxu0 %v5408
        %6001 = vmatpush1.msra.mxu0 %v5407
        %6002 = vmatprep.subr.mxu0 %v5416
        %6003 = vmatpush1.msra.mxu0 %v5415
        %6004 = vmatprep.subr.mxu0 %v5424
        %6005 = vmatpush1.msra.mxu0 %v5423
        %6006 = vmatprep.subr.mxu0 %v5432
        %6007 = vmatpush1.msra.mxu0 %v5431
        %6008 = vmatprep.subr.mxu0 %v5440
        %6009 = vmatpush1.msra.mxu0 %v5439
        %6010 = vmatprep.subr.mxu0 %v5448
        %6011 = vmatpush1.msra.mxu0 %v5447
        %6012 = vmatprep.subr.mxu0 %v5456
        %6013 = vmatpush1.msra.mxu0 %v5455
        %6014 = vmatprep.subr.mxu0 %v5464
        %6015 = vmatpush1.msra.mxu0 %v5463
        %6016 = vmatprep.subr.mxu0 %v5472
        %6017 = vmatpush1.msra.mxu0 %v5471
        %6018 = vmatprep.subr.mxu0 0.0
        %6019 = vmatpush1.msra.mxu0 0.0
        %6020 = vmatprep.subr.mxu0 0.0
        %6021 = vmatpush1.msra.mxu0 0.0
        %6022 = vmatprep.subr.mxu0 0.0
        %6023 = vmatpush1.msra.mxu0 0.0
        %6024 = vmatprep.subr.mxu0 0.0
        %6025 = vmatpush1.msra.mxu0 0.0
        %6026 = vmatprep.subr.mxu0 0.0
        %6027 = vmatpush1.msra.mxu0 0.0
        %6028 = vmatprep.subr.mxu0 0.0
        %6029 = vmatpush1.msra.mxu0 0.0
        %6030 = vmatprep.subr.mxu0 0.0
        %6031 = vmatpush1.msra.mxu0 0.0
        %6032 = vmatprep.subr.mxu0 0.0
        %6033 = vmatpush1.msra.mxu0 0.0
        %6034 = vmatprep.subr.mxu0 0.0
        %6035 = vmatpush1.msra.mxu0 0.0
        %6036 = vmatprep.subr.mxu0 0.0
        %6037 = vmatpush1.msra.mxu0 0.0
        %6038 = vmatprep.subr.mxu0 0.0
        %6039 = vmatpush1.msra.mxu0 0.0
        %6040 = vmatprep.subr.mxu0 0.0
        %6041 = vmatpush1.msra.mxu0 0.0
        %6042 = vmatprep.subr.mxu0 0.0
        %6043 = vmatpush1.msra.mxu0 0.0
        %6044 = vmatprep.subr.mxu0 0.0
        %6045 = vmatpush1.msra.mxu0 0.0
        %6046 = vmatprep.mubr.f32.mxu0 %v5625
        %6047 = vmatmul.mubr.f32.gmra.mrb[0].mxu0 %v2146
        %v6048 = vpop.f32.mrb[0].mxu0
        %v6049 = vadd.f32 %v5978, %v6048
        %v6050 = vpop.f32.mrb[0].mxu0
        %v6051 = vadd.f32 %v5980, %v6050
        %6052 = vdwg.mxu0
        %6053 = vmatprep.subr.mxu0 %v2281
        %6054 = vmatpush1.msra.mxu0 %v2280
        %6055 = vmatprep.subr.mxu0 %v2289
        %6056 = vmatpush1.msra.mxu0 %v2288
        %6057 = vmatprep.subr.mxu0 %v3299
        %6058 = vmatpush1.msra.mxu0 %v3298
        %6059 = vmatprep.subr.mxu0 %v3307
        %6060 = vmatpush1.msra.mxu0 %v3306
        %6061 = vmatprep.subr.mxu0 %v3371
        %6062 = vmatpush1.msra.mxu0 %v3370
        %6063 = vmatprep.subr.mxu0 %v3379
        %6064 = vmatpush1.msra.mxu0 %v3378
        %6065 = vmatprep.subr.mxu0 %v3457
        %6066 = vmatpush1.msra.mxu0 %v3456
        %6067 = vmatprep.subr.mxu0 %v3465
        %6068 = vmatpush1.msra.mxu0 %v3464
        %6069 = vmatprep.subr.mxu0 %v3543
        %6070 = vmatpush1.msra.mxu0 %v3542
        %6071 = vmatprep.subr.mxu0 %v3551
        %6072 = vmatpush1.msra.mxu0 %v3550
        %6073 = vmatprep.subr.mxu0 %v3629
        %6074 = vmatpush1.msra.mxu0 %v3628
        %6075 = vmatprep.subr.mxu0 %v3637
        %6076 = vmatpush1.msra.mxu0 %v3636
        %6077 = vmatprep.subr.mxu0 %v3715
        %6078 = vmatpush1.msra.mxu0 %v3714
        %6079 = vmatprep.subr.mxu0 %v3723
        %6080 = vmatpush1.msra.mxu0 %v3722
        %6081 = vmatprep.subr.mxu0 %v3783
        %6082 = vmatpush1.msra.mxu0 %v3782
        %6083 = vmatprep.subr.mxu0 %v3791
        %6084 = vmatpush1.msra.mxu0 %v3790
        %6085 = vmatprep.subr.mxu0 %v3869
        %6086 = vmatpush1.msra.mxu0 %v3868
        %6087 = vmatprep.subr.mxu0 %v3877
        %6088 = vmatpush1.msra.mxu0 %v3876
        %6089 = vmatprep.subr.mxu0 %v3955
        %6090 = vmatpush1.msra.mxu0 %v3954
        %6091 = vmatprep.subr.mxu0 %v3963
        %6092 = vmatpush1.msra.mxu0 %v3962
        %6093 = vmatprep.subr.mxu0 %v4041
        %6094 = vmatpush1.msra.mxu0 %v4040
        %6095 = vmatprep.subr.mxu0 %v4049
        %6096 = vmatpush1.msra.mxu0 %v4048
        %6097 = vmatprep.subr.mxu0 %v4128
        %6098 = vmatpush1.msra.mxu0 %v4127
        %6099 = vmatprep.subr.mxu0 %v4136
        %6100 = vmatpush1.msra.mxu0 %v4135
        %6101 = vmatprep.subr.mxu0 %v4197
        %6102 = vmatpush1.msra.mxu0 %v4196
        %6103 = vmatprep.subr.mxu0 %v4205
        %6104 = vmatpush1.msra.mxu0 %v4204
        %6105 = vmatprep.subr.mxu0 %v4284
        %6106 = vmatpush1.msra.mxu0 %v4283
        %6107 = vmatprep.subr.mxu0 %v4292
        %6108 = vmatpush1.msra.mxu0 %v4291
        %6109 = vmatprep.subr.mxu0 %v4371
        %6110 = vmatpush1.msra.mxu0 %v4370
        %6111 = vmatprep.subr.mxu0 %v4379
        %6112 = vmatpush1.msra.mxu0 %v4378
        %6113 = vmatprep.subr.mxu0 %v4457
        %6114 = vmatpush1.msra.mxu0 %v4456
        %6115 = vmatprep.subr.mxu0 %v4465
        %6116 = vmatpush1.msra.mxu0 %v4464
        %6117 = vmatprep.mubr.f32.mxu0 %v2145
        %6118 = vmatmul.mubr.f32.gmra.mrb[0].mxu0 %v2144
        %v6119 = vpop.f32.mrb[0].mxu0
        %v6120 = vadd.f32 %v5622, %v6119
        %v6121 = vpop.f32.mrb[0].mxu0
        %v6122 = vadd.f32 %v5622, %v6121
        %6123 = vdwg.mxu0
        %6124 = vmatprep.subr.mxu0 %v5338
        %6125 = vmatpush1.msra.mxu0 %v5337
        %6126 = vmatprep.subr.mxu0 %v5346
        %6127 = vmatpush1.msra.mxu0 %v5345
        %6128 = vmatprep.subr.mxu0 %v5354
        %6129 = vmatpush1.msra.mxu0 %v5353
        %6130 = vmatprep.subr.mxu0 %v5362
        %6131 = vmatpush1.msra.mxu0 %v5361
        %6132 = vmatprep.subr.mxu0 %v5370
        %6133 = vmatpush1.msra.mxu0 %v5369
        %6134 = vmatprep.subr.mxu0 %v5378
        %6135 = vmatpush1.msra.mxu0 %v5377
        %6136 = vmatprep.subr.mxu0 %v5386
        %6137 = vmatpush1.msra.mxu0 %v5385
        %6138 = vmatprep.subr.mxu0 %v5394
        %6139 = vmatpush1.msra.mxu0 %v5393
        %6140 = vmatprep.subr.mxu0 %v5402
        %6141 = vmatpush1.msra.mxu0 %v5401
        %6142 = vmatprep.subr.mxu0 %v5410
        %6143 = vmatpush1.msra.mxu0 %v5409
        %6144 = vmatprep.subr.mxu0 %v5418
        %6145 = vmatpush1.msra.mxu0 %v5417
        %6146 = vmatprep.subr.mxu0 %v5426
        %6147 = vmatpush1.msra.mxu0 %v5425
        %6148 = vmatprep.subr.mxu0 %v5434
        %6149 = vmatpush1.msra.mxu0 %v5433
        %6150 = vmatprep.subr.mxu0 %v5442
        %6151 = vmatpush1.msra.mxu0 %v5441
        %6152 = vmatprep.subr.mxu0 %v5450
        %6153 = vmatpush1.msra.mxu0 %v5449
        %6154 = vmatprep.subr.mxu0 %v5458
        %6155 = vmatpush1.msra.mxu0 %v5457
        %6156 = vmatprep.subr.mxu0 %v5466
        %6157 = vmatpush1.msra.mxu0 %v5465
        %6158 = vmatprep.subr.mxu0 %v5474
        %6159 = vmatpush1.msra.mxu0 %v5473
        %6160 = vmatprep.subr.mxu0 0.0
        %6161 = vmatpush1.msra.mxu0 0.0
        %6162 = vmatprep.subr.mxu0 0.0
        %6163 = vmatpush1.msra.mxu0 0.0
        %6164 = vmatprep.subr.mxu0 0.0
        %6165 = vmatpush1.msra.mxu0 0.0
        %6166 = vmatprep.subr.mxu0 0.0
        %6167 = vmatpush1.msra.mxu0 0.0
        %6168 = vmatprep.subr.mxu0 0.0
        %6169 = vmatpush1.msra.mxu0 0.0
        %6170 = vmatprep.subr.mxu0 0.0
        %6171 = vmatpush1.msra.mxu0 0.0
        %6172 = vmatprep.subr.mxu0 0.0
        %6173 = vmatpush1.msra.mxu0 0.0
        %6174 = vmatprep.subr.mxu0 0.0
        %6175 = vmatpush1.msra.mxu0 0.0
        %6176 = vmatprep.subr.mxu0 0.0
        %6177 = vmatpush1.msra.mxu0 0.0
        %6178 = vmatprep.subr.mxu0 0.0
        %6179 = vmatpush1.msra.mxu0 0.0
        %6180 = vmatprep.subr.mxu0 0.0
        %6181 = vmatpush1.msra.mxu0 0.0
        %6182 = vmatprep.subr.mxu0 0.0
        %6183 = vmatpush1.msra.mxu0 0.0
        %6184 = vmatprep.subr.mxu0 0.0
        %6185 = vmatpush1.msra.mxu0 0.0
        %6186 = vmatprep.subr.mxu0 0.0
        %6187 = vmatpush1.msra.mxu0 0.0
        %6188 = vmatprep.mubr.f32.mxu0 %v5625
        %6189 = vmatmul.mubr.f32.gmra.mrb[0].mxu0 %v2146
        %v6190 = vpop.f32.mrb[0].mxu0
        %v6191 = vadd.f32 %v6120, %v6190
        %v6192 = vpop.f32.mrb[0].mxu0
        %v6193 = vadd.f32 %v6122, %v6192
        %6194 = vdwg.mxu0
        %v6195 = vxor.u32 %v5765, 2147483648
        %v6196 = vxor.u32 %v5767, 2147483648
        %v6197 = vxor.u32 %v5907, 2147483648
        %v6198 = vxor.u32 %v5909, 2147483648
        %v6199 = vxor.u32 %v6049, 2147483648
        %v6200 = vxor.u32 %v6051, 2147483648
        %v6201 = vxor.u32 %v6191, 2147483648
        %v6202 = vxor.u32 %v6193, 2147483648
        %v6203 = vmul.f32 %v6195, 1.442695
        %v6204 = vpow.pop %v6203
        %v6205 = vmul.f32 %v6196, 1.442695
        %v6206 = vpow.pop %v6205
        %v6207 = vmul.f32 %v6197, 1.442695
        %v6208 = vpow.pop %v6207
        %v6209 = vmul.f32 %v6198, 1.442695
        %v6210 = vpow.pop %v6209
        %v6211 = vmul.f32 %v6199, 1.442695
        %v6212 = vpow.pop %v6211
        %v6213 = vmul.f32 %v6200, 1.442695
        %v6214 = vpow.pop %v6213
        %v6215 = vmul.f32 %v6201, 1.442695
        %v6216 = vpow.pop %v6215
        %v6217 = vmul.f32 %v6202, 1.442695
        %v6218 = vpow.pop %v6217
        %v6219 = vadd.f32 %v6204, 1.0
        %v6220 = vadd.f32 %v6206, 1.0
        %v6221 = vadd.f32 %v6208, 1.0
        %v6222 = vadd.f32 %v6210, 1.0
        %v6223 = vadd.f32 %v6212, 1.0
        %v6224 = vadd.f32 %v6214, 1.0
        %v6225 = vadd.f32 %v6216, 1.0
        %v6226 = vadd.f32 %v6218, 1.0
        %v6227 = vrcp.pop %v6219
        %v6228 = vmul.f32 1.0, %v6227
        %v6229 = vrcp.pop %v6220
        %v6230 = vmul.f32 1.0, %v6229
        %v6231 = vrcp.pop %v6221
        %v6232 = vmul.f32 1.0, %v6231
        %v6233 = vrcp.pop %v6222
        %v6234 = vmul.f32 1.0, %v6233
        %v6235 = vrcp.pop %v6223
        %v6236 = vmul.f32 1.0, %v6235
        %v6237 = vrcp.pop %v6224
        %v6238 = vmul.f32 1.0, %v6237
        %v6239 = vrcp.pop %v6225
        %v6240 = vmul.f32 1.0, %v6239
        %v6241 = vrcp.pop %v6226
        %v6242 = vmul.f32 1.0, %v6241
        %v6251 = vcombine.low %v6228, %v6230
        %v6252 = vcombine.low %v6232, %v6234
        %v6253 = vcombine.low %v6236, %v6238
        %v6254 = vcombine.low %v6240, %v6242
        %v6256 = vunpack.c.l.s4 1966171168
        %v6257 = vunpack.c.0.s8 %v6256
        %v6258 = vlaneseq
        %v6259 = vshrl.u32 %v6258, 7
        %v6260 = vsub.s32 %v6257, %v6259
        %v6261 = vrot.slane %v6251, %v6260
        %v6263 = vunpack.c.l.s4 1966171168
        %v6264 = vunpack.c.0.s8 %v6263
        %v6265 = vlaneseq
        %v6266 = vshrl.u32 %v6265, 7
        %v6267 = vsub.s32 %v6264, %v6266
        %v6268 = vrot.slane %v6252, %v6267
        %v6270 = vunpack.c.l.s4 1966171168
        %v6271 = vunpack.c.0.s8 %v6270
        %v6272 = vlaneseq
        %v6273 = vshrl.u32 %v6272, 7
        %v6274 = vsub.s32 %v6271, %v6273
        %v6275 = vrot.slane %v6253, %v6274
        %v6277 = vunpack.c.l.s4 1966171168
        %v6278 = vunpack.c.0.s8 %v6277
        %v6279 = vlaneseq
        %v6280 = vshrl.u32 %v6279, 7
        %v6281 = vsub.s32 %v6278, %v6280
        %v6282 = vrot.slane %v6254, %v6281
        %v6283 = vcombine.low %v6261, %v6268
        %v6284 = vcombine.low %v6275, %v6282
        %v6286 = vunpack.c.l.s4 1966171168
        %v6287 = vunpack.c.0.s8 %v6286
        %v6288 = vlaneseq
        %v6289 = vshrl.u32 %v6288, 7
        %v6290 = vsub.s32 %v6287, %v6289
        %v6291 = vrot.slane %v6283, %v6290
        %v6293 = vunpack.c.l.s4 1966171168
        %v6294 = vunpack.c.0.s8 %v6293
        %v6295 = vlaneseq
        %v6296 = vshrl.u32 %v6295, 7
        %v6297 = vsub.s32 %v6294, %v6296
        %v6298 = vrot.slane %v6284, %v6297
        %v6299 = vcombine.low %v6291, %v6298
        %6301 = vst [vmem:[%s423] sm:$0xff] %v6299
        %p6302 = scmp.lt.s32.totalorder %s24, 1
        %s6303 = scalar_select %p6302, %s24, 1
        %s6304 = smul.addr %s6303, 8
        %s6305 = scalar_lea.vmem %s12, %s6304
        // Predicated region
        $region73: #{decoder_forward.1} parent=67 // pred_check
          %p6306 = pneg %p299
        $region74: #{decoder_forward.1} parent=67 // pred_check_branch
          %6308 = sbr.rel (%p6306) target = $region76
        $region75: #{decoder_forward.1} parent=67 // pred_region
          _
        $region76: #{decoder_forward.1} parent=67 // pred_fallthru
          _
      $region68: #{decoder_forward.1} parent=5 // pred_fallthru
        _
      %p6309 = scmp.le.s32.totalorder 2, %s19
      // Predicated region
      $region77: #{decoder_forward.1} parent=5 // pred_check
        %p6310 = pneg %p6309
      $region78: #{decoder_forward.1} parent=5 // pred_check_branch
        %6312 = sbr.rel (%p6310) target = $region80
      $region79: #{decoder_forward.1} parent=5 // pred_region
        %s6313 = ssub.s32 %s19, 2
        // Predicated region
        $region81: #{decoder_forward.1} parent=79 // pred_check
          %p6314 = pneg %p305
        $region82: #{decoder_forward.1} parent=79 // pred_check_branch
          %6316 = sbr.rel (%p6314) target = $region84
        $region83: #{decoder_forward.1} parent=79 // pred_region
          %p6317 = scmp.lt.s32.totalorder %s25, 1
          %s6318 = scalar_select %p6317, %s25, 1
          %s6319 = smul.addr %s6318, 8
          %s6320 = scalar_lea.vmem %s12, %s6319
        $region84: #{decoder_forward.1} parent=79 // pred_fallthru
          _
      $region80: #{decoder_forward.1} parent=5 // pred_fallthru
        _
    $region6: #{decoder_forward.1} parent=1 // loop_footer
      %s23 = sadd.s32 1, %s19
    $region7: #{decoder_forward.1} parent=1 // loop_footer_branch
      %18 = sbr.rel target = $region3
    $region8: #{decoder_forward.1} parent=1 // loop_exit
      _
    %6321 = vsyncpa [#allocation3], 1
    %s6322 = scalar_lea.sflag [#allocation3], 1
    %6323 = vsyncpa %s6322, 1

</llo_original>
